<compile_context>
chip_gen: v7x
topology: tpu7x:2x2x1
jax: 0.10.0
libtpu: 0.0.40
codegen_flags: <defaults>
</compile_context>

<pallas_src>
import math

import jax
import jax.numpy as jnp
from jax.experimental import pallas as pl
from jax.experimental.pallas import tpu as pltpu  # noqa: F401  (TPU backend assumed)

# ---- small, module-consistent sizes ----
N = 2              # batch
L = 8              # sequence length (tokens pooled)
WIDTH = 32         # model width
NUM_HEADS = 4      # must divide WIDTH (PyTorch default 12 does not divide 32)
HEAD_DIM = WIDTH // NUM_HEADS
MLP_DIM = 4 * WIDTH     # MlpBlock default: mlp_dim = 4 * width
LN_EPS = 1e-6
LANE = 128         # lane-group width

# Row layout of the packed consts block (appended below W2 inside slab `wb`).
R_BV, R_BS, R_BO, R_B1, R_B2, R_LNW, R_LNB = 0, 1, 2, 3, 4, 5, 6
R_HE = 8            # head->width indicator, NUM_HEADS rows   (8-row aligned)
R_SEG = 16          # batch segment-sum matrix, N rows        (8-row aligned)
C_ROWS = 24         # total rows in the consts block
C0 = MLP_DIM        # row offset of the consts block inside wb


def _maphead_kernel(x_ref, wa_ref, wb_ref, out_ref):
    f32 = jnp.float32
    hi = jax.lax.Precision.HIGHEST   # full-f32 MXU passes (matches the reference)

    x = x_ref[...]                                                   # (N*L, W)

    # ---- packed small constants (all (1|k, 128)-row slices of wb) ----
    bv   = wb_ref[C0 + R_BV:C0 + R_BV + 1, 0:WIDTH]                  # (1, W)
    bs   = wb_ref[C0 + R_BS:C0 + R_BS + 1, 0:NUM_HEADS]              # (1, H)
    bo   = wb_ref[C0 + R_BO:C0 + R_BO + 1, 0:WIDTH]
    b1   = wb_ref[C0 + R_B1:C0 + R_B1 + 1, 0:MLP_DIM]
    b2   = wb_ref[C0 + R_B2:C0 + R_B2 + 1, 0:WIDTH]
    ln_w = wb_ref[C0 + R_LNW:C0 + R_LNW + 1, 0:WIDTH]
    ln_b = wb_ref[C0 + R_LNB:C0 + R_LNB + 1, 0:WIDTH]
    he   = wb_ref[C0 + R_HE:C0 + R_HE + NUM_HEADS, 0:WIDTH]          # (H, W) head->width 0/1
    seg  = wb_ref[C0 + R_SEG:C0 + R_SEG + N, 0:N * L]                # (N, N*L) batch 0/1

    # ---- fused V projection + pre-scaled per-head attention scores ----
    # (the probe query is folded into the score weights on the host).
    sv = jnp.dot(x, wa_ref[:, 0:2 * LANE],
                 preferred_element_type=f32, precision=hi)           # (N*L, 256)
    v = sv[:, 0:WIDTH] + bv                                          # lane group 0 -> (N*L, W)
    s = sv[:, LANE:LANE + NUM_HEADS] + bs                            # lane group 1 -> (N*L, H)

    # ---- softmax over tokens, per (batch, head); everything stays 2-D ----
    m = jnp.max(s, axis=0, keepdims=True)        # per-head constant: cancels inside softmax
    p = jnp.exp(s - m)                                               # (N*L, H) unnormalised
    p_w = jnp.dot(p, he, preferred_element_type=f32, precision=hi)   # (N*L, W) prob per width col
    attn_un = jnp.dot(seg, p_w * v, preferred_element_type=f32, precision=hi)  # (N, W)
    denom_w = jnp.dot(seg, p_w, preferred_element_type=f32, precision=hi)      # (N, W)
    attn = attn_un * pl.reciprocal(denom_w)      # exact reciprocal (approx=False)

    # ---- MHA output projection ----
    attn_out = jnp.dot(attn, wa_ref[:, 2 * LANE:2 * LANE + WIDTH],
                       preferred_element_type=f32, precision=hi) + bo          # (N, W)

    # ---- LayerNorm(eps=1e-6, learnable affine) ----
    mean = jnp.mean(attn_out, axis=-1, keepdims=True)
    var = jnp.mean((attn_out - mean) ** 2, axis=-1, keepdims=True)
    y = (attn_out - mean) * jax.lax.rsqrt(var + LN_EPS) * ln_w + ln_b

    # ---- MLP block: Linear -> GELU(tanh) -> Linear  (dropout rate 0 -> no-op) ----
    h1 = jnp.dot(y, wa_ref[:, 3 * LANE:3 * LANE + MLP_DIM],
                 preferred_element_type=f32, precision=hi) + b1                # (N, MLP_DIM)
    c = math.sqrt(2.0 / math.pi)
    h1 = 0.5 * h1 * (1.0 + jnp.tanh(c * (h1 + 0.044715 * h1 * h1 * h1)))
    h2 = jnp.dot(h1, wb_ref[0:MLP_DIM, 0:WIDTH],
                 preferred_element_type=f32, precision=hi) + b2                # (N, W)

    # Residual; equals x[:, 0] of the PyTorch module (query length is 1).
    out_ref[...] = (attn_out + h2).astype(out_ref.dtype)


def maphead_forward(x, params):
    (probe, wq, bq, wk, bk, wv, bv, wo, bo, ln_w, ln_b, w1, b1, w2, b2) = params
    n, seq, d = x.shape
    assert (n, seq, d) == (N, L, WIDTH)
    f32 = jnp.float32

    # ---- batch-independent precomputation (tiny, plain XLA, full f32 precision) ----
    d_idx = jnp.arange(WIDTH)[None, :] // HEAD_DIM
    h_idx = jnp.arange(NUM_HEADS)[:, None]
    head_expand = (h_idx == d_idx).astype(f32)                     # (H, W) head->width indicator
    seg = (jnp.arange(N)[:, None] ==
           jnp.arange(N * L)[None, :] // L).astype(f32)            # (N, N*L) batch segment matrix

    with jax.default_matmul_precision("float32"):
        scale = 1.0 / math.sqrt(HEAD_DIM)
        q = (probe @ wq + bq) * scale                              # (1, W) pre-scaled query
        # Fold the query into the key projection:
        #   score[:, h] = sum_{d in head h} (x@Wk + bk)[:, d] * q[0, d]
        qS = q.reshape(WIDTH, 1) * head_expand.T                   # (W, H)
        w_score = wk @ qS                                          # (W, H)
        b_score = bk @ qS                                          # (1, H)

    # ---- slab A: all 32-row weights, one 128-lane group each ----
    wa = jnp.zeros((WIDTH, 4 * LANE), f32)
    wa = wa.at[:, 0:WIDTH].set(wv)                                 # group 0: V projection
    wa = wa.at[:, LANE:LANE + NUM_HEADS].set(w_score)              # group 1: per-head scores
    wa = wa.at[:, 2 * LANE:2 * LANE + WIDTH].set(wo)               # group 2: output projection
    wa = wa.at[:, 3 * LANE:3 * LANE + MLP_DIM].set(w1)             # group 3: MLP linear1

    # ---- slab B: W2 + packed consts block (biases, LN params, indicator, segment) ----
    consts = jnp.zeros((C_ROWS, LANE), f32)
    consts = consts.at[R_BV, 0:WIDTH].set(bv[0])
    consts = consts.at[R_BS, 0:NUM_HEADS].set(b_score[0])
    consts = consts.at[R_BO, 0:WIDTH].set(bo[0])
    consts = consts.at[R_B1, 0:MLP_DIM].set(b1[0])
    consts = consts.at[R_B2, 0:WIDTH].set(b2[0])
    consts = consts.at[R_LNW, 0:WIDTH].set(ln_w[0])
    consts = consts.at[R_LNB, 0:WIDTH].set(ln_b[0])
    consts = consts.at[R_HE:R_HE + NUM_HEADS, 0:WIDTH].set(head_expand)
    consts = consts.at[R_SEG:R_SEG + N, 0:N * L].set(seg)
    wb = jnp.concatenate(
        [jnp.pad(w2, ((0, 0), (0, LANE - WIDTH))), consts], axis=0)   # (MLP_DIM + C_ROWS, 128)

    x2d = x.reshape(N * L, WIDTH)    # free XLA-side reshape; kernel stays 2-D

    # Gridless call: one invocation, whole arrays resident in VMEM (3 input DMAs,
    # no pipeline double-buffering needed for a single step).
    out = pl.pallas_call(
        _maphead_kernel,
        out_shape=jax.ShapeDtypeStruct((N, WIDTH), x.dtype),
    )(x2d, wa, wb)
    return out                                                        # (N, W)


# ---------- pure-JAX reference (mirrors the PyTorch forward, unfused) ----------
def maphead_reference(x, params):
    (probe, wq, bq, wk, bk, wv, bv, wo, bo,
     ln_w, ln_b, w1, b1, w2, b2) = params
    with jax.default_matmul_precision("float32"):   # match the kernel's f32 matmuls
        n = x.shape[0]
        q = jnp.tile(probe[None], (n, 1, 1)) @ wq + bq            # (n, 1, D)
        k = x @ wk + bk                                           # (n, L, D)
        v = x @ wv + bv
        qh = q.reshape(n, 1, NUM_HEADS, HEAD_DIM).transpose(0, 2, 1, 3)
        kh = k.reshape(n, L, NUM_HEADS, HEAD_DIM).transpose(0, 2, 1, 3)
        vh = v.reshape(n, L, NUM_HEADS, HEAD_DIM).transpose(0, 2, 1, 3)
        s = jnp.einsum('bhqd,bhkd->bhqk', qh, kh) / math.sqrt(HEAD_DIM)
        p = jax.nn.softmax(s, axis=-1)
        o = jnp.einsum('bhqk,bhkd->bhqd', p, vh).transpose(0, 2, 1, 3).reshape(n, 1, WIDTH)
        attn_out = o @ wo + bo
        mean = jnp.mean(attn_out, axis=-1, keepdims=True)
        var = jnp.mean((attn_out - mean) ** 2, axis=-1, keepdims=True)
        y = (attn_out - mean) * jax.lax.rsqrt(var + LN_EPS) * ln_w + ln_b
        h1 = y @ w1 + b1
        c = math.sqrt(2.0 / math.pi)
        h1 = 0.5 * h1 * (1.0 + jnp.tanh(c * (h1 + 0.044715 * h1 ** 3)))
        out = attn_out + h1 @ w2 + b2
        return out[:, 0]


def _xavier_uniform(key, shape):
    fan_in, fan_out = shape[0], shape[1]
    bound = math.sqrt(6.0 / (fan_in + fan_out))
    return jax.random.uniform(key, shape, jnp.float32, -bound, bound)


def init_params(key):
    ks = jax.random.split(key, 16)
    probe = _xavier_uniform(ks[0], (1, WIDTH))                     # (1, D)
    wq = _xavier_uniform(ks[1], (WIDTH, WIDTH))                    # transposed (in, out)
    wk = _xavier_uniform(ks[2], (WIDTH, WIDTH))
    wv = _xavier_uniform(ks[3], (WIDTH, WIDTH))
    wo = _xavier_uniform(ks[4], (WIDTH, WIDTH))
    bq = 1e-6 * jax.random.normal(ks[5], (1, WIDTH), jnp.float32)
    bk = 1e-6 * jax.random.normal(ks[6], (1, WIDTH), jnp.float32)
    bv = 1e-6 * jax.random.normal(ks[7], (1, WIDTH), jnp.float32)
    bo = 1e-6 * jax.random.normal(ks[8], (1, WIDTH), jnp.float32)
    ln_w = jnp.ones((1, WIDTH), jnp.float32)                       # nn.LayerNorm defaults
    ln_b = jnp.zeros((1, WIDTH), jnp.float32)
    w1 = _xavier_uniform(ks[9], (WIDTH, MLP_DIM))
    b1 = 1e-6 * jax.random.normal(ks[10], (1, MLP_DIM), jnp.float32)
    w2 = _xavier_uniform(ks[11], (MLP_DIM, WIDTH))
    b2 = 1e-6 * jax.random.normal(ks[12], (1, WIDTH), jnp.float32)
    return (probe, wq, bq, wk, bk, wv, bv, wo, bo, ln_w, ln_b, w1, b1, w2, b2)


if __name__ == "__main__":
    key = jax.random.PRNGKey(0)
    kx, kp = jax.random.split(key)
    x = jax.random.normal(kx, (N, L, WIDTH), jnp.float32)
    params = init_params(kp)

    out = jax.block_until_ready(maphead_forward(x, params))
    ref = maphead_reference(x, params)

    assert out.shape == (N, WIDTH)
    max_err = float(jnp.max(jnp.abs(out - ref)))
    # Both sides run every matmul at full f32 precision and the softmax uses an
    # exact reciprocal, so the only remaining difference is f32 reassociation.
    assert jnp.allclose(out, ref, atol=2e-3, rtol=2e-3), \
        f"mismatch vs. JAX reference (max abs err {max_err})"
    print("KERNEL_OK")
</pallas_src>

<mosaic_0001>
module attributes {stable_mosaic.version = 11 : i64} {
  func.func @_maphead_kernel(%arg0: memref<16x32xf32, #tpu.memory_space<vmem>>, %arg1: memref<32x512xf32, #tpu.memory_space<vmem>>, %arg2: memref<152x128xf32, #tpu.memory_space<vmem>>, %arg3: memref<2x32xf32, #tpu.memory_space<vmem>>) attributes {dimension_semantics = [], scalar_prefetch = 0 : i64, scratch_operands = 0 : i64, tpu.core_type = #tpu.core_type<tc>} {
    %c0 = arith.constant 0 : index
    %c0_0 = arith.constant 0 : index
    %0 = vector.load %arg0[%c0, %c0_0] : memref<16x32xf32, #tpu.memory_space<vmem>>, vector<16x32xf32>
    %c128 = arith.constant 128 : index
    %c0_1 = arith.constant 0 : index
    %1 = vector.load %arg2[%c128, %c0_1] : memref<152x128xf32, #tpu.memory_space<vmem>>, vector<1x32xf32>
    %c129 = arith.constant 129 : index
    %c0_2 = arith.constant 0 : index
    %2 = vector.load %arg2[%c129, %c0_2] : memref<152x128xf32, #tpu.memory_space<vmem>>, vector<1x4xf32>
    %c130 = arith.constant 130 : index
    %c0_3 = arith.constant 0 : index
    %3 = vector.load %arg2[%c130, %c0_3] : memref<152x128xf32, #tpu.memory_space<vmem>>, vector<1x32xf32>
    %c131 = arith.constant 131 : index
    %c0_4 = arith.constant 0 : index
    %4 = vector.load %arg2[%c131, %c0_4] : memref<152x128xf32, #tpu.memory_space<vmem>>, vector<1x128xf32>
    %c132 = arith.constant 132 : index
    %c0_5 = arith.constant 0 : index
    %5 = vector.load %arg2[%c132, %c0_5] : memref<152x128xf32, #tpu.memory_space<vmem>>, vector<1x32xf32>
    %c133 = arith.constant 133 : index
    %c0_6 = arith.constant 0 : index
    %6 = vector.load %arg2[%c133, %c0_6] : memref<152x128xf32, #tpu.memory_space<vmem>>, vector<1x32xf32>
    %c134 = arith.constant 134 : index
    %c0_7 = arith.constant 0 : index
    %7 = vector.load %arg2[%c134, %c0_7] : memref<152x128xf32, #tpu.memory_space<vmem>>, vector<1x32xf32>
    %c136 = arith.constant 136 : index
    %c0_8 = arith.constant 0 : index
    %8 = vector.load %arg2[%c136, %c0_8] : memref<152x128xf32, #tpu.memory_space<vmem>>, vector<4x32xf32>
    %c144 = arith.constant 144 : index
    %c0_9 = arith.constant 0 : index
    %9 = vector.load %arg2[%c144, %c0_9] : memref<152x128xf32, #tpu.memory_space<vmem>>, vector<2x16xf32>
    %c0_10 = arith.constant 0 : index
    %c0_11 = arith.constant 0 : index
    %10 = vector.load %arg1[%c0_10, %c0_11] : memref<32x512xf32, #tpu.memory_space<vmem>>, vector<32x256xf32>
    %cst = arith.constant dense<0.000000e+00> : vector<16x256xf32>
    %11 = tpu.matmul %0, %10, %cst {dimension_numbers = #tpu.dot_dimension_numbers<[1], [0], [0], [1], [0, 0, 1, 1], [], []>, precision = #tpu.contract_precision<fp32>} : vector<16x32xf32>, vector<32x256xf32>, vector<16x256xf32> -> vector<16x256xf32>
    %12 = vector.extract_strided_slice %11 {offsets = [0, 0], sizes = [16, 32], strides = [1, 1]} : vector<16x256xf32> to vector<16x32xf32>
    %13 = vector.broadcast %1 : vector<1x32xf32> to vector<16x32xf32>
    %14 = arith.addf %12, %13 : vector<16x32xf32>
    %15 = vector.extract_strided_slice %11 {offsets = [0, 128], sizes = [16, 4], strides = [1, 1]} : vector<16x256xf32> to vector<16x4xf32>
    %16 = vector.broadcast %2 : vector<1x4xf32> to vector<16x4xf32>
    %17 = arith.addf %15, %16 : vector<16x4xf32>
    %cst_12 = arith.constant dense<0xFF800000> : vector<4xf32>
    %18 = vector.multi_reduction <maximumf>, %17, %cst_12 [0] : vector<16x4xf32> to vector<4xf32>
    %19 = vector.shape_cast %18 : vector<4xf32> to vector<1x4xf32>
    %20 = vector.broadcast %19 : vector<1x4xf32> to vector<16x4xf32>
    %21 = arith.subf %17, %20 : vector<16x4xf32>
    %22 = math.exp %21 : vector<16x4xf32>
    %cst_13 = arith.constant dense<0.000000e+00> : vector<16x32xf32>
    %23 = tpu.matmul %22, %8, %cst_13 {dimension_numbers = #tpu.dot_dimension_numbers<[1], [0], [0], [1], [0, 0, 1, 1], [], []>, precision = #tpu.contract_precision<fp32>} : vector<16x4xf32>, vector<4x32xf32>, vector<16x32xf32> -> vector<16x32xf32>
    %24 = arith.mulf %23, %14 : vector<16x32xf32>
    %cst_14 = arith.constant dense<0.000000e+00> : vector<2x32xf32>
    %25 = tpu.matmul %9, %24, %cst_14 {dimension_numbers = #tpu.dot_dimension_numbers<[1], [0], [0], [1], [0, 0, 1, 1], [], []>, precision = #tpu.contract_precision<fp32>} : vector<2x16xf32>, vector<16x32xf32>, vector<2x32xf32> -> vector<2x32xf32>
    %cst_15 = arith.constant dense<0.000000e+00> : vector<2x32xf32>
    %26 = tpu.matmul %9, %23, %cst_15 {dimension_numbers = #tpu.dot_dimension_numbers<[1], [0], [0], [1], [0, 0, 1, 1], [], []>, precision = #tpu.contract_precision<fp32>} : vector<2x16xf32>, vector<16x32xf32>, vector<2x32xf32> -> vector<2x32xf32>
    %27 = tpu.reciprocal %26 : vector<2x32xf32> -> vector<2x32xf32>
    %28 = arith.mulf %25, %27 : vector<2x32xf32>
    %c0_16 = arith.constant 0 : index
    %c256 = arith.constant 256 : index
    %29 = vector.load %arg1[%c0_16, %c256] : memref<32x512xf32, #tpu.memory_space<vmem>>, vector<32x32xf32>
    %cst_17 = arith.constant dense<0.000000e+00> : vector<2x32xf32>
    %30 = tpu.matmul %28, %29, %cst_17 {dimension_numbers = #tpu.dot_dimension_numbers<[1], [0], [0], [1], [0, 0, 1, 1], [], []>, precision = #tpu.contract_precision<fp32>} : vector<2x32xf32>, vector<32x32xf32>, vector<2x32xf32> -> vector<2x32xf32>
    %31 = vector.broadcast %3 : vector<1x32xf32> to vector<2x32xf32>
    %32 = arith.addf %30, %31 : vector<2x32xf32>
    %cst_18 = arith.constant dense<0.000000e+00> : vector<2xf32>
    %33 = vector.multi_reduction <add>, %32, %cst_18 [1] : vector<2x32xf32> to vector<2xf32>
    %34 = vector.shape_cast %33 : vector<2xf32> to vector<2x1xf32>
    %cst_19 = arith.constant 3.200000e+01 : f32
    %35 = vector.broadcast %cst_19 : f32 to vector<2x1xf32>
    %36 = arith.divf %34, %35 : vector<2x1xf32>
    %37 = vector.broadcast %36 : vector<2x1xf32> to vector<2x32xf32>
    %38 = arith.subf %32, %37 : vector<2x32xf32>
    %39 = arith.mulf %38, %38 : vector<2x32xf32>
    %cst_20 = arith.constant dense<0.000000e+00> : vector<2xf32>
    %40 = vector.multi_reduction <add>, %39, %cst_20 [1] : vector<2x32xf32> to vector<2xf32>
    %41 = vector.shape_cast %40 : vector<2xf32> to vector<2x1xf32>
    %cst_21 = arith.constant 3.200000e+01 : f32
    %42 = vector.broadcast %cst_21 : f32 to vector<2x1xf32>
    %43 = arith.divf %41, %42 : vector<2x1xf32>
    %44 = vector.broadcast %36 : vector<2x1xf32> to vector<2x32xf32>
    %45 = arith.subf %32, %44 : vector<2x32xf32>
    %cst_22 = arith.constant 9.99999997E-7 : f32
    %46 = vector.broadcast %cst_22 : f32 to vector<2x1xf32>
    %47 = arith.addf %43, %46 : vector<2x1xf32>
    %48 = math.rsqrt %47 : vector<2x1xf32>
    %49 = vector.broadcast %48 : vector<2x1xf32> to vector<2x32xf32>
    %50 = arith.mulf %45, %49 : vector<2x32xf32>
    %51 = vector.broadcast %6 : vector<1x32xf32> to vector<2x32xf32>
    %52 = arith.mulf %50, %51 : vector<2x32xf32>
    %53 = vector.broadcast %7 : vector<1x32xf32> to vector<2x32xf32>
    %54 = arith.addf %52, %53 : vector<2x32xf32>
    %c0_23 = arith.constant 0 : index
    %c384 = arith.constant 384 : index
    %55 = vector.load %arg1[%c0_23, %c384] : memref<32x512xf32, #tpu.memory_space<vmem>>, vector<32x128xf32>
    %cst_24 = arith.constant dense<0.000000e+00> : vector<2x128xf32>
    %56 = tpu.matmul %54, %55, %cst_24 {dimension_numbers = #tpu.dot_dimension_numbers<[1], [0], [0], [1], [0, 0, 1, 1], [], []>, precision = #tpu.contract_precision<fp32>} : vector<2x32xf32>, vector<32x128xf32>, vector<2x128xf32> -> vector<2x128xf32>
    %57 = vector.broadcast %4 : vector<1x128xf32> to vector<2x128xf32>
    %58 = arith.addf %56, %57 : vector<2x128xf32>
    %cst_25 = arith.constant 5.000000e-01 : f32
    %59 = vector.broadcast %cst_25 : f32 to vector<2x128xf32>
    %60 = arith.mulf %59, %58 : vector<2x128xf32>
    %cst_26 = arith.constant 4.471500e-02 : f32
    %61 = vector.broadcast %cst_26 : f32 to vector<2x128xf32>
    %62 = arith.mulf %61, %58 : vector<2x128xf32>
    %63 = arith.mulf %62, %58 : vector<2x128xf32>
    %64 = arith.mulf %63, %58 : vector<2x128xf32>
    %65 = arith.addf %58, %64 : vector<2x128xf32>
    %cst_27 = arith.constant 0.797884583 : f32
    %66 = vector.broadcast %cst_27 : f32 to vector<2x128xf32>
    %67 = arith.mulf %66, %65 : vector<2x128xf32>
    %68 = math.tanh %67 : vector<2x128xf32>
    %cst_28 = arith.constant 1.000000e+00 : f32
    %69 = vector.broadcast %cst_28 : f32 to vector<2x128xf32>
    %70 = arith.addf %69, %68 : vector<2x128xf32>
    %71 = arith.mulf %60, %70 : vector<2x128xf32>
    %c0_29 = arith.constant 0 : index
    %c0_30 = arith.constant 0 : index
    %72 = vector.load %arg2[%c0_29, %c0_30] : memref<152x128xf32, #tpu.memory_space<vmem>>, vector<128x32xf32>
    %cst_31 = arith.constant dense<0.000000e+00> : vector<2x32xf32>
    %73 = tpu.matmul %71, %72, %cst_31 {dimension_numbers = #tpu.dot_dimension_numbers<[1], [0], [0], [1], [0, 0, 1, 1], [], []>, precision = #tpu.contract_precision<fp32>} : vector<2x128xf32>, vector<128x32xf32>, vector<2x32xf32> -> vector<2x32xf32>
    %74 = vector.broadcast %5 : vector<1x32xf32> to vector<2x32xf32>
    %75 = arith.addf %73, %74 : vector<2x32xf32>
    %76 = arith.addf %32, %75 : vector<2x32xf32>
    %c0_32 = arith.constant 0 : index
    %c0_33 = arith.constant 0 : index
    %77 = vector.load %arg3[%c0_32, %c0_33] : memref<2x32xf32, #tpu.memory_space<vmem>>, vector<2x32xf32>
    tpu.vector_store %arg3[%c0_32, %c0_33], %76 {strides = array<i32>} : memref<2x32xf32, #tpu.memory_space<vmem>>, vector<2x32xf32>,
    return
  }
}

</mosaic_0001>

<llo_original>
// kernel: tpu_custom_call.1
$region0: #{tpu_custom_call.1}
  #allocation0 [shape = 'u32[]', space=smem, size = 0x4, offset = 0x4, fixed_abs, tag = 'smem constant byte address 0x4 - core index']
  #allocation1 [shape = 'u32[144,128]{1,0:T(1,128)}', space=vmem, size = 0x12000, scoped, tag = 'internal scratch']
  %s0 = inlined_call_operand.hbm [shape: f32[16,32], index: 0, kind: input, shape index: {}]
  %s1 = inlined_call_operand.hbm [shape: f32[32,512], index: 1, kind: input, shape index: {}]
  %s2 = inlined_call_operand.hbm [shape: f32[152,128], index: 2, kind: input, shape index: {}]
  %s3 = inlined_call_operand.hbm [shape: f32[2,32], index: 3, kind: output, shape index: {}]
  %s4 = sld [smem:[#allocation0]]
  $region34: #{tpu_custom_call.1} parent=0
    _
  %s6 = ssub.s32 1, %s4
  %s7 = scalar_select 0, %s6, %s4
  $region1: #{tpu_custom_call.1} parent=0
    #allocation2 [shape = 'u8[8192]{0}', space=vmem, size = 0x2000, scoped, tag = 'input window, operand 0, single buffered']
    #allocation3 [shape = 's32[1]{0}', space=sflag, size = 0x4, scoped, tag = 'scoped memory for tpu_custom_call.1']
    #allocation4 [shape = 's32[1]{0}', space=sflag, size = 0x4, scoped, tag = 'scoped memory for tpu_custom_call.1']
    #allocation5 [shape = 'u8[65536]{0}', space=vmem, size = 0x10000, scoped, tag = 'input window, operand 1, single buffered']
    #allocation6 [shape = 's32[1]{0}', space=sflag, size = 0x4, scoped, tag = 'scoped memory for tpu_custom_call.1']
    #allocation7 [shape = 'u8[77824]{0}', space=vmem, size = 0x13000, scoped, tag = 'input window, operand 2, single buffered']
    #allocation8 [shape = 'u8[1024]{0}', space=vmem, size = 0x400, scoped, tag = 'output window, operand 0, single buffered']
    %8 = vsyncpa [#allocation3], 0
    %9 = vsyncpa [#allocation6], 0
    %10 = vsyncpa [#allocation4], 0
    // Predicated region
    $region2: #{tpu_custom_call.1} parent=1 // pred_check
      _
    $region3: #{tpu_custom_call.1} parent=1 // pred_check_branch
      %12 = sbr.rel (0) target = $region5
    $region4: #{tpu_custom_call.1} parent=1 // pred_region
      %s14 = ssub.s32 256, 256
      %15 = vsyncadd [#allocation3], %s14
      %s16 = sshll.u32 [#allocation2], 4
      %s17 = int_to_ptr.vmem [resolvable:$true] %s16
      %22 = dma.hbm_to_vmem [thread:$0]  %s0, 256, %s17, [#allocation3], 128, 128, 8
    $region5: #{tpu_custom_call.1} parent=1 // pred_fallthru
      _
    // Predicated region
    $region6: #{tpu_custom_call.1} parent=1 // pred_check
      _
    $region7: #{tpu_custom_call.1} parent=1 // pred_check_branch
      %24 = sbr.rel (0) target = $region9
    $region8: #{tpu_custom_call.1} parent=1 // pred_region
      %s26 = ssub.s32 2048, 2048
      %27 = vsyncadd [#allocation6], %s26
      %s28 = sshll.u32 [#allocation5], 4
      %s29 = int_to_ptr.vmem [resolvable:$true] %s28
      %34 = dma.hbm_to_vmem [thread:$0]  %s1, 2048, %s29, [#allocation6], 512, 512, 32
    $region9: #{tpu_custom_call.1} parent=1 // pred_fallthru
      _
    // Predicated region
    $region10: #{tpu_custom_call.1} parent=1 // pred_check
      _
    $region11: #{tpu_custom_call.1} parent=1 // pred_check_branch
      %36 = sbr.rel (0) target = $region13
    $region12: #{tpu_custom_call.1} parent=1 // pred_region
      %s38 = ssub.s32 2432, 2432
      %39 = vsyncadd [#allocation6], %s38
      %s40 = sshll.u32 [#allocation7], 4
      %s41 = int_to_ptr.vmem [resolvable:$true] %s40
      %46 = dma.hbm_to_vmem [thread:$0]  %s2, 2432, %s41, [#allocation6], 128, 128, 8
    $region13: #{tpu_custom_call.1} parent=1 // pred_fallthru
      _
    // Predicated region
    $region14: #{tpu_custom_call.1} parent=1 // pred_check
      _
    $region15: #{tpu_custom_call.1} parent=1 // pred_check_branch
      %48 = sbr.rel (0) target = $region17
    $region16: #{tpu_custom_call.1} parent=1 // pred_region
      %49 = dma.done [#allocation3], 256
    $region17: #{tpu_custom_call.1} parent=1 // pred_fallthru
      _
    // Predicated region
    $region18: #{tpu_custom_call.1} parent=1 // pred_check
      _
    $region19: #{tpu_custom_call.1} parent=1 // pred_check_branch
      %51 = sbr.rel (0) target = $region21
    $region20: #{tpu_custom_call.1} parent=1 // pred_region
      %52 = dma.done [#allocation6], 2048
    $region21: #{tpu_custom_call.1} parent=1 // pred_fallthru
      _
    // Predicated region
    $region22: #{tpu_custom_call.1} parent=1 // pred_check
      _
    $region23: #{tpu_custom_call.1} parent=1 // pred_check_branch
      %54 = sbr.rel (0) target = $region25
    $region24: #{tpu_custom_call.1} parent=1 // pred_region
      %55 = dma.done [#allocation6], 2432
    $region25: #{tpu_custom_call.1} parent=1 // pred_fallthru
      _
    %v56 = vld [vmem:[#allocation2] sm:$0xff]
    %v57 = vld [vmem:[#allocation2 + $0x8] sm:$0xff]
    %v58 = vld [vmem:[#allocation7 + $0x80] sm:$0x1]
    %v59 = vld [vmem:[#allocation7 + $0x81] sm:$0x1]
    %v60 = vld [vmem:[#allocation7 + $0x82] sm:$0x1]
    %v61 = vld [vmem:[#allocation7 + $0x83] sm:$0x1]
    %v62 = vld [vmem:[#allocation7 + $0x84] sm:$0x1]
    %v63 = vld [vmem:[#allocation7 + $0x85] sm:$0x1]
    %v64 = vld [vmem:[#allocation7 + $0x86] sm:$0x1]
    %v65 = vld [vmem:[#allocation7 + $0x88] sm:$0xf]
    %v66 = vld [vmem:[#allocation7 + $0x90] sm:$0x3]
    %v67 = vld [vmem:[#allocation5] sm:$0xff]
    %v68 = vld [vmem:[#allocation5 + $0x8] sm:$0xff]
    %v69 = vld [vmem:[#allocation5 + $0x20] sm:$0xff]
    %v70 = vld [vmem:[#allocation5 + $0x28] sm:$0xff]
    %v71 = vld [vmem:[#allocation5 + $0x40] sm:$0xff]
    %v72 = vld [vmem:[#allocation5 + $0x48] sm:$0xff]
    %v73 = vld [vmem:[#allocation5 + $0x60] sm:$0xff]
    %v74 = vld [vmem:[#allocation5 + $0x68] sm:$0xff]
    %vm75 = vcmask 261120
    %v77 = vsel %vm75, %v56, 0
    %v80 = vsel %vm75, %v57, 0
    %v82 = vand.u32 %v68, 4294901760
    %83 = vmatprep.subr.mxu0 %v82
    %v84 = vand.u32 %v67, 4294901760
    %85 = vmatpush1.msra.mxu0 %v84
    %v86 = vand.u32 %v70, 4294901760
    %87 = vmatprep.subr.mxu0 %v86
    %v88 = vand.u32 %v69, 4294901760
    %89 = vmatpush1.msra.mxu0 %v88
    %v90 = vand.u32 %v72, 4294901760
    %91 = vmatprep.subr.mxu0 %v90
    %v92 = vand.u32 %v71, 4294901760
    %93 = vmatpush1.msra.mxu0 %v92
    %v94 = vand.u32 %v74, 4294901760
    %95 = vmatprep.subr.mxu0 %v94
    %v96 = vand.u32 %v73, 4294901760
    %97 = vmatpush1.msra.mxu0 %v96
    %98 = vmatprep.subr.mxu0 0.0
    %99 = vmatpush1.msra.mxu0 0.0
    %100 = vmatprep.subr.mxu0 0.0
    %101 = vmatpush1.msra.mxu0 0.0
    %102 = vmatprep.subr.mxu0 0.0
    %103 = vmatpush1.msra.mxu0 0.0
    %104 = vmatprep.subr.mxu0 0.0
    %105 = vmatpush1.msra.mxu0 0.0
    %106 = vmatprep.subr.mxu0 0.0
    %107 = vmatpush1.msra.mxu0 0.0
    %108 = vmatprep.subr.mxu0 0.0
    %109 = vmatpush1.msra.mxu0 0.0
    %110 = vmatprep.subr.mxu0 0.0
    %111 = vmatpush1.msra.mxu0 0.0
    %112 = vmatprep.subr.mxu0 0.0
    %113 = vmatpush1.msra.mxu0 0.0
    %114 = vmatprep.subr.mxu0 0.0
    %115 = vmatpush1.msra.mxu0 0.0
    %116 = vmatprep.subr.mxu0 0.0
    %117 = vmatpush1.msra.mxu0 0.0
    %118 = vmatprep.subr.mxu0 0.0
    %119 = vmatpush1.msra.mxu0 0.0
    %120 = vmatprep.subr.mxu0 0.0
    %121 = vmatpush1.msra.mxu0 0.0
    %122 = vmatprep.subr.mxu0 0.0
    %123 = vmatpush1.msra.mxu0 0.0
    %124 = vmatprep.subr.mxu0 0.0
    %125 = vmatpush1.msra.mxu0 0.0
    %126 = vmatprep.subr.mxu0 0.0
    %127 = vmatpush1.msra.mxu0 0.0
    %128 = vmatprep.subr.mxu0 0.0
    %129 = vmatpush1.msra.mxu0 0.0
    %130 = vmatprep.subr.mxu0 0.0
    %131 = vmatpush1.msra.mxu0 0.0
    %132 = vmatprep.subr.mxu0 0.0
    %133 = vmatpush1.msra.mxu0 0.0
    %134 = vmatprep.subr.mxu0 0.0
    %135 = vmatpush1.msra.mxu0 0.0
    %136 = vmatprep.subr.mxu0 0.0
    %137 = vmatpush1.msra.mxu0 0.0
    %138 = vmatprep.subr.mxu0 0.0
    %139 = vmatpush1.msra.mxu0 0.0
    %140 = vmatprep.subr.mxu0 0.0
    %141 = vmatpush1.msra.mxu0 0.0
    %142 = vmatprep.subr.mxu0 0.0
    %143 = vmatpush1.msra.mxu0 0.0
    %144 = vmatprep.subr.mxu0 0.0
    %145 = vmatpush1.msra.mxu0 0.0
    %146 = vmatprep.subr.mxu0 0.0
    %147 = vmatpush1.msra.mxu0 0.0
    %148 = vmatprep.subr.mxu0 0.0
    %149 = vmatpush1.msra.mxu0 0.0
    %150 = vmatprep.subr.mxu0 0.0
    %151 = vmatpush1.msra.mxu0 0.0
    %152 = vmatprep.subr.mxu0 0.0
    %153 = vmatpush1.msra.mxu0 0.0
    %154 = vmatprep.mubr.f32.mxu0 0.0
    %v155 = vand.u32 %v77, 4294901760
    %v156 = vsub.f32 %v77, %v155
    %v157 = vand.u32 %v156, 4294901760
    %v158 = vsub.f32 %v156, %v157
    %v159 = vand.u32 %v158, 4294901760
    %160 = vmatmul.mubr.f32.gmra.mrb[0].mxu0 %v159
    %v161 = vpop.f32.mrb[0].mxu0
    %v162 = vadd.f32 0.0, %v161
    %v163 = vpop.f32.mrb[0].mxu0
    %v164 = vadd.f32 0.0, %v163
    %165 = vmatprep.mubr.f32.mxu0 0.0
    %v166 = vand.u32 %v80, 4294901760
    %v167 = vsub.f32 %v80, %v166
    %v168 = vand.u32 %v167, 4294901760
    %v169 = vsub.f32 %v167, %v168
    %v170 = vand.u32 %v169, 4294901760
    %171 = vmatmul.mubr.f32.gmra.mrb[0].mxu0 %v170
    %v172 = vpop.f32.mrb[0].mxu0
    %v173 = vadd.f32 0.0, %v172
    %v174 = vpop.f32.mrb[0].mxu0
    %v175 = vadd.f32 0.0, %v174
    %176 = vdwg.mxu0
    %v177 = vand.u32 %v68, 4294901760
    %v178 = vsub.f32 %v68, %v177
    %v179 = vand.u32 %v178, 4294901760
    %v180 = vsub.f32 %v178, %v179
    %v181 = vand.u32 %v180, 4294901760
    %182 = vmatprep.subr.mxu0 %v181
    %v183 = vand.u32 %v67, 4294901760
    %v184 = vsub.f32 %v67, %v183
    %v185 = vand.u32 %v184, 4294901760
    %v186 = vsub.f32 %v184, %v185
    %v187 = vand.u32 %v186, 4294901760
    %188 = vmatpush1.msra.mxu0 %v187
    %v189 = vand.u32 %v70, 4294901760
    %v190 = vsub.f32 %v70, %v189
    %v191 = vand.u32 %v190, 4294901760
    %v192 = vsub.f32 %v190, %v191
    %v193 = vand.u32 %v192, 4294901760
    %194 = vmatprep.subr.mxu0 %v193
    %v195 = vand.u32 %v69, 4294901760
    %v196 = vsub.f32 %v69, %v195
    %v197 = vand.u32 %v196, 4294901760
    %v198 = vsub.f32 %v196, %v197
    %v199 = vand.u32 %v198, 4294901760
    %200 = vmatpush1.msra.mxu0 %v199
    %v201 = vand.u32 %v72, 4294901760
    %v202 = vsub.f32 %v72, %v201
    %v203 = vand.u32 %v202, 4294901760
    %v204 = vsub.f32 %v202, %v203
    %v205 = vand.u32 %v204, 4294901760
    %206 = vmatprep.subr.mxu0 %v205
    %v207 = vand.u32 %v71, 4294901760
    %v208 = vsub.f32 %v71, %v207
    %v209 = vand.u32 %v208, 4294901760
    %v210 = vsub.f32 %v208, %v209
    %v211 = vand.u32 %v210, 4294901760
    %212 = vmatpush1.msra.mxu0 %v211
    %v213 = vand.u32 %v74, 4294901760
    %v214 = vsub.f32 %v74, %v213
    %v215 = vand.u32 %v214, 4294901760
    %v216 = vsub.f32 %v214, %v215
    %v217 = vand.u32 %v216, 4294901760
    %218 = vmatprep.subr.mxu0 %v217
    %v219 = vand.u32 %v73, 4294901760
    %v220 = vsub.f32 %v73, %v219
    %v221 = vand.u32 %v220, 4294901760
    %v222 = vsub.f32 %v220, %v221
    %v223 = vand.u32 %v222, 4294901760
    %224 = vmatpush1.msra.mxu0 %v223
    %225 = vmatprep.subr.mxu0 0.0
    %226 = vmatpush1.msra.mxu0 0.0
    %227 = vmatprep.subr.mxu0 0.0
    %228 = vmatpush1.msra.mxu0 0.0
    %229 = vmatprep.subr.mxu0 0.0
    %230 = vmatpush1.msra.mxu0 0.0
    %231 = vmatprep.subr.mxu0 0.0
    %232 = vmatpush1.msra.mxu0 0.0
    %233 = vmatprep.subr.mxu0 0.0
    %234 = vmatpush1.msra.mxu0 0.0
    %235 = vmatprep.subr.mxu0 0.0
    %236 = vmatpush1.msra.mxu0 0.0
    %237 = vmatprep.subr.mxu0 0.0
    %238 = vmatpush1.msra.mxu0 0.0
    %239 = vmatprep.subr.mxu0 0.0
    %240 = vmatpush1.msra.mxu0 0.0
    %241 = vmatprep.subr.mxu0 0.0
    %242 = vmatpush1.msra.mxu0 0.0
    %243 = vmatprep.subr.mxu0 0.0
    %244 = vmatpush1.msra.mxu0 0.0
    %245 = vmatprep.subr.mxu0 0.0
    %246 = vmatpush1.msra.mxu0 0.0
    %247 = vmatprep.subr.mxu0 0.0
    %248 = vmatpush1.msra.mxu0 0.0
    %249 = vmatprep.subr.mxu0 0.0
    %250 = vmatpush1.msra.mxu0 0.0
    %251 = vmatprep.subr.mxu0 0.0
    %252 = vmatpush1.msra.mxu0 0.0
    %253 = vmatprep.subr.mxu0 0.0
    %254 = vmatpush1.msra.mxu0 0.0
    %255 = vmatprep.subr.mxu0 0.0
    %256 = vmatpush1.msra.mxu0 0.0
    %257 = vmatprep.subr.mxu0 0.0
    %258 = vmatpush1.msra.mxu0 0.0
    %259 = vmatprep.subr.mxu0 0.0
    %260 = vmatpush1.msra.mxu0 0.0
    %261 = vmatprep.subr.mxu0 0.0
    %262 = vmatpush1.msra.mxu0 0.0
    %263 = vmatprep.subr.mxu0 0.0
    %264 = vmatpush1.msra.mxu0 0.0
    %265 = vmatprep.subr.mxu0 0.0
    %266 = vmatpush1.msra.mxu0 0.0
    %267 = vmatprep.subr.mxu0 0.0
    %268 = vmatpush1.msra.mxu0 0.0
    %269 = vmatprep.subr.mxu0 0.0
    %270 = vmatpush1.msra.mxu0 0.0
    %271 = vmatprep.subr.mxu0 0.0
    %272 = vmatpush1.msra.mxu0 0.0
    %273 = vmatprep.subr.mxu0 0.0
    %274 = vmatpush1.msra.mxu0 0.0
    %275 = vmatprep.subr.mxu0 0.0
    %276 = vmatpush1.msra.mxu0 0.0
    %277 = vmatprep.subr.mxu0 0.0
    %278 = vmatpush1.msra.mxu0 0.0
    %279 = vmatprep.subr.mxu0 0.0
    %280 = vmatpush1.msra.mxu0 0.0
    %281 = vmatprep.mubr.f32.mxu0 0.0
    %v282 = vand.u32 %v77, 4294901760
    %283 = vmatmul.mubr.f32.gmra.mrb[0].mxu0 %v282
    %v284 = vpop.f32.mrb[0].mxu0
    %v285 = vadd.f32 %v162, %v284
    %v286 = vpop.f32.mrb[0].mxu0
    %v287 = vadd.f32 %v164, %v286
    %288 = vmatprep.mubr.f32.mxu0 0.0
    %v289 = vand.u32 %v80, 4294901760
    %290 = vmatmul.mubr.f32.gmra.mrb[0].mxu0 %v289
    %v291 = vpop.f32.mrb[0].mxu0
    %v292 = vadd.f32 %v173, %v291
    %v293 = vpop.f32.mrb[0].mxu0
    %v294 = vadd.f32 %v175, %v293
    %295 = vdwg.mxu0
    %v296 = vand.u32 %v68, 4294901760
    %v297 = vsub.f32 %v68, %v296
    %298 = vmatprep.subr.mxu0 %v297
    %v299 = vand.u32 %v67, 4294901760
    %v300 = vsub.f32 %v67, %v299
    %301 = vmatpush1.msra.mxu0 %v300
    %v302 = vand.u32 %v70, 4294901760
    %v303 = vsub.f32 %v70, %v302
    %304 = vmatprep.subr.mxu0 %v303
    %v305 = vand.u32 %v69, 4294901760
    %v306 = vsub.f32 %v69, %v305
    %307 = vmatpush1.msra.mxu0 %v306
    %v308 = vand.u32 %v72, 4294901760
    %v309 = vsub.f32 %v72, %v308
    %310 = vmatprep.subr.mxu0 %v309
    %v311 = vand.u32 %v71, 4294901760
    %v312 = vsub.f32 %v71, %v311
    %313 = vmatpush1.msra.mxu0 %v312
    %v314 = vand.u32 %v74, 4294901760
    %v315 = vsub.f32 %v74, %v314
    %316 = vmatprep.subr.mxu0 %v315
    %v317 = vand.u32 %v73, 4294901760
    %v318 = vsub.f32 %v73, %v317
    %319 = vmatpush1.msra.mxu0 %v318
    %320 = vmatprep.subr.mxu0 0.0
    %321 = vmatpush1.msra.mxu0 0.0
    %322 = vmatprep.subr.mxu0 0.0
    %323 = vmatpush1.msra.mxu0 0.0
    %324 = vmatprep.subr.mxu0 0.0
    %325 = vmatpush1.msra.mxu0 0.0
    %326 = vmatprep.subr.mxu0 0.0
    %327 = vmatpush1.msra.mxu0 0.0
    %328 = vmatprep.subr.mxu0 0.0
    %329 = vmatpush1.msra.mxu0 0.0
    %330 = vmatprep.subr.mxu0 0.0
    %331 = vmatpush1.msra.mxu0 0.0
    %332 = vmatprep.subr.mxu0 0.0
    %333 = vmatpush1.msra.mxu0 0.0
    %334 = vmatprep.subr.mxu0 0.0
    %335 = vmatpush1.msra.mxu0 0.0
    %336 = vmatprep.subr.mxu0 0.0
    %337 = vmatpush1.msra.mxu0 0.0
    %338 = vmatprep.subr.mxu0 0.0
    %339 = vmatpush1.msra.mxu0 0.0
    %340 = vmatprep.subr.mxu0 0.0
    %341 = vmatpush1.msra.mxu0 0.0
    %342 = vmatprep.subr.mxu0 0.0
    %343 = vmatpush1.msra.mxu0 0.0
    %344 = vmatprep.subr.mxu0 0.0
    %345 = vmatpush1.msra.mxu0 0.0
    %346 = vmatprep.subr.mxu0 0.0
    %347 = vmatpush1.msra.mxu0 0.0
    %348 = vmatprep.subr.mxu0 0.0
    %349 = vmatpush1.msra.mxu0 0.0
    %350 = vmatprep.subr.mxu0 0.0
    %351 = vmatpush1.msra.mxu0 0.0
    %352 = vmatprep.subr.mxu0 0.0
    %353 = vmatpush1.msra.mxu0 0.0
    %354 = vmatprep.subr.mxu0 0.0
    %355 = vmatpush1.msra.mxu0 0.0
    %356 = vmatprep.subr.mxu0 0.0
    %357 = vmatpush1.msra.mxu0 0.0
    %358 = vmatprep.subr.mxu0 0.0
    %359 = vmatpush1.msra.mxu0 0.0
    %360 = vmatprep.subr.mxu0 0.0
    %361 = vmatpush1.msra.mxu0 0.0
    %362 = vmatprep.subr.mxu0 0.0
    %363 = vmatpush1.msra.mxu0 0.0
    %364 = vmatprep.subr.mxu0 0.0
    %365 = vmatpush1.msra.mxu0 0.0
    %366 = vmatprep.subr.mxu0 0.0
    %367 = vmatpush1.msra.mxu0 0.0
    %368 = vmatprep.subr.mxu0 0.0
    %369 = vmatpush1.msra.mxu0 0.0
    %370 = vmatprep.subr.mxu0 0.0
    %371 = vmatpush1.msra.mxu0 0.0
    %372 = vmatprep.subr.mxu0 0.0
    %373 = vmatpush1.msra.mxu0 0.0
    %374 = vmatprep.subr.mxu0 0.0
    %375 = vmatpush1.msra.mxu0 0.0
    %376 = vmatprep.mubr.f32.mxu0 0.0
    %v377 = vand.u32 %v77, 4294901760
    %v378 = vsub.f32 %v77, %v377
    %379 = vmatmul.mubr.f32.gmra.mrb[0].mxu0 %v378
    %v380 = vpop.f32.mrb[0].mxu0
    %v381 = vadd.f32 %v285, %v380
    %v382 = vpop.f32.mrb[0].mxu0
    %v383 = vadd.f32 %v287, %v382
    %384 = vmatprep.mubr.f32.mxu0 0.0
    %v385 = vand.u32 %v80, 4294901760
    %v386 = vsub.f32 %v80, %v385
    %387 = vmatmul.mubr.f32.gmra.mrb[0].mxu0 %v386
    %v388 = vpop.f32.mrb[0].mxu0
    %v389 = vadd.f32 %v292, %v388
    %v390 = vpop.f32.mrb[0].mxu0
    %v391 = vadd.f32 %v294, %v390
    %392 = vdwg.mxu0
    %v393 = vand.u32 %v68, 4294901760
    %394 = vmatprep.subr.mxu0 %v393
    %v395 = vand.u32 %v67, 4294901760
    %396 = vmatpush1.msra.mxu0 %v395
    %v397 = vand.u32 %v70, 4294901760
    %398 = vmatprep.subr.mxu0 %v397
    %v399 = vand.u32 %v69, 4294901760
    %400 = vmatpush1.msra.mxu0 %v399
    %v401 = vand.u32 %v72, 4294901760
    %402 = vmatprep.subr.mxu0 %v401
    %v403 = vand.u32 %v71, 4294901760
    %404 = vmatpush1.msra.mxu0 %v403
    %v405 = vand.u32 %v74, 4294901760
    %406 = vmatprep.subr.mxu0 %v405
    %v407 = vand.u32 %v73, 4294901760
    %408 = vmatpush1.msra.mxu0 %v407
    %409 = vmatprep.subr.mxu0 0.0
    %410 = vmatpush1.msra.mxu0 0.0
    %411 = vmatprep.subr.mxu0 0.0
    %412 = vmatpush1.msra.mxu0 0.0
    %413 = vmatprep.subr.mxu0 0.0
    %414 = vmatpush1.msra.mxu0 0.0
    %415 = vmatprep.subr.mxu0 0.0
    %416 = vmatpush1.msra.mxu0 0.0
    %417 = vmatprep.subr.mxu0 0.0
    %418 = vmatpush1.msra.mxu0 0.0
    %419 = vmatprep.subr.mxu0 0.0
    %420 = vmatpush1.msra.mxu0 0.0
    %421 = vmatprep.subr.mxu0 0.0
    %422 = vmatpush1.msra.mxu0 0.0
    %423 = vmatprep.subr.mxu0 0.0
    %424 = vmatpush1.msra.mxu0 0.0
    %425 = vmatprep.subr.mxu0 0.0
    %426 = vmatpush1.msra.mxu0 0.0
    %427 = vmatprep.subr.mxu0 0.0
    %428 = vmatpush1.msra.mxu0 0.0
    %429 = vmatprep.subr.mxu0 0.0
    %430 = vmatpush1.msra.mxu0 0.0
    %431 = vmatprep.subr.mxu0 0.0
    %432 = vmatpush1.msra.mxu0 0.0
    %433 = vmatprep.subr.mxu0 0.0
    %434 = vmatpush1.msra.mxu0 0.0
    %435 = vmatprep.subr.mxu0 0.0
    %436 = vmatpush1.msra.mxu0 0.0
    %437 = vmatprep.subr.mxu0 0.0
    %438 = vmatpush1.msra.mxu0 0.0
    %439 = vmatprep.subr.mxu0 0.0
    %440 = vmatpush1.msra.mxu0 0.0
    %441 = vmatprep.subr.mxu0 0.0
    %442 = vmatpush1.msra.mxu0 0.0
    %443 = vmatprep.subr.mxu0 0.0
    %444 = vmatpush1.msra.mxu0 0.0
    %445 = vmatprep.subr.mxu0 0.0
    %446 = vmatpush1.msra.mxu0 0.0
    %447 = vmatprep.subr.mxu0 0.0
    %448 = vmatpush1.msra.mxu0 0.0
    %449 = vmatprep.subr.mxu0 0.0
    %450 = vmatpush1.msra.mxu0 0.0
    %451 = vmatprep.subr.mxu0 0.0
    %452 = vmatpush1.msra.mxu0 0.0
    %453 = vmatprep.subr.mxu0 0.0
    %454 = vmatpush1.msra.mxu0 0.0
    %455 = vmatprep.subr.mxu0 0.0
    %456 = vmatpush1.msra.mxu0 0.0
    %457 = vmatprep.subr.mxu0 0.0
    %458 = vmatpush1.msra.mxu0 0.0
    %459 = vmatprep.subr.mxu0 0.0
    %460 = vmatpush1.msra.mxu0 0.0
    %461 = vmatprep.subr.mxu0 0.0
    %462 = vmatpush1.msra.mxu0 0.0
    %463 = vmatprep.subr.mxu0 0.0
    %464 = vmatpush1.msra.mxu0 0.0
    %465 = vmatprep.mubr.f32.mxu0 0.0
    %v466 = vand.u32 %v77, 4294901760
    %v467 = vsub.f32 %v77, %v466
    %v468 = vand.u32 %v467, 4294901760
    %469 = vmatmul.mubr.f32.gmra.mrb[0].mxu0 %v468
    %v470 = vpop.f32.mrb[0].mxu0
    %v471 = vadd.f32 %v381, %v470
    %v472 = vpop.f32.mrb[0].mxu0
    %v473 = vadd.f32 %v383, %v472
    %474 = vmatprep.mubr.f32.mxu0 0.0
    %v475 = vand.u32 %v80, 4294901760
    %v476 = vsub.f32 %v80, %v475
    %v477 = vand.u32 %v476, 4294901760
    %478 = vmatmul.mubr.f32.gmra.mrb[0].mxu0 %v477
    %v479 = vpop.f32.mrb[0].mxu0
    %v480 = vadd.f32 %v389, %v479
    %v481 = vpop.f32.mrb[0].mxu0
    %v482 = vadd.f32 %v391, %v481
    %483 = vdwg.mxu0
    %v484 = vand.u32 %v68, 4294901760
    %v485 = vsub.f32 %v68, %v484
    %v486 = vand.u32 %v485, 4294901760
    %487 = vmatprep.subr.mxu0 %v486
    %v488 = vand.u32 %v67, 4294901760
    %v489 = vsub.f32 %v67, %v488
    %v490 = vand.u32 %v489, 4294901760
    %491 = vmatpush1.msra.mxu0 %v490
    %v492 = vand.u32 %v70, 4294901760
    %v493 = vsub.f32 %v70, %v492
    %v494 = vand.u32 %v493, 4294901760
    %495 = vmatprep.subr.mxu0 %v494
    %v496 = vand.u32 %v69, 4294901760
    %v497 = vsub.f32 %v69, %v496
    %v498 = vand.u32 %v497, 4294901760
    %499 = vmatpush1.msra.mxu0 %v498
    %v500 = vand.u32 %v72, 4294901760
    %v501 = vsub.f32 %v72, %v500
    %v502 = vand.u32 %v501, 4294901760
    %503 = vmatprep.subr.mxu0 %v502
    %v504 = vand.u32 %v71, 4294901760
    %v505 = vsub.f32 %v71, %v504
    %v506 = vand.u32 %v505, 4294901760
    %507 = vmatpush1.msra.mxu0 %v506
    %v508 = vand.u32 %v74, 4294901760
    %v509 = vsub.f32 %v74, %v508
    %v510 = vand.u32 %v509, 4294901760
    %511 = vmatprep.subr.mxu0 %v510
    %v512 = vand.u32 %v73, 4294901760
    %v513 = vsub.f32 %v73, %v512
    %v514 = vand.u32 %v513, 4294901760
    %515 = vmatpush1.msra.mxu0 %v514
    %516 = vmatprep.subr.mxu0 0.0
    %517 = vmatpush1.msra.mxu0 0.0
    %518 = vmatprep.subr.mxu0 0.0
    %519 = vmatpush1.msra.mxu0 0.0
    %520 = vmatprep.subr.mxu0 0.0
    %521 = vmatpush1.msra.mxu0 0.0
    %522 = vmatprep.subr.mxu0 0.0
    %523 = vmatpush1.msra.mxu0 0.0
    %524 = vmatprep.subr.mxu0 0.0
    %525 = vmatpush1.msra.mxu0 0.0
    %526 = vmatprep.subr.mxu0 0.0
    %527 = vmatpush1.msra.mxu0 0.0
    %528 = vmatprep.subr.mxu0 0.0
    %529 = vmatpush1.msra.mxu0 0.0
    %530 = vmatprep.subr.mxu0 0.0
    %531 = vmatpush1.msra.mxu0 0.0
    %532 = vmatprep.subr.mxu0 0.0
    %533 = vmatpush1.msra.mxu0 0.0
    %534 = vmatprep.subr.mxu0 0.0
    %535 = vmatpush1.msra.mxu0 0.0
    %536 = vmatprep.subr.mxu0 0.0
    %537 = vmatpush1.msra.mxu0 0.0
    %538 = vmatprep.subr.mxu0 0.0
    %539 = vmatpush1.msra.mxu0 0.0
    %540 = vmatprep.subr.mxu0 0.0
    %541 = vmatpush1.msra.mxu0 0.0
    %542 = vmatprep.subr.mxu0 0.0
    %543 = vmatpush1.msra.mxu0 0.0
    %544 = vmatprep.subr.mxu0 0.0
    %545 = vmatpush1.msra.mxu0 0.0
    %546 = vmatprep.subr.mxu0 0.0
    %547 = vmatpush1.msra.mxu0 0.0
    %548 = vmatprep.subr.mxu0 0.0
    %549 = vmatpush1.msra.mxu0 0.0
    %550 = vmatprep.subr.mxu0 0.0
    %551 = vmatpush1.msra.mxu0 0.0
    %552 = vmatprep.subr.mxu0 0.0
    %553 = vmatpush1.msra.mxu0 0.0
    %554 = vmatprep.subr.mxu0 0.0
    %555 = vmatpush1.msra.mxu0 0.0
    %556 = vmatprep.subr.mxu0 0.0
    %557 = vmatpush1.msra.mxu0 0.0
    %558 = vmatprep.subr.mxu0 0.0
    %559 = vmatpush1.msra.mxu0 0.0
    %560 = vmatprep.subr.mxu0 0.0
    %561 = vmatpush1.msra.mxu0 0.0
    %562 = vmatprep.subr.mxu0 0.0
    %563 = vmatpush1.msra.mxu0 0.0
    %564 = vmatprep.subr.mxu0 0.0
    %565 = vmatpush1.msra.mxu0 0.0
    %566 = vmatprep.subr.mxu0 0.0
    %567 = vmatpush1.msra.mxu0 0.0
    %568 = vmatprep.subr.mxu0 0.0
    %569 = vmatpush1.msra.mxu0 0.0
    %570 = vmatprep.subr.mxu0 0.0
    %571 = vmatpush1.msra.mxu0 0.0
    %572 = vmatprep.mubr.f32.mxu0 0.0
    %v573 = vand.u32 %v77, 4294901760
    %574 = vmatmul.mubr.f32.gmra.mrb[0].mxu0 %v573
    %v575 = vpop.f32.mrb[0].mxu0
    %v576 = vadd.f32 %v471, %v575
    %v577 = vpop.f32.mrb[0].mxu0
    %v578 = vadd.f32 %v473, %v577
    %579 = vmatprep.mubr.f32.mxu0 0.0
    %v580 = vand.u32 %v80, 4294901760
    %581 = vmatmul.mubr.f32.gmra.mrb[0].mxu0 %v580
    %v582 = vpop.f32.mrb[0].mxu0
    %v583 = vadd.f32 %v480, %v582
    %v584 = vpop.f32.mrb[0].mxu0
    %v585 = vadd.f32 %v482, %v584
    %586 = vdwg.mxu0
    %v587 = vand.u32 %v68, 4294901760
    %588 = vmatprep.subr.mxu0 %v587
    %v589 = vand.u32 %v67, 4294901760
    %590 = vmatpush1.msra.mxu0 %v589
    %v591 = vand.u32 %v70, 4294901760
    %592 = vmatprep.subr.mxu0 %v591
    %v593 = vand.u32 %v69, 4294901760
    %594 = vmatpush1.msra.mxu0 %v593
    %v595 = vand.u32 %v72, 4294901760
    %596 = vmatprep.subr.mxu0 %v595
    %v597 = vand.u32 %v71, 4294901760
    %598 = vmatpush1.msra.mxu0 %v597
    %v599 = vand.u32 %v74, 4294901760
    %600 = vmatprep.subr.mxu0 %v599
    %v601 = vand.u32 %v73, 4294901760
    %602 = vmatpush1.msra.mxu0 %v601
    %603 = vmatprep.subr.mxu0 0.0
    %604 = vmatpush1.msra.mxu0 0.0
    %605 = vmatprep.subr.mxu0 0.0
    %606 = vmatpush1.msra.mxu0 0.0
    %607 = vmatprep.subr.mxu0 0.0
    %608 = vmatpush1.msra.mxu0 0.0
    %609 = vmatprep.subr.mxu0 0.0
    %610 = vmatpush1.msra.mxu0 0.0
    %611 = vmatprep.subr.mxu0 0.0
    %612 = vmatpush1.msra.mxu0 0.0
    %613 = vmatprep.subr.mxu0 0.0
    %614 = vmatpush1.msra.mxu0 0.0
    %615 = vmatprep.subr.mxu0 0.0
    %616 = vmatpush1.msra.mxu0 0.0
    %617 = vmatprep.subr.mxu0 0.0
    %618 = vmatpush1.msra.mxu0 0.0
    %619 = vmatprep.subr.mxu0 0.0
    %620 = vmatpush1.msra.mxu0 0.0
    %621 = vmatprep.subr.mxu0 0.0
    %622 = vmatpush1.msra.mxu0 0.0
    %623 = vmatprep.subr.mxu0 0.0
    %624 = vmatpush1.msra.mxu0 0.0
    %625 = vmatprep.subr.mxu0 0.0
    %626 = vmatpush1.msra.mxu0 0.0
    %627 = vmatprep.subr.mxu0 0.0
    %628 = vmatpush1.msra.mxu0 0.0
    %629 = vmatprep.subr.mxu0 0.0
    %630 = vmatpush1.msra.mxu0 0.0
    %631 = vmatprep.subr.mxu0 0.0
    %632 = vmatpush1.msra.mxu0 0.0
    %633 = vmatprep.subr.mxu0 0.0
    %634 = vmatpush1.msra.mxu0 0.0
    %635 = vmatprep.subr.mxu0 0.0
    %636 = vmatpush1.msra.mxu0 0.0
    %637 = vmatprep.subr.mxu0 0.0
    %638 = vmatpush1.msra.mxu0 0.0
    %639 = vmatprep.subr.mxu0 0.0
    %640 = vmatpush1.msra.mxu0 0.0
    %641 = vmatprep.subr.mxu0 0.0
    %642 = vmatpush1.msra.mxu0 0.0
    %643 = vmatprep.subr.mxu0 0.0
    %644 = vmatpush1.msra.mxu0 0.0
    %645 = vmatprep.subr.mxu0 0.0
    %646 = vmatpush1.msra.mxu0 0.0
    %647 = vmatprep.subr.mxu0 0.0
    %648 = vmatpush1.msra.mxu0 0.0
    %649 = vmatprep.subr.mxu0 0.0
    %650 = vmatpush1.msra.mxu0 0.0
    %651 = vmatprep.subr.mxu0 0.0
    %652 = vmatpush1.msra.mxu0 0.0
    %653 = vmatprep.subr.mxu0 0.0
    %654 = vmatpush1.msra.mxu0 0.0
    %655 = vmatprep.subr.mxu0 0.0
    %656 = vmatpush1.msra.mxu0 0.0
    %657 = vmatprep.subr.mxu0 0.0
    %658 = vmatpush1.msra.mxu0 0.0
    %659 = vmatprep.mubr.f32.mxu0 0.0
    %v660 = vand.u32 %v77, 4294901760
    %661 = vmatmul.mubr.f32.gmra.mrb[0].mxu0 %v660
    %v662 = vpop.f32.mrb[0].mxu0
    %v663 = vadd.f32 %v576, %v662
    %v664 = vpop.f32.mrb[0].mxu0
    %v665 = vadd.f32 %v578, %v664
    %666 = vmatprep.mubr.f32.mxu0 0.0
    %v667 = vand.u32 %v80, 4294901760
    %668 = vmatmul.mubr.f32.gmra.mrb[0].mxu0 %v667
    %v669 = vpop.f32.mrb[0].mxu0
    %v670 = vadd.f32 %v583, %v669
    %v671 = vpop.f32.mrb[0].mxu0
    %v672 = vadd.f32 %v585, %v671
    %673 = vdwg.mxu0
    %v674 = vlaneseq
    %v675 = vshrl.u32 %v674, 7
    %v676 = vsub.s32 0, %v675
    %v677 = vrot.slane %v58, %v676
    %v678 = vadd.f32 %v663, %v677
    %v679 = vadd.f32 %v670, %v677
    %v680 = vlaneseq
    %v681 = vshrl.u32 %v680, 7
    %v682 = vsub.s32 0, %v681
    %v683 = vrot.slane %v59, %v682
    %v684 = vadd.f32 %v665, %v683
    %v685 = vadd.f32 %v672, %v683
    %vm686 = vcmask 31744
    %v687 = vsel %vm686, %v684, -inf
    %v688 = vsel %vm686, %v685, -inf
    %v689 = vmax.f32 %v687, %v688
    %v690 = vrot.slane %v689, 4
    %v691 = vmax.f32 %v689, %v690
    %v692 = vrot.slane %v691, 2
    %v693 = vmax.f32 %v691, %v692
    %v694 = vrot.slane %v693, 1
    %v695 = vmax.f32 %v693, %v694
    %v696 = vsub.f32 %v684, %v695
    %v697 = vsub.f32 %v685, %v695
    %v698 = vmul.f32 %v696, 1.442695
    %v699 = vpow.pop %v698
    %v700 = vmul.f32 %v697, 1.442695
    %v701 = vpow.pop %v700
    %v703 = vsel %vm686, %v699, 0
    %v706 = vsel %vm686, %v701, 0
    %vm708 = vcmask 1043456
    %v710 = vsel %vm708, %v65, 0
    %712 = vmatprep.subr.mxu0 0.0
    %v713 = vand.u32 %v710, 4294901760
    %714 = vmatpush1.msra.mxu0 %v713
    %715 = vmatprep.subr.mxu0 0.0
    %716 = vmatpush1.msra.mxu0 0.0
    %717 = vmatprep.subr.mxu0 0.0
    %718 = vmatpush1.msra.mxu0 0.0
    %719 = vmatprep.subr.mxu0 0.0
    %720 = vmatpush1.msra.mxu0 0.0
    %721 = vmatprep.subr.mxu0 0.0
    %722 = vmatpush1.msra.mxu0 0.0
    %723 = vmatprep.subr.mxu0 0.0
    %724 = vmatpush1.msra.mxu0 0.0
    %725 = vmatprep.subr.mxu0 0.0
    %726 = vmatpush1.msra.mxu0 0.0
    %727 = vmatprep.subr.mxu0 0.0
    %728 = vmatpush1.msra.mxu0 0.0
    %729 = vmatprep.subr.mxu0 0.0
    %730 = vmatpush1.msra.mxu0 0.0
    %731 = vmatprep.subr.mxu0 0.0
    %732 = vmatpush1.msra.mxu0 0.0
    %733 = vmatprep.subr.mxu0 0.0
    %734 = vmatpush1.msra.mxu0 0.0
    %735 = vmatprep.subr.mxu0 0.0
    %736 = vmatpush1.msra.mxu0 0.0
    %737 = vmatprep.subr.mxu0 0.0
    %738 = vmatpush1.msra.mxu0 0.0
    %739 = vmatprep.subr.mxu0 0.0
    %740 = vmatpush1.msra.mxu0 0.0
    %741 = vmatprep.subr.mxu0 0.0
    %742 = vmatpush1.msra.mxu0 0.0
    %743 = vmatprep.subr.mxu0 0.0
    %744 = vmatpush1.msra.mxu0 0.0
    %745 = vmatprep.subr.mxu0 0.0
    %746 = vmatpush1.msra.mxu0 0.0
    %747 = vmatprep.subr.mxu0 0.0
    %748 = vmatpush1.msra.mxu0 0.0
    %749 = vmatprep.subr.mxu0 0.0
    %750 = vmatpush1.msra.mxu0 0.0
    %751 = vmatprep.subr.mxu0 0.0
    %752 = vmatpush1.msra.mxu0 0.0
    %753 = vmatprep.subr.mxu0 0.0
    %754 = vmatpush1.msra.mxu0 0.0
    %755 = vmatprep.subr.mxu0 0.0
    %756 = vmatpush1.msra.mxu0 0.0
    %757 = vmatprep.subr.mxu0 0.0
    %758 = vmatpush1.msra.mxu0 0.0
    %759 = vmatprep.subr.mxu0 0.0
    %760 = vmatpush1.msra.mxu0 0.0
    %761 = vmatprep.subr.mxu0 0.0
    %762 = vmatpush1.msra.mxu0 0.0
    %763 = vmatprep.subr.mxu0 0.0
    %764 = vmatpush1.msra.mxu0 0.0
    %765 = vmatprep.subr.mxu0 0.0
    %766 = vmatpush1.msra.mxu0 0.0
    %767 = vmatprep.subr.mxu0 0.0
    %768 = vmatpush1.msra.mxu0 0.0
    %769 = vmatprep.subr.mxu0 0.0
    %770 = vmatpush1.msra.mxu0 0.0
    %771 = vmatprep.subr.mxu0 0.0
    %772 = vmatpush1.msra.mxu0 0.0
    %773 = vmatprep.subr.mxu0 0.0
    %774 = vmatpush1.msra.mxu0 0.0
    %775 = vmatprep.subr.mxu0 0.0
    %776 = vmatpush1.msra.mxu0 0.0
    %777 = vmatprep.mubr.f32.mxu0 0.0
    %v778 = vand.u32 %v703, 4294901760
    %v779 = vsub.f32 %v703, %v778
    %v780 = vand.u32 %v779, 4294901760
    %v781 = vsub.f32 %v779, %v780
    %v782 = vand.u32 %v781, 4294901760
    %783 = vmatmul.mubr.f32.gmra.mrb[0].mxu0 %v782
    %v784 = vpop.f32.mrb[0].mxu0
    %v785 = vadd.f32 0.0, %v784
    %v786 = vpop.f32.mrb[0].mxu0
    %787 = vmatprep.mubr.f32.mxu0 0.0
    %v788 = vand.u32 %v706, 4294901760
    %v789 = vsub.f32 %v706, %v788
    %v790 = vand.u32 %v789, 4294901760
    %v791 = vsub.f32 %v789, %v790
    %v792 = vand.u32 %v791, 4294901760
    %793 = vmatmul.mubr.f32.gmra.mrb[0].mxu0 %v792
    %v794 = vpop.f32.mrb[0].mxu0
    %v795 = vadd.f32 0.0, %v794
    %v796 = vpop.f32.mrb[0].mxu0
    %797 = vdwg.mxu0
    %798 = vmatprep.subr.mxu0 0.0
    %v799 = vand.u32 %v710, 4294901760
    %v800 = vsub.f32 %v710, %v799
    %v801 = vand.u32 %v800, 4294901760
    %v802 = vsub.f32 %v800, %v801
    %v803 = vand.u32 %v802, 4294901760
    %804 = vmatpush1.msra.mxu0 %v803
    %805 = vmatprep.subr.mxu0 0.0
    %806 = vmatpush1.msra.mxu0 0.0
    %807 = vmatprep.subr.mxu0 0.0
    %808 = vmatpush1.msra.mxu0 0.0
    %809 = vmatprep.subr.mxu0 0.0
    %810 = vmatpush1.msra.mxu0 0.0
    %811 = vmatprep.subr.mxu0 0.0
    %812 = vmatpush1.msra.mxu0 0.0
    %813 = vmatprep.subr.mxu0 0.0
    %814 = vmatpush1.msra.mxu0 0.0
    %815 = vmatprep.subr.mxu0 0.0
    %816 = vmatpush1.msra.mxu0 0.0
    %817 = vmatprep.subr.mxu0 0.0
    %818 = vmatpush1.msra.mxu0 0.0
    %819 = vmatprep.subr.mxu0 0.0
    %820 = vmatpush1.msra.mxu0 0.0
    %821 = vmatprep.subr.mxu0 0.0
    %822 = vmatpush1.msra.mxu0 0.0
    %823 = vmatprep.subr.mxu0 0.0
    %824 = vmatpush1.msra.mxu0 0.0
    %825 = vmatprep.subr.mxu0 0.0
    %826 = vmatpush1.msra.mxu0 0.0
    %827 = vmatprep.subr.mxu0 0.0
    %828 = vmatpush1.msra.mxu0 0.0
    %829 = vmatprep.subr.mxu0 0.0
    %830 = vmatpush1.msra.mxu0 0.0
    %831 = vmatprep.subr.mxu0 0.0
    %832 = vmatpush1.msra.mxu0 0.0
    %833 = vmatprep.subr.mxu0 0.0
    %834 = vmatpush1.msra.mxu0 0.0
    %835 = vmatprep.subr.mxu0 0.0
    %836 = vmatpush1.msra.mxu0 0.0
    %837 = vmatprep.subr.mxu0 0.0
    %838 = vmatpush1.msra.mxu0 0.0
    %839 = vmatprep.subr.mxu0 0.0
    %840 = vmatpush1.msra.mxu0 0.0
    %841 = vmatprep.subr.mxu0 0.0
    %842 = vmatpush1.msra.mxu0 0.0
    %843 = vmatprep.subr.mxu0 0.0
    %844 = vmatpush1.msra.mxu0 0.0
    %845 = vmatprep.subr.mxu0 0.0
    %846 = vmatpush1.msra.mxu0 0.0
    %847 = vmatprep.subr.mxu0 0.0
    %848 = vmatpush1.msra.mxu0 0.0
    %849 = vmatprep.subr.mxu0 0.0
    %850 = vmatpush1.msra.mxu0 0.0
    %851 = vmatprep.subr.mxu0 0.0
    %852 = vmatpush1.msra.mxu0 0.0
    %853 = vmatprep.subr.mxu0 0.0
    %854 = vmatpush1.msra.mxu0 0.0
    %855 = vmatprep.subr.mxu0 0.0
    %856 = vmatpush1.msra.mxu0 0.0
    %857 = vmatprep.subr.mxu0 0.0
    %858 = vmatpush1.msra.mxu0 0.0
    %859 = vmatprep.subr.mxu0 0.0
    %860 = vmatpush1.msra.mxu0 0.0
    %861 = vmatprep.subr.mxu0 0.0
    %862 = vmatpush1.msra.mxu0 0.0
    %863 = vmatprep.subr.mxu0 0.0
    %864 = vmatpush1.msra.mxu0 0.0
    %865 = vmatprep.subr.mxu0 0.0
    %866 = vmatpush1.msra.mxu0 0.0
    %867 = vmatprep.mubr.f32.mxu0 0.0
    %v868 = vand.u32 %v703, 4294901760
    %869 = vmatmul.mubr.f32.gmra.mrb[0].mxu0 %v868
    %v870 = vpop.f32.mrb[0].mxu0
    %v871 = vadd.f32 %v785, %v870
    %v872 = vpop.f32.mrb[0].mxu0
    %873 = vmatprep.mubr.f32.mxu0 0.0
    %v874 = vand.u32 %v706, 4294901760
    %875 = vmatmul.mubr.f32.gmra.mrb[0].mxu0 %v874
    %v876 = vpop.f32.mrb[0].mxu0
    %v877 = vadd.f32 %v795, %v876
    %v878 = vpop.f32.mrb[0].mxu0
    %879 = vdwg.mxu0
    %880 = vmatprep.subr.mxu0 0.0
    %v881 = vand.u32 %v710, 4294901760
    %v882 = vsub.f32 %v710, %v881
    %883 = vmatpush1.msra.mxu0 %v882
    %884 = vmatprep.subr.mxu0 0.0
    %885 = vmatpush1.msra.mxu0 0.0
    %886 = vmatprep.subr.mxu0 0.0
    %887 = vmatpush1.msra.mxu0 0.0
    %888 = vmatprep.subr.mxu0 0.0
    %889 = vmatpush1.msra.mxu0 0.0
    %890 = vmatprep.subr.mxu0 0.0
    %891 = vmatpush1.msra.mxu0 0.0
    %892 = vmatprep.subr.mxu0 0.0
    %893 = vmatpush1.msra.mxu0 0.0
    %894 = vmatprep.subr.mxu0 0.0
    %895 = vmatpush1.msra.mxu0 0.0
    %896 = vmatprep.subr.mxu0 0.0
    %897 = vmatpush1.msra.mxu0 0.0
    %898 = vmatprep.subr.mxu0 0.0
    %899 = vmatpush1.msra.mxu0 0.0
    %900 = vmatprep.subr.mxu0 0.0
    %901 = vmatpush1.msra.mxu0 0.0
    %902 = vmatprep.subr.mxu0 0.0
    %903 = vmatpush1.msra.mxu0 0.0
    %904 = vmatprep.subr.mxu0 0.0
    %905 = vmatpush1.msra.mxu0 0.0
    %906 = vmatprep.subr.mxu0 0.0
    %907 = vmatpush1.msra.mxu0 0.0
    %908 = vmatprep.subr.mxu0 0.0
    %909 = vmatpush1.msra.mxu0 0.0
    %910 = vmatprep.subr.mxu0 0.0
    %911 = vmatpush1.msra.mxu0 0.0
    %912 = vmatprep.subr.mxu0 0.0
    %913 = vmatpush1.msra.mxu0 0.0
    %914 = vmatprep.subr.mxu0 0.0
    %915 = vmatpush1.msra.mxu0 0.0
    %916 = vmatprep.subr.mxu0 0.0
    %917 = vmatpush1.msra.mxu0 0.0
    %918 = vmatprep.subr.mxu0 0.0
    %919 = vmatpush1.msra.mxu0 0.0
    %920 = vmatprep.subr.mxu0 0.0
    %921 = vmatpush1.msra.mxu0 0.0
    %922 = vmatprep.subr.mxu0 0.0
    %923 = vmatpush1.msra.mxu0 0.0
    %924 = vmatprep.subr.mxu0 0.0
    %925 = vmatpush1.msra.mxu0 0.0
    %926 = vmatprep.subr.mxu0 0.0
    %927 = vmatpush1.msra.mxu0 0.0
    %928 = vmatprep.subr.mxu0 0.0
    %929 = vmatpush1.msra.mxu0 0.0
    %930 = vmatprep.subr.mxu0 0.0
    %931 = vmatpush1.msra.mxu0 0.0
    %932 = vmatprep.subr.mxu0 0.0
    %933 = vmatpush1.msra.mxu0 0.0
    %934 = vmatprep.subr.mxu0 0.0
    %935 = vmatpush1.msra.mxu0 0.0
    %936 = vmatprep.subr.mxu0 0.0
    %937 = vmatpush1.msra.mxu0 0.0
    %938 = vmatprep.subr.mxu0 0.0
    %939 = vmatpush1.msra.mxu0 0.0
    %940 = vmatprep.subr.mxu0 0.0
    %941 = vmatpush1.msra.mxu0 0.0
    %942 = vmatprep.subr.mxu0 0.0
    %943 = vmatpush1.msra.mxu0 0.0
    %944 = vmatprep.subr.mxu0 0.0
    %945 = vmatpush1.msra.mxu0 0.0
    %946 = vmatprep.mubr.f32.mxu0 0.0
    %v947 = vand.u32 %v703, 4294901760
    %v948 = vsub.f32 %v703, %v947
    %949 = vmatmul.mubr.f32.gmra.mrb[0].mxu0 %v948
    %v950 = vpop.f32.mrb[0].mxu0
    %v951 = vadd.f32 %v871, %v950
    %v952 = vpop.f32.mrb[0].mxu0
    %953 = vmatprep.mubr.f32.mxu0 0.0
    %v954 = vand.u32 %v706, 4294901760
    %v955 = vsub.f32 %v706, %v954
    %956 = vmatmul.mubr.f32.gmra.mrb[0].mxu0 %v955
    %v957 = vpop.f32.mrb[0].mxu0
    %v958 = vadd.f32 %v877, %v957
    %v959 = vpop.f32.mrb[0].mxu0
    %960 = vdwg.mxu0
    %961 = vmatprep.subr.mxu0 0.0
    %v962 = vand.u32 %v710, 4294901760
    %963 = vmatpush1.msra.mxu0 %v962
    %964 = vmatprep.subr.mxu0 0.0
    %965 = vmatpush1.msra.mxu0 0.0
    %966 = vmatprep.subr.mxu0 0.0
    %967 = vmatpush1.msra.mxu0 0.0
    %968 = vmatprep.subr.mxu0 0.0
    %969 = vmatpush1.msra.mxu0 0.0
    %970 = vmatprep.subr.mxu0 0.0
    %971 = vmatpush1.msra.mxu0 0.0
    %972 = vmatprep.subr.mxu0 0.0
    %973 = vmatpush1.msra.mxu0 0.0
    %974 = vmatprep.subr.mxu0 0.0
    %975 = vmatpush1.msra.mxu0 0.0
    %976 = vmatprep.subr.mxu0 0.0
    %977 = vmatpush1.msra.mxu0 0.0
    %978 = vmatprep.subr.mxu0 0.0
    %979 = vmatpush1.msra.mxu0 0.0
    %980 = vmatprep.subr.mxu0 0.0
    %981 = vmatpush1.msra.mxu0 0.0
    %982 = vmatprep.subr.mxu0 0.0
    %983 = vmatpush1.msra.mxu0 0.0
    %984 = vmatprep.subr.mxu0 0.0
    %985 = vmatpush1.msra.mxu0 0.0
    %986 = vmatprep.subr.mxu0 0.0
    %987 = vmatpush1.msra.mxu0 0.0
    %988 = vmatprep.subr.mxu0 0.0
    %989 = vmatpush1.msra.mxu0 0.0
    %990 = vmatprep.subr.mxu0 0.0
    %991 = vmatpush1.msra.mxu0 0.0
    %992 = vmatprep.subr.mxu0 0.0
    %993 = vmatpush1.msra.mxu0 0.0
    %994 = vmatprep.subr.mxu0 0.0
    %995 = vmatpush1.msra.mxu0 0.0
    %996 = vmatprep.subr.mxu0 0.0
    %997 = vmatpush1.msra.mxu0 0.0
    %998 = vmatprep.subr.mxu0 0.0
    %999 = vmatpush1.msra.mxu0 0.0
    %1000 = vmatprep.subr.mxu0 0.0
    %1001 = vmatpush1.msra.mxu0 0.0
    %1002 = vmatprep.subr.mxu0 0.0
    %1003 = vmatpush1.msra.mxu0 0.0
    %1004 = vmatprep.subr.mxu0 0.0
    %1005 = vmatpush1.msra.mxu0 0.0
    %1006 = vmatprep.subr.mxu0 0.0
    %1007 = vmatpush1.msra.mxu0 0.0
    %1008 = vmatprep.subr.mxu0 0.0
    %1009 = vmatpush1.msra.mxu0 0.0
    %1010 = vmatprep.subr.mxu0 0.0
    %1011 = vmatpush1.msra.mxu0 0.0
    %1012 = vmatprep.subr.mxu0 0.0
    %1013 = vmatpush1.msra.mxu0 0.0
    %1014 = vmatprep.subr.mxu0 0.0
    %1015 = vmatpush1.msra.mxu0 0.0
    %1016 = vmatprep.subr.mxu0 0.0
    %1017 = vmatpush1.msra.mxu0 0.0
    %1018 = vmatprep.subr.mxu0 0.0
    %1019 = vmatpush1.msra.mxu0 0.0
    %1020 = vmatprep.subr.mxu0 0.0
    %1021 = vmatpush1.msra.mxu0 0.0
    %1022 = vmatprep.subr.mxu0 0.0
    %1023 = vmatpush1.msra.mxu0 0.0
    %1024 = vmatprep.subr.mxu0 0.0
    %1025 = vmatpush1.msra.mxu0 0.0
    %1026 = vmatprep.mubr.f32.mxu0 0.0
    %v1027 = vand.u32 %v703, 4294901760
    %v1028 = vsub.f32 %v703, %v1027
    %v1029 = vand.u32 %v1028, 4294901760
    %1030 = vmatmul.mubr.f32.gmra.mrb[0].mxu0 %v1029
    %v1031 = vpop.f32.mrb[0].mxu0
    %v1032 = vadd.f32 %v951, %v1031
    %v1033 = vpop.f32.mrb[0].mxu0
    %1034 = vmatprep.mubr.f32.mxu0 0.0
    %v1035 = vand.u32 %v706, 4294901760
    %v1036 = vsub.f32 %v706, %v1035
    %v1037 = vand.u32 %v1036, 4294901760
    %1038 = vmatmul.mubr.f32.gmra.mrb[0].mxu0 %v1037
    %v1039 = vpop.f32.mrb[0].mxu0
    %v1040 = vadd.f32 %v958, %v1039
    %v1041 = vpop.f32.mrb[0].mxu0
    %1042 = vdwg.mxu0
    %1043 = vmatprep.subr.mxu0 0.0
    %v1044 = vand.u32 %v710, 4294901760
    %v1045 = vsub.f32 %v710, %v1044
    %v1046 = vand.u32 %v1045, 4294901760
    %1047 = vmatpush1.msra.mxu0 %v1046
    %1048 = vmatprep.subr.mxu0 0.0
    %1049 = vmatpush1.msra.mxu0 0.0
    %1050 = vmatprep.subr.mxu0 0.0
    %1051 = vmatpush1.msra.mxu0 0.0
    %1052 = vmatprep.subr.mxu0 0.0
    %1053 = vmatpush1.msra.mxu0 0.0
    %1054 = vmatprep.subr.mxu0 0.0
    %1055 = vmatpush1.msra.mxu0 0.0
    %1056 = vmatprep.subr.mxu0 0.0
    %1057 = vmatpush1.msra.mxu0 0.0
    %1058 = vmatprep.subr.mxu0 0.0
    %1059 = vmatpush1.msra.mxu0 0.0
    %1060 = vmatprep.subr.mxu0 0.0
    %1061 = vmatpush1.msra.mxu0 0.0
    %1062 = vmatprep.subr.mxu0 0.0
    %1063 = vmatpush1.msra.mxu0 0.0
    %1064 = vmatprep.subr.mxu0 0.0
    %1065 = vmatpush1.msra.mxu0 0.0
    %1066 = vmatprep.subr.mxu0 0.0
    %1067 = vmatpush1.msra.mxu0 0.0
    %1068 = vmatprep.subr.mxu0 0.0
    %1069 = vmatpush1.msra.mxu0 0.0
    %1070 = vmatprep.subr.mxu0 0.0
    %1071 = vmatpush1.msra.mxu0 0.0
    %1072 = vmatprep.subr.mxu0 0.0
    %1073 = vmatpush1.msra.mxu0 0.0
    %1074 = vmatprep.subr.mxu0 0.0
    %1075 = vmatpush1.msra.mxu0 0.0
    %1076 = vmatprep.subr.mxu0 0.0
    %1077 = vmatpush1.msra.mxu0 0.0
    %1078 = vmatprep.subr.mxu0 0.0
    %1079 = vmatpush1.msra.mxu0 0.0
    %1080 = vmatprep.subr.mxu0 0.0
    %1081 = vmatpush1.msra.mxu0 0.0
    %1082 = vmatprep.subr.mxu0 0.0
    %1083 = vmatpush1.msra.mxu0 0.0
    %1084 = vmatprep.subr.mxu0 0.0
    %1085 = vmatpush1.msra.mxu0 0.0
    %1086 = vmatprep.subr.mxu0 0.0
    %1087 = vmatpush1.msra.mxu0 0.0
    %1088 = vmatprep.subr.mxu0 0.0
    %1089 = vmatpush1.msra.mxu0 0.0
    %1090 = vmatprep.subr.mxu0 0.0
    %1091 = vmatpush1.msra.mxu0 0.0
    %1092 = vmatprep.subr.mxu0 0.0
    %1093 = vmatpush1.msra.mxu0 0.0
    %1094 = vmatprep.subr.mxu0 0.0
    %1095 = vmatpush1.msra.mxu0 0.0
    %1096 = vmatprep.subr.mxu0 0.0
    %1097 = vmatpush1.msra.mxu0 0.0
    %1098 = vmatprep.subr.mxu0 0.0
    %1099 = vmatpush1.msra.mxu0 0.0
    %1100 = vmatprep.subr.mxu0 0.0
    %1101 = vmatpush1.msra.mxu0 0.0
    %1102 = vmatprep.subr.mxu0 0.0
    %1103 = vmatpush1.msra.mxu0 0.0
    %1104 = vmatprep.subr.mxu0 0.0
    %1105 = vmatpush1.msra.mxu0 0.0
    %1106 = vmatprep.subr.mxu0 0.0
    %1107 = vmatpush1.msra.mxu0 0.0
    %1108 = vmatprep.subr.mxu0 0.0
    %1109 = vmatpush1.msra.mxu0 0.0
    %1110 = vmatprep.mubr.f32.mxu0 0.0
    %v1111 = vand.u32 %v703, 4294901760
    %1112 = vmatmul.mubr.f32.gmra.mrb[0].mxu0 %v1111
    %v1113 = vpop.f32.mrb[0].mxu0
    %v1114 = vadd.f32 %v1032, %v1113
    %v1115 = vpop.f32.mrb[0].mxu0
    %1116 = vmatprep.mubr.f32.mxu0 0.0
    %v1117 = vand.u32 %v706, 4294901760
    %1118 = vmatmul.mubr.f32.gmra.mrb[0].mxu0 %v1117
    %v1119 = vpop.f32.mrb[0].mxu0
    %v1120 = vadd.f32 %v1040, %v1119
    %v1121 = vpop.f32.mrb[0].mxu0
    %1122 = vdwg.mxu0
    %1123 = vmatprep.subr.mxu0 0.0
    %v1124 = vand.u32 %v710, 4294901760
    %1125 = vmatpush1.msra.mxu0 %v1124
    %1126 = vmatprep.subr.mxu0 0.0
    %1127 = vmatpush1.msra.mxu0 0.0
    %1128 = vmatprep.subr.mxu0 0.0
    %1129 = vmatpush1.msra.mxu0 0.0
    %1130 = vmatprep.subr.mxu0 0.0
    %1131 = vmatpush1.msra.mxu0 0.0
    %1132 = vmatprep.subr.mxu0 0.0
    %1133 = vmatpush1.msra.mxu0 0.0
    %1134 = vmatprep.subr.mxu0 0.0
    %1135 = vmatpush1.msra.mxu0 0.0
    %1136 = vmatprep.subr.mxu0 0.0
    %1137 = vmatpush1.msra.mxu0 0.0
    %1138 = vmatprep.subr.mxu0 0.0
    %1139 = vmatpush1.msra.mxu0 0.0
    %1140 = vmatprep.subr.mxu0 0.0
    %1141 = vmatpush1.msra.mxu0 0.0
    %1142 = vmatprep.subr.mxu0 0.0
    %1143 = vmatpush1.msra.mxu0 0.0
    %1144 = vmatprep.subr.mxu0 0.0
    %1145 = vmatpush1.msra.mxu0 0.0
    %1146 = vmatprep.subr.mxu0 0.0
    %1147 = vmatpush1.msra.mxu0 0.0
    %1148 = vmatprep.subr.mxu0 0.0
    %1149 = vmatpush1.msra.mxu0 0.0
    %1150 = vmatprep.subr.mxu0 0.0
    %1151 = vmatpush1.msra.mxu0 0.0
    %1152 = vmatprep.subr.mxu0 0.0
    %1153 = vmatpush1.msra.mxu0 0.0
    %1154 = vmatprep.subr.mxu0 0.0
    %1155 = vmatpush1.msra.mxu0 0.0
    %1156 = vmatprep.subr.mxu0 0.0
    %1157 = vmatpush1.msra.mxu0 0.0
    %1158 = vmatprep.subr.mxu0 0.0
    %1159 = vmatpush1.msra.mxu0 0.0
    %1160 = vmatprep.subr.mxu0 0.0
    %1161 = vmatpush1.msra.mxu0 0.0
    %1162 = vmatprep.subr.mxu0 0.0
    %1163 = vmatpush1.msra.mxu0 0.0
    %1164 = vmatprep.subr.mxu0 0.0
    %1165 = vmatpush1.msra.mxu0 0.0
    %1166 = vmatprep.subr.mxu0 0.0
    %1167 = vmatpush1.msra.mxu0 0.0
    %1168 = vmatprep.subr.mxu0 0.0
    %1169 = vmatpush1.msra.mxu0 0.0
    %1170 = vmatprep.subr.mxu0 0.0
    %1171 = vmatpush1.msra.mxu0 0.0
    %1172 = vmatprep.subr.mxu0 0.0
    %1173 = vmatpush1.msra.mxu0 0.0
    %1174 = vmatprep.subr.mxu0 0.0
    %1175 = vmatpush1.msra.mxu0 0.0
    %1176 = vmatprep.subr.mxu0 0.0
    %1177 = vmatpush1.msra.mxu0 0.0
    %1178 = vmatprep.subr.mxu0 0.0
    %1179 = vmatpush1.msra.mxu0 0.0
    %1180 = vmatprep.subr.mxu0 0.0
    %1181 = vmatpush1.msra.mxu0 0.0
    %1182 = vmatprep.subr.mxu0 0.0
    %1183 = vmatpush1.msra.mxu0 0.0
    %1184 = vmatprep.subr.mxu0 0.0
    %1185 = vmatpush1.msra.mxu0 0.0
    %1186 = vmatprep.subr.mxu0 0.0
    %1187 = vmatpush1.msra.mxu0 0.0
    %1188 = vmatprep.mubr.f32.mxu0 0.0
    %v1189 = vand.u32 %v703, 4294901760
    %1190 = vmatmul.mubr.f32.gmra.mrb[0].mxu0 %v1189
    %v1191 = vpop.f32.mrb[0].mxu0
    %v1192 = vadd.f32 %v1114, %v1191
    %v1193 = vpop.f32.mrb[0].mxu0
    %1194 = vmatprep.mubr.f32.mxu0 0.0
    %v1195 = vand.u32 %v706, 4294901760
    %1196 = vmatmul.mubr.f32.gmra.mrb[0].mxu0 %v1195
    %v1197 = vpop.f32.mrb[0].mxu0
    %v1198 = vadd.f32 %v1120, %v1197
    %v1199 = vpop.f32.mrb[0].mxu0
    %1200 = vdwg.mxu0
    %v1201 = vmul.f32 %v1192, %v678
    %v1202 = vmul.f32 %v1198, %v679
    %vm1203 = vcmask 130048
    %v1205 = vsel %vm1203, %v66, 0
    %1207 = vmatprep.subr.mxu0 0.0
    %v1208 = vand.u32 %v1201, 4294901760
    %1209 = vmatpush1.msra.mxu0 %v1208
    %1210 = vmatprep.subr.mxu0 0.0
    %v1211 = vand.u32 %v1202, 4294901760
    %1212 = vmatpush1.msra.mxu0 %v1211
    %1213 = vmatprep.subr.mxu0 0.0
    %1214 = vmatpush1.msra.mxu0 0.0
    %1215 = vmatprep.subr.mxu0 0.0
    %1216 = vmatpush1.msra.mxu0 0.0
    %1217 = vmatprep.subr.mxu0 0.0
    %1218 = vmatpush1.msra.mxu0 0.0
    %1219 = vmatprep.subr.mxu0 0.0
    %1220 = vmatpush1.msra.mxu0 0.0
    %1221 = vmatprep.subr.mxu0 0.0
    %1222 = vmatpush1.msra.mxu0 0.0
    %1223 = vmatprep.subr.mxu0 0.0
    %1224 = vmatpush1.msra.mxu0 0.0
    %1225 = vmatprep.subr.mxu0 0.0
    %1226 = vmatpush1.msra.mxu0 0.0
    %1227 = vmatprep.subr.mxu0 0.0
    %1228 = vmatpush1.msra.mxu0 0.0
    %1229 = vmatprep.subr.mxu0 0.0
    %1230 = vmatpush1.msra.mxu0 0.0
    %1231 = vmatprep.subr.mxu0 0.0
    %1232 = vmatpush1.msra.mxu0 0.0
    %1233 = vmatprep.subr.mxu0 0.0
    %1234 = vmatpush1.msra.mxu0 0.0
    %1235 = vmatprep.subr.mxu0 0.0
    %1236 = vmatpush1.msra.mxu0 0.0
    %1237 = vmatprep.subr.mxu0 0.0
    %1238 = vmatpush1.msra.mxu0 0.0
    %1239 = vmatprep.subr.mxu0 0.0
    %1240 = vmatpush1.msra.mxu0 0.0
    %1241 = vmatprep.subr.mxu0 0.0
    %1242 = vmatpush1.msra.mxu0 0.0
    %1243 = vmatprep.subr.mxu0 0.0
    %1244 = vmatpush1.msra.mxu0 0.0
    %1245 = vmatprep.subr.mxu0 0.0
    %1246 = vmatpush1.msra.mxu0 0.0
    %1247 = vmatprep.subr.mxu0 0.0
    %1248 = vmatpush1.msra.mxu0 0.0
    %1249 = vmatprep.subr.mxu0 0.0
    %1250 = vmatpush1.msra.mxu0 0.0
    %1251 = vmatprep.subr.mxu0 0.0
    %1252 = vmatpush1.msra.mxu0 0.0
    %1253 = vmatprep.subr.mxu0 0.0
    %1254 = vmatpush1.msra.mxu0 0.0
    %1255 = vmatprep.subr.mxu0 0.0
    %1256 = vmatpush1.msra.mxu0 0.0
    %1257 = vmatprep.subr.mxu0 0.0
    %1258 = vmatpush1.msra.mxu0 0.0
    %1259 = vmatprep.subr.mxu0 0.0
    %1260 = vmatpush1.msra.mxu0 0.0
    %1261 = vmatprep.subr.mxu0 0.0
    %1262 = vmatpush1.msra.mxu0 0.0
    %1263 = vmatprep.subr.mxu0 0.0
    %1264 = vmatpush1.msra.mxu0 0.0
    %1265 = vmatprep.subr.mxu0 0.0
    %1266 = vmatpush1.msra.mxu0 0.0
    %1267 = vmatprep.subr.mxu0 0.0
    %1268 = vmatpush1.msra.mxu0 0.0
    %1269 = vmatprep.subr.mxu0 0.0
    %1270 = vmatpush1.msra.mxu0 0.0
    %1271 = vmatprep.subr.mxu0 0.0
    %1272 = vmatpush1.msra.mxu0 0.0
    %1273 = vmatprep.mubr.f32.mxu0 0.0
    %v1274 = vand.u32 %v1205, 4294901760
    %v1275 = vsub.f32 %v1205, %v1274
    %v1276 = vand.u32 %v1275, 4294901760
    %v1277 = vsub.f32 %v1275, %v1276
    %v1278 = vand.u32 %v1277, 4294901760
    %1279 = vmatmul.mubr.f32.gmra.mrb[0].mxu0 %v1278
    %v1280 = vpop.f32.mrb[0].mxu0
    %v1281 = vadd.f32 0.0, %v1280
    %v1282 = vpop.f32.mrb[0].mxu0
    %1283 = vdwg.mxu0
    %1284 = vmatprep.subr.mxu0 0.0
    %v1285 = vand.u32 %v1201, 4294901760
    %v1286 = vsub.f32 %v1201, %v1285
    %v1287 = vand.u32 %v1286, 4294901760
    %v1288 = vsub.f32 %v1286, %v1287
    %v1289 = vand.u32 %v1288, 4294901760
    %1290 = vmatpush1.msra.mxu0 %v1289
    %1291 = vmatprep.subr.mxu0 0.0
    %v1292 = vand.u32 %v1202, 4294901760
    %v1293 = vsub.f32 %v1202, %v1292
    %v1294 = vand.u32 %v1293, 4294901760
    %v1295 = vsub.f32 %v1293, %v1294
    %v1296 = vand.u32 %v1295, 4294901760
    %1297 = vmatpush1.msra.mxu0 %v1296
    %1298 = vmatprep.subr.mxu0 0.0
    %1299 = vmatpush1.msra.mxu0 0.0
    %1300 = vmatprep.subr.mxu0 0.0
    %1301 = vmatpush1.msra.mxu0 0.0
    %1302 = vmatprep.subr.mxu0 0.0
    %1303 = vmatpush1.msra.mxu0 0.0
    %1304 = vmatprep.subr.mxu0 0.0
    %1305 = vmatpush1.msra.mxu0 0.0
    %1306 = vmatprep.subr.mxu0 0.0
    %1307 = vmatpush1.msra.mxu0 0.0
    %1308 = vmatprep.subr.mxu0 0.0
    %1309 = vmatpush1.msra.mxu0 0.0
    %1310 = vmatprep.subr.mxu0 0.0
    %1311 = vmatpush1.msra.mxu0 0.0
    %1312 = vmatprep.subr.mxu0 0.0
    %1313 = vmatpush1.msra.mxu0 0.0
    %1314 = vmatprep.subr.mxu0 0.0
    %1315 = vmatpush1.msra.mxu0 0.0
    %1316 = vmatprep.subr.mxu0 0.0
    %1317 = vmatpush1.msra.mxu0 0.0
    %1318 = vmatprep.subr.mxu0 0.0
    %1319 = vmatpush1.msra.mxu0 0.0
    %1320 = vmatprep.subr.mxu0 0.0
    %1321 = vmatpush1.msra.mxu0 0.0
    %1322 = vmatprep.subr.mxu0 0.0
    %1323 = vmatpush1.msra.mxu0 0.0
    %1324 = vmatprep.subr.mxu0 0.0
    %1325 = vmatpush1.msra.mxu0 0.0
    %1326 = vmatprep.subr.mxu0 0.0
    %1327 = vmatpush1.msra.mxu0 0.0
    %1328 = vmatprep.subr.mxu0 0.0
    %1329 = vmatpush1.msra.mxu0 0.0
    %1330 = vmatprep.subr.mxu0 0.0
    %1331 = vmatpush1.msra.mxu0 0.0
    %1332 = vmatprep.subr.mxu0 0.0
    %1333 = vmatpush1.msra.mxu0 0.0
    %1334 = vmatprep.subr.mxu0 0.0
    %1335 = vmatpush1.msra.mxu0 0.0
    %1336 = vmatprep.subr.mxu0 0.0
    %1337 = vmatpush1.msra.mxu0 0.0
    %1338 = vmatprep.subr.mxu0 0.0
    %1339 = vmatpush1.msra.mxu0 0.0
    %1340 = vmatprep.subr.mxu0 0.0
    %1341 = vmatpush1.msra.mxu0 0.0
    %1342 = vmatprep.subr.mxu0 0.0
    %1343 = vmatpush1.msra.mxu0 0.0
    %1344 = vmatprep.subr.mxu0 0.0
    %1345 = vmatpush1.msra.mxu0 0.0
    %1346 = vmatprep.subr.mxu0 0.0
    %1347 = vmatpush1.msra.mxu0 0.0
    %1348 = vmatprep.subr.mxu0 0.0
    %1349 = vmatpush1.msra.mxu0 0.0
    %1350 = vmatprep.subr.mxu0 0.0
    %1351 = vmatpush1.msra.mxu0 0.0
    %1352 = vmatprep.subr.mxu0 0.0
    %1353 = vmatpush1.msra.mxu0 0.0
    %1354 = vmatprep.subr.mxu0 0.0
    %1355 = vmatpush1.msra.mxu0 0.0
    %1356 = vmatprep.subr.mxu0 0.0
    %1357 = vmatpush1.msra.mxu0 0.0
    %1358 = vmatprep.mubr.f32.mxu0 0.0
    %v1359 = vand.u32 %v1205, 4294901760
    %1360 = vmatmul.mubr.f32.gmra.mrb[0].mxu0 %v1359
    %v1361 = vpop.f32.mrb[0].mxu0
    %v1362 = vadd.f32 %v1281, %v1361
    %v1363 = vpop.f32.mrb[0].mxu0
    %1364 = vdwg.mxu0
    %1365 = vmatprep.subr.mxu0 0.0
    %v1366 = vand.u32 %v1201, 4294901760
    %v1367 = vsub.f32 %v1201, %v1366
    %1368 = vmatpush1.msra.mxu0 %v1367
    %1369 = vmatprep.subr.mxu0 0.0
    %v1370 = vand.u32 %v1202, 4294901760
    %v1371 = vsub.f32 %v1202, %v1370
    %1372 = vmatpush1.msra.mxu0 %v1371
    %1373 = vmatprep.subr.mxu0 0.0
    %1374 = vmatpush1.msra.mxu0 0.0
    %1375 = vmatprep.subr.mxu0 0.0
    %1376 = vmatpush1.msra.mxu0 0.0
    %1377 = vmatprep.subr.mxu0 0.0
    %1378 = vmatpush1.msra.mxu0 0.0
    %1379 = vmatprep.subr.mxu0 0.0
    %1380 = vmatpush1.msra.mxu0 0.0
    %1381 = vmatprep.subr.mxu0 0.0
    %1382 = vmatpush1.msra.mxu0 0.0
    %1383 = vmatprep.subr.mxu0 0.0
    %1384 = vmatpush1.msra.mxu0 0.0
    %1385 = vmatprep.subr.mxu0 0.0
    %1386 = vmatpush1.msra.mxu0 0.0
    %1387 = vmatprep.subr.mxu0 0.0
    %1388 = vmatpush1.msra.mxu0 0.0
    %1389 = vmatprep.subr.mxu0 0.0
    %1390 = vmatpush1.msra.mxu0 0.0
    %1391 = vmatprep.subr.mxu0 0.0
    %1392 = vmatpush1.msra.mxu0 0.0
    %1393 = vmatprep.subr.mxu0 0.0
    %1394 = vmatpush1.msra.mxu0 0.0
    %1395 = vmatprep.subr.mxu0 0.0
    %1396 = vmatpush1.msra.mxu0 0.0
    %1397 = vmatprep.subr.mxu0 0.0
    %1398 = vmatpush1.msra.mxu0 0.0
    %1399 = vmatprep.subr.mxu0 0.0
    %1400 = vmatpush1.msra.mxu0 0.0
    %1401 = vmatprep.subr.mxu0 0.0
    %1402 = vmatpush1.msra.mxu0 0.0
    %1403 = vmatprep.subr.mxu0 0.0
    %1404 = vmatpush1.msra.mxu0 0.0
    %1405 = vmatprep.subr.mxu0 0.0
    %1406 = vmatpush1.msra.mxu0 0.0
    %1407 = vmatprep.subr.mxu0 0.0
    %1408 = vmatpush1.msra.mxu0 0.0
    %1409 = vmatprep.subr.mxu0 0.0
    %1410 = vmatpush1.msra.mxu0 0.0
    %1411 = vmatprep.subr.mxu0 0.0
    %1412 = vmatpush1.msra.mxu0 0.0
    %1413 = vmatprep.subr.mxu0 0.0
    %1414 = vmatpush1.msra.mxu0 0.0
    %1415 = vmatprep.subr.mxu0 0.0
    %1416 = vmatpush1.msra.mxu0 0.0
    %1417 = vmatprep.subr.mxu0 0.0
    %1418 = vmatpush1.msra.mxu0 0.0
    %1419 = vmatprep.subr.mxu0 0.0
    %1420 = vmatpush1.msra.mxu0 0.0
    %1421 = vmatprep.subr.mxu0 0.0
    %1422 = vmatpush1.msra.mxu0 0.0
    %1423 = vmatprep.subr.mxu0 0.0
    %1424 = vmatpush1.msra.mxu0 0.0
    %1425 = vmatprep.subr.mxu0 0.0
    %1426 = vmatpush1.msra.mxu0 0.0
    %1427 = vmatprep.subr.mxu0 0.0
    %1428 = vmatpush1.msra.mxu0 0.0
    %1429 = vmatprep.subr.mxu0 0.0
    %1430 = vmatpush1.msra.mxu0 0.0
    %1431 = vmatprep.subr.mxu0 0.0
    %1432 = vmatpush1.msra.mxu0 0.0
    %1433 = vmatprep.mubr.f32.mxu0 0.0
    %v1434 = vand.u32 %v1205, 4294901760
    %v1435 = vsub.f32 %v1205, %v1434
    %1436 = vmatmul.mubr.f32.gmra.mrb[0].mxu0 %v1435
    %v1437 = vpop.f32.mrb[0].mxu0
    %v1438 = vadd.f32 %v1362, %v1437
    %v1439 = vpop.f32.mrb[0].mxu0
    %1440 = vdwg.mxu0
    %1441 = vmatprep.subr.mxu0 0.0
    %v1442 = vand.u32 %v1201, 4294901760
    %1443 = vmatpush1.msra.mxu0 %v1442
    %1444 = vmatprep.subr.mxu0 0.0
    %v1445 = vand.u32 %v1202, 4294901760
    %1446 = vmatpush1.msra.mxu0 %v1445
    %1447 = vmatprep.subr.mxu0 0.0
    %1448 = vmatpush1.msra.mxu0 0.0
    %1449 = vmatprep.subr.mxu0 0.0
    %1450 = vmatpush1.msra.mxu0 0.0
    %1451 = vmatprep.subr.mxu0 0.0
    %1452 = vmatpush1.msra.mxu0 0.0
    %1453 = vmatprep.subr.mxu0 0.0
    %1454 = vmatpush1.msra.mxu0 0.0
    %1455 = vmatprep.subr.mxu0 0.0
    %1456 = vmatpush1.msra.mxu0 0.0
    %1457 = vmatprep.subr.mxu0 0.0
    %1458 = vmatpush1.msra.mxu0 0.0
    %1459 = vmatprep.subr.mxu0 0.0
    %1460 = vmatpush1.msra.mxu0 0.0
    %1461 = vmatprep.subr.mxu0 0.0
    %1462 = vmatpush1.msra.mxu0 0.0
    %1463 = vmatprep.subr.mxu0 0.0
    %1464 = vmatpush1.msra.mxu0 0.0
    %1465 = vmatprep.subr.mxu0 0.0
    %1466 = vmatpush1.msra.mxu0 0.0
    %1467 = vmatprep.subr.mxu0 0.0
    %1468 = vmatpush1.msra.mxu0 0.0
    %1469 = vmatprep.subr.mxu0 0.0
    %1470 = vmatpush1.msra.mxu0 0.0
    %1471 = vmatprep.subr.mxu0 0.0
    %1472 = vmatpush1.msra.mxu0 0.0
    %1473 = vmatprep.subr.mxu0 0.0
    %1474 = vmatpush1.msra.mxu0 0.0
    %1475 = vmatprep.subr.mxu0 0.0
    %1476 = vmatpush1.msra.mxu0 0.0
    %1477 = vmatprep.subr.mxu0 0.0
    %1478 = vmatpush1.msra.mxu0 0.0
    %1479 = vmatprep.subr.mxu0 0.0
    %1480 = vmatpush1.msra.mxu0 0.0
    %1481 = vmatprep.subr.mxu0 0.0
    %1482 = vmatpush1.msra.mxu0 0.0
    %1483 = vmatprep.subr.mxu0 0.0
    %1484 = vmatpush1.msra.mxu0 0.0
    %1485 = vmatprep.subr.mxu0 0.0
    %1486 = vmatpush1.msra.mxu0 0.0
    %1487 = vmatprep.subr.mxu0 0.0
    %1488 = vmatpush1.msra.mxu0 0.0
    %1489 = vmatprep.subr.mxu0 0.0
    %1490 = vmatpush1.msra.mxu0 0.0
    %1491 = vmatprep.subr.mxu0 0.0
    %1492 = vmatpush1.msra.mxu0 0.0
    %1493 = vmatprep.subr.mxu0 0.0
    %1494 = vmatpush1.msra.mxu0 0.0
    %1495 = vmatprep.subr.mxu0 0.0
    %1496 = vmatpush1.msra.mxu0 0.0
    %1497 = vmatprep.subr.mxu0 0.0
    %1498 = vmatpush1.msra.mxu0 0.0
    %1499 = vmatprep.subr.mxu0 0.0
    %1500 = vmatpush1.msra.mxu0 0.0
    %1501 = vmatprep.subr.mxu0 0.0
    %1502 = vmatpush1.msra.mxu0 0.0
    %1503 = vmatprep.subr.mxu0 0.0
    %1504 = vmatpush1.msra.mxu0 0.0
    %1505 = vmatprep.subr.mxu0 0.0
    %1506 = vmatpush1.msra.mxu0 0.0
    %1507 = vmatprep.mubr.f32.mxu0 0.0
    %v1508 = vand.u32 %v1205, 4294901760
    %v1509 = vsub.f32 %v1205, %v1508
    %v1510 = vand.u32 %v1509, 4294901760
    %1511 = vmatmul.mubr.f32.gmra.mrb[0].mxu0 %v1510
    %v1512 = vpop.f32.mrb[0].mxu0
    %v1513 = vadd.f32 %v1438, %v1512
    %v1514 = vpop.f32.mrb[0].mxu0
    %1515 = vdwg.mxu0
    %1516 = vmatprep.subr.mxu0 0.0
    %v1517 = vand.u32 %v1201, 4294901760
    %v1518 = vsub.f32 %v1201, %v1517
    %v1519 = vand.u32 %v1518, 4294901760
    %1520 = vmatpush1.msra.mxu0 %v1519
    %1521 = vmatprep.subr.mxu0 0.0
    %v1522 = vand.u32 %v1202, 4294901760
    %v1523 = vsub.f32 %v1202, %v1522
    %v1524 = vand.u32 %v1523, 4294901760
    %1525 = vmatpush1.msra.mxu0 %v1524
    %1526 = vmatprep.subr.mxu0 0.0
    %1527 = vmatpush1.msra.mxu0 0.0
    %1528 = vmatprep.subr.mxu0 0.0
    %1529 = vmatpush1.msra.mxu0 0.0
    %1530 = vmatprep.subr.mxu0 0.0
    %1531 = vmatpush1.msra.mxu0 0.0
    %1532 = vmatprep.subr.mxu0 0.0
    %1533 = vmatpush1.msra.mxu0 0.0
    %1534 = vmatprep.subr.mxu0 0.0
    %1535 = vmatpush1.msra.mxu0 0.0
    %1536 = vmatprep.subr.mxu0 0.0
    %1537 = vmatpush1.msra.mxu0 0.0
    %1538 = vmatprep.subr.mxu0 0.0
    %1539 = vmatpush1.msra.mxu0 0.0
    %1540 = vmatprep.subr.mxu0 0.0
    %1541 = vmatpush1.msra.mxu0 0.0
    %1542 = vmatprep.subr.mxu0 0.0
    %1543 = vmatpush1.msra.mxu0 0.0
    %1544 = vmatprep.subr.mxu0 0.0
    %1545 = vmatpush1.msra.mxu0 0.0
    %1546 = vmatprep.subr.mxu0 0.0
    %1547 = vmatpush1.msra.mxu0 0.0
    %1548 = vmatprep.subr.mxu0 0.0
    %1549 = vmatpush1.msra.mxu0 0.0
    %1550 = vmatprep.subr.mxu0 0.0
    %1551 = vmatpush1.msra.mxu0 0.0
    %1552 = vmatprep.subr.mxu0 0.0
    %1553 = vmatpush1.msra.mxu0 0.0
    %1554 = vmatprep.subr.mxu0 0.0
    %1555 = vmatpush1.msra.mxu0 0.0
    %1556 = vmatprep.subr.mxu0 0.0
    %1557 = vmatpush1.msra.mxu0 0.0
    %1558 = vmatprep.subr.mxu0 0.0
    %1559 = vmatpush1.msra.mxu0 0.0
    %1560 = vmatprep.subr.mxu0 0.0
    %1561 = vmatpush1.msra.mxu0 0.0
    %1562 = vmatprep.subr.mxu0 0.0
    %1563 = vmatpush1.msra.mxu0 0.0
    %1564 = vmatprep.subr.mxu0 0.0
    %1565 = vmatpush1.msra.mxu0 0.0
    %1566 = vmatprep.subr.mxu0 0.0
    %1567 = vmatpush1.msra.mxu0 0.0
    %1568 = vmatprep.subr.mxu0 0.0
    %1569 = vmatpush1.msra.mxu0 0.0
    %1570 = vmatprep.subr.mxu0 0.0
    %1571 = vmatpush1.msra.mxu0 0.0
    %1572 = vmatprep.subr.mxu0 0.0
    %1573 = vmatpush1.msra.mxu0 0.0
    %1574 = vmatprep.subr.mxu0 0.0
    %1575 = vmatpush1.msra.mxu0 0.0
    %1576 = vmatprep.subr.mxu0 0.0
    %1577 = vmatpush1.msra.mxu0 0.0
    %1578 = vmatprep.subr.mxu0 0.0
    %1579 = vmatpush1.msra.mxu0 0.0
    %1580 = vmatprep.subr.mxu0 0.0
    %1581 = vmatpush1.msra.mxu0 0.0
    %1582 = vmatprep.subr.mxu0 0.0
    %1583 = vmatpush1.msra.mxu0 0.0
    %1584 = vmatprep.subr.mxu0 0.0
    %1585 = vmatpush1.msra.mxu0 0.0
    %1586 = vmatprep.mubr.f32.mxu0 0.0
    %v1587 = vand.u32 %v1205, 4294901760
    %1588 = vmatmul.mubr.f32.gmra.mrb[0].mxu0 %v1587
    %v1589 = vpop.f32.mrb[0].mxu0
    %v1590 = vadd.f32 %v1513, %v1589
    %v1591 = vpop.f32.mrb[0].mxu0
    %1592 = vdwg.mxu0
    %1593 = vmatprep.subr.mxu0 0.0
    %v1594 = vand.u32 %v1201, 4294901760
    %1595 = vmatpush1.msra.mxu0 %v1594
    %1596 = vmatprep.subr.mxu0 0.0
    %v1597 = vand.u32 %v1202, 4294901760
    %1598 = vmatpush1.msra.mxu0 %v1597
    %1599 = vmatprep.subr.mxu0 0.0
    %1600 = vmatpush1.msra.mxu0 0.0
    %1601 = vmatprep.subr.mxu0 0.0
    %1602 = vmatpush1.msra.mxu0 0.0
    %1603 = vmatprep.subr.mxu0 0.0
    %1604 = vmatpush1.msra.mxu0 0.0
    %1605 = vmatprep.subr.mxu0 0.0
    %1606 = vmatpush1.msra.mxu0 0.0
    %1607 = vmatprep.subr.mxu0 0.0
    %1608 = vmatpush1.msra.mxu0 0.0
    %1609 = vmatprep.subr.mxu0 0.0
    %1610 = vmatpush1.msra.mxu0 0.0
    %1611 = vmatprep.subr.mxu0 0.0
    %1612 = vmatpush1.msra.mxu0 0.0
    %1613 = vmatprep.subr.mxu0 0.0
    %1614 = vmatpush1.msra.mxu0 0.0
    %1615 = vmatprep.subr.mxu0 0.0
    %1616 = vmatpush1.msra.mxu0 0.0
    %1617 = vmatprep.subr.mxu0 0.0
    %1618 = vmatpush1.msra.mxu0 0.0
    %1619 = vmatprep.subr.mxu0 0.0
    %1620 = vmatpush1.msra.mxu0 0.0
    %1621 = vmatprep.subr.mxu0 0.0
    %1622 = vmatpush1.msra.mxu0 0.0
    %1623 = vmatprep.subr.mxu0 0.0
    %1624 = vmatpush1.msra.mxu0 0.0
    %1625 = vmatprep.subr.mxu0 0.0
    %1626 = vmatpush1.msra.mxu0 0.0
    %1627 = vmatprep.subr.mxu0 0.0
    %1628 = vmatpush1.msra.mxu0 0.0
    %1629 = vmatprep.subr.mxu0 0.0
    %1630 = vmatpush1.msra.mxu0 0.0
    %1631 = vmatprep.subr.mxu0 0.0
    %1632 = vmatpush1.msra.mxu0 0.0
    %1633 = vmatprep.subr.mxu0 0.0
    %1634 = vmatpush1.msra.mxu0 0.0
    %1635 = vmatprep.subr.mxu0 0.0
    %1636 = vmatpush1.msra.mxu0 0.0
    %1637 = vmatprep.subr.mxu0 0.0
    %1638 = vmatpush1.msra.mxu0 0.0
    %1639 = vmatprep.subr.mxu0 0.0
    %1640 = vmatpush1.msra.mxu0 0.0
    %1641 = vmatprep.subr.mxu0 0.0
    %1642 = vmatpush1.msra.mxu0 0.0
    %1643 = vmatprep.subr.mxu0 0.0
    %1644 = vmatpush1.msra.mxu0 0.0
    %1645 = vmatprep.subr.mxu0 0.0
    %1646 = vmatpush1.msra.mxu0 0.0
    %1647 = vmatprep.subr.mxu0 0.0
    %1648 = vmatpush1.msra.mxu0 0.0
    %1649 = vmatprep.subr.mxu0 0.0
    %1650 = vmatpush1.msra.mxu0 0.0
    %1651 = vmatprep.subr.mxu0 0.0
    %1652 = vmatpush1.msra.mxu0 0.0
    %1653 = vmatprep.subr.mxu0 0.0
    %1654 = vmatpush1.msra.mxu0 0.0
    %1655 = vmatprep.subr.mxu0 0.0
    %1656 = vmatpush1.msra.mxu0 0.0
    %1657 = vmatprep.subr.mxu0 0.0
    %1658 = vmatpush1.msra.mxu0 0.0
    %1659 = vmatprep.mubr.f32.mxu0 0.0
    %v1660 = vand.u32 %v1205, 4294901760
    %1661 = vmatmul.mubr.f32.gmra.mrb[0].mxu0 %v1660
    %v1662 = vpop.f32.mrb[0].mxu0
    %v1663 = vadd.f32 %v1590, %v1662
    %v1664 = vpop.f32.mrb[0].mxu0
    %1665 = vdwg.mxu0
    %1666 = vmatprep.subr.mxu0 0.0
    %v1667 = vand.u32 %v1192, 4294901760
    %1668 = vmatpush1.msra.mxu0 %v1667
    %1669 = vmatprep.subr.mxu0 0.0
    %v1670 = vand.u32 %v1198, 4294901760
    %1671 = vmatpush1.msra.mxu0 %v1670
    %1672 = vmatprep.subr.mxu0 0.0
    %1673 = vmatpush1.msra.mxu0 0.0
    %1674 = vmatprep.subr.mxu0 0.0
    %1675 = vmatpush1.msra.mxu0 0.0
    %1676 = vmatprep.subr.mxu0 0.0
    %1677 = vmatpush1.msra.mxu0 0.0
    %1678 = vmatprep.subr.mxu0 0.0
    %1679 = vmatpush1.msra.mxu0 0.0
    %1680 = vmatprep.subr.mxu0 0.0
    %1681 = vmatpush1.msra.mxu0 0.0
    %1682 = vmatprep.subr.mxu0 0.0
    %1683 = vmatpush1.msra.mxu0 0.0
    %1684 = vmatprep.subr.mxu0 0.0
    %1685 = vmatpush1.msra.mxu0 0.0
    %1686 = vmatprep.subr.mxu0 0.0
    %1687 = vmatpush1.msra.mxu0 0.0
    %1688 = vmatprep.subr.mxu0 0.0
    %1689 = vmatpush1.msra.mxu0 0.0
    %1690 = vmatprep.subr.mxu0 0.0
    %1691 = vmatpush1.msra.mxu0 0.0
    %1692 = vmatprep.subr.mxu0 0.0
    %1693 = vmatpush1.msra.mxu0 0.0
    %1694 = vmatprep.subr.mxu0 0.0
    %1695 = vmatpush1.msra.mxu0 0.0
    %1696 = vmatprep.subr.mxu0 0.0
    %1697 = vmatpush1.msra.mxu0 0.0
    %1698 = vmatprep.subr.mxu0 0.0
    %1699 = vmatpush1.msra.mxu0 0.0
    %1700 = vmatprep.subr.mxu0 0.0
    %1701 = vmatpush1.msra.mxu0 0.0
    %1702 = vmatprep.subr.mxu0 0.0
    %1703 = vmatpush1.msra.mxu0 0.0
    %1704 = vmatprep.subr.mxu0 0.0
    %1705 = vmatpush1.msra.mxu0 0.0
    %1706 = vmatprep.subr.mxu0 0.0
    %1707 = vmatpush1.msra.mxu0 0.0
    %1708 = vmatprep.subr.mxu0 0.0
    %1709 = vmatpush1.msra.mxu0 0.0
    %1710 = vmatprep.subr.mxu0 0.0
    %1711 = vmatpush1.msra.mxu0 0.0
    %1712 = vmatprep.subr.mxu0 0.0
    %1713 = vmatpush1.msra.mxu0 0.0
    %1714 = vmatprep.subr.mxu0 0.0
    %1715 = vmatpush1.msra.mxu0 0.0
    %1716 = vmatprep.subr.mxu0 0.0
    %1717 = vmatpush1.msra.mxu0 0.0
    %1718 = vmatprep.subr.mxu0 0.0
    %1719 = vmatpush1.msra.mxu0 0.0
    %1720 = vmatprep.subr.mxu0 0.0
    %1721 = vmatpush1.msra.mxu0 0.0
    %1722 = vmatprep.subr.mxu0 0.0
    %1723 = vmatpush1.msra.mxu0 0.0
    %1724 = vmatprep.subr.mxu0 0.0
    %1725 = vmatpush1.msra.mxu0 0.0
    %1726 = vmatprep.subr.mxu0 0.0
    %1727 = vmatpush1.msra.mxu0 0.0
    %1728 = vmatprep.subr.mxu0 0.0
    %1729 = vmatpush1.msra.mxu0 0.0
    %1730 = vmatprep.subr.mxu0 0.0
    %1731 = vmatpush1.msra.mxu0 0.0
    %1732 = vmatprep.mubr.f32.mxu0 0.0
    %v1733 = vand.u32 %v1205, 4294901760
    %v1734 = vsub.f32 %v1205, %v1733
    %v1735 = vand.u32 %v1734, 4294901760
    %v1736 = vsub.f32 %v1734, %v1735
    %v1737 = vand.u32 %v1736, 4294901760
    %1738 = vmatmul.mubr.f32.gmra.mrb[0].mxu0 %v1737
    %v1739 = vpop.f32.mrb[0].mxu0
    %v1740 = vadd.f32 0.0, %v1739
    %v1741 = vpop.f32.mrb[0].mxu0
    %1742 = vdwg.mxu0
    %1743 = vmatprep.subr.mxu0 0.0
    %v1744 = vand.u32 %v1192, 4294901760
    %v1745 = vsub.f32 %v1192, %v1744
    %v1746 = vand.u32 %v1745, 4294901760
    %v1747 = vsub.f32 %v1745, %v1746
    %v1748 = vand.u32 %v1747, 4294901760
    %1749 = vmatpush1.msra.mxu0 %v1748
    %1750 = vmatprep.subr.mxu0 0.0
    %v1751 = vand.u32 %v1198, 4294901760
    %v1752 = vsub.f32 %v1198, %v1751
    %v1753 = vand.u32 %v1752, 4294901760
    %v1754 = vsub.f32 %v1752, %v1753
    %v1755 = vand.u32 %v1754, 4294901760
    %1756 = vmatpush1.msra.mxu0 %v1755
    %1757 = vmatprep.subr.mxu0 0.0
    %1758 = vmatpush1.msra.mxu0 0.0
    %1759 = vmatprep.subr.mxu0 0.0
    %1760 = vmatpush1.msra.mxu0 0.0
    %1761 = vmatprep.subr.mxu0 0.0
    %1762 = vmatpush1.msra.mxu0 0.0
    %1763 = vmatprep.subr.mxu0 0.0
    %1764 = vmatpush1.msra.mxu0 0.0
    %1765 = vmatprep.subr.mxu0 0.0
    %1766 = vmatpush1.msra.mxu0 0.0
    %1767 = vmatprep.subr.mxu0 0.0
    %1768 = vmatpush1.msra.mxu0 0.0
    %1769 = vmatprep.subr.mxu0 0.0
    %1770 = vmatpush1.msra.mxu0 0.0
    %1771 = vmatprep.subr.mxu0 0.0
    %1772 = vmatpush1.msra.mxu0 0.0
    %1773 = vmatprep.subr.mxu0 0.0
    %1774 = vmatpush1.msra.mxu0 0.0
    %1775 = vmatprep.subr.mxu0 0.0
    %1776 = vmatpush1.msra.mxu0 0.0
    %1777 = vmatprep.subr.mxu0 0.0
    %1778 = vmatpush1.msra.mxu0 0.0
    %1779 = vmatprep.subr.mxu0 0.0
    %1780 = vmatpush1.msra.mxu0 0.0
    %1781 = vmatprep.subr.mxu0 0.0
    %1782 = vmatpush1.msra.mxu0 0.0
    %1783 = vmatprep.subr.mxu0 0.0
    %1784 = vmatpush1.msra.mxu0 0.0
    %1785 = vmatprep.subr.mxu0 0.0
    %1786 = vmatpush1.msra.mxu0 0.0
    %1787 = vmatprep.subr.mxu0 0.0
    %1788 = vmatpush1.msra.mxu0 0.0
    %1789 = vmatprep.subr.mxu0 0.0
    %1790 = vmatpush1.msra.mxu0 0.0
    %1791 = vmatprep.subr.mxu0 0.0
    %1792 = vmatpush1.msra.mxu0 0.0
    %1793 = vmatprep.subr.mxu0 0.0
    %1794 = vmatpush1.msra.mxu0 0.0
    %1795 = vmatprep.subr.mxu0 0.0
    %1796 = vmatpush1.msra.mxu0 0.0
    %1797 = vmatprep.subr.mxu0 0.0
    %1798 = vmatpush1.msra.mxu0 0.0
    %1799 = vmatprep.subr.mxu0 0.0
    %1800 = vmatpush1.msra.mxu0 0.0
    %1801 = vmatprep.subr.mxu0 0.0
    %1802 = vmatpush1.msra.mxu0 0.0
    %1803 = vmatprep.subr.mxu0 0.0
    %1804 = vmatpush1.msra.mxu0 0.0
    %1805 = vmatprep.subr.mxu0 0.0
    %1806 = vmatpush1.msra.mxu0 0.0
    %1807 = vmatprep.subr.mxu0 0.0
    %1808 = vmatpush1.msra.mxu0 0.0
    %1809 = vmatprep.subr.mxu0 0.0
    %1810 = vmatpush1.msra.mxu0 0.0
    %1811 = vmatprep.subr.mxu0 0.0
    %1812 = vmatpush1.msra.mxu0 0.0
    %1813 = vmatprep.subr.mxu0 0.0
    %1814 = vmatpush1.msra.mxu0 0.0
    %1815 = vmatprep.subr.mxu0 0.0
    %1816 = vmatpush1.msra.mxu0 0.0
    %1817 = vmatprep.mubr.f32.mxu0 0.0
    %v1818 = vand.u32 %v1205, 4294901760
    %1819 = vmatmul.mubr.f32.gmra.mrb[0].mxu0 %v1818
    %v1820 = vpop.f32.mrb[0].mxu0
    %v1821 = vadd.f32 %v1740, %v1820
    %v1822 = vpop.f32.mrb[0].mxu0
    %1823 = vdwg.mxu0
    %1824 = vmatprep.subr.mxu0 0.0
    %v1825 = vand.u32 %v1192, 4294901760
    %v1826 = vsub.f32 %v1192, %v1825
    %1827 = vmatpush1.msra.mxu0 %v1826
    %1828 = vmatprep.subr.mxu0 0.0
    %v1829 = vand.u32 %v1198, 4294901760
    %v1830 = vsub.f32 %v1198, %v1829
    %1831 = vmatpush1.msra.mxu0 %v1830
    %1832 = vmatprep.subr.mxu0 0.0
    %1833 = vmatpush1.msra.mxu0 0.0
    %1834 = vmatprep.subr.mxu0 0.0
    %1835 = vmatpush1.msra.mxu0 0.0
    %1836 = vmatprep.subr.mxu0 0.0
    %1837 = vmatpush1.msra.mxu0 0.0
    %1838 = vmatprep.subr.mxu0 0.0
    %1839 = vmatpush1.msra.mxu0 0.0
    %1840 = vmatprep.subr.mxu0 0.0
    %1841 = vmatpush1.msra.mxu0 0.0
    %1842 = vmatprep.subr.mxu0 0.0
    %1843 = vmatpush1.msra.mxu0 0.0
    %1844 = vmatprep.subr.mxu0 0.0
    %1845 = vmatpush1.msra.mxu0 0.0
    %1846 = vmatprep.subr.mxu0 0.0
    %1847 = vmatpush1.msra.mxu0 0.0
    %1848 = vmatprep.subr.mxu0 0.0
    %1849 = vmatpush1.msra.mxu0 0.0
    %1850 = vmatprep.subr.mxu0 0.0
    %1851 = vmatpush1.msra.mxu0 0.0
    %1852 = vmatprep.subr.mxu0 0.0
    %1853 = vmatpush1.msra.mxu0 0.0
    %1854 = vmatprep.subr.mxu0 0.0
    %1855 = vmatpush1.msra.mxu0 0.0
    %1856 = vmatprep.subr.mxu0 0.0
    %1857 = vmatpush1.msra.mxu0 0.0
    %1858 = vmatprep.subr.mxu0 0.0
    %1859 = vmatpush1.msra.mxu0 0.0
    %1860 = vmatprep.subr.mxu0 0.0
    %1861 = vmatpush1.msra.mxu0 0.0
    %1862 = vmatprep.subr.mxu0 0.0
    %1863 = vmatpush1.msra.mxu0 0.0
    %1864 = vmatprep.subr.mxu0 0.0
    %1865 = vmatpush1.msra.mxu0 0.0
    %1866 = vmatprep.subr.mxu0 0.0
    %1867 = vmatpush1.msra.mxu0 0.0
    %1868 = vmatprep.subr.mxu0 0.0
    %1869 = vmatpush1.msra.mxu0 0.0
    %1870 = vmatprep.subr.mxu0 0.0
    %1871 = vmatpush1.msra.mxu0 0.0
    %1872 = vmatprep.subr.mxu0 0.0
    %1873 = vmatpush1.msra.mxu0 0.0
    %1874 = vmatprep.subr.mxu0 0.0
    %1875 = vmatpush1.msra.mxu0 0.0
    %1876 = vmatprep.subr.mxu0 0.0
    %1877 = vmatpush1.msra.mxu0 0.0
    %1878 = vmatprep.subr.mxu0 0.0
    %1879 = vmatpush1.msra.mxu0 0.0
    %1880 = vmatprep.subr.mxu0 0.0
    %1881 = vmatpush1.msra.mxu0 0.0
    %1882 = vmatprep.subr.mxu0 0.0
    %1883 = vmatpush1.msra.mxu0 0.0
    %1884 = vmatprep.subr.mxu0 0.0
    %1885 = vmatpush1.msra.mxu0 0.0
    %1886 = vmatprep.subr.mxu0 0.0
    %1887 = vmatpush1.msra.mxu0 0.0
    %1888 = vmatprep.subr.mxu0 0.0
    %1889 = vmatpush1.msra.mxu0 0.0
    %1890 = vmatprep.subr.mxu0 0.0
    %1891 = vmatpush1.msra.mxu0 0.0
    %1892 = vmatprep.mubr.f32.mxu0 0.0
    %v1893 = vand.u32 %v1205, 4294901760
    %v1894 = vsub.f32 %v1205, %v1893
    %1895 = vmatmul.mubr.f32.gmra.mrb[0].mxu0 %v1894
    %v1896 = vpop.f32.mrb[0].mxu0
    %v1897 = vadd.f32 %v1821, %v1896
    %v1898 = vpop.f32.mrb[0].mxu0
    %1899 = vdwg.mxu0
    %1900 = vmatprep.subr.mxu0 0.0
    %v1901 = vand.u32 %v1192, 4294901760
    %1902 = vmatpush1.msra.mxu0 %v1901
    %1903 = vmatprep.subr.mxu0 0.0
    %v1904 = vand.u32 %v1198, 4294901760
    %1905 = vmatpush1.msra.mxu0 %v1904
    %1906 = vmatprep.subr.mxu0 0.0
    %1907 = vmatpush1.msra.mxu0 0.0
    %1908 = vmatprep.subr.mxu0 0.0
    %1909 = vmatpush1.msra.mxu0 0.0
    %1910 = vmatprep.subr.mxu0 0.0
    %1911 = vmatpush1.msra.mxu0 0.0
    %1912 = vmatprep.subr.mxu0 0.0
    %1913 = vmatpush1.msra.mxu0 0.0
    %1914 = vmatprep.subr.mxu0 0.0
    %1915 = vmatpush1.msra.mxu0 0.0
    %1916 = vmatprep.subr.mxu0 0.0
    %1917 = vmatpush1.msra.mxu0 0.0
    %1918 = vmatprep.subr.mxu0 0.0
    %1919 = vmatpush1.msra.mxu0 0.0
    %1920 = vmatprep.subr.mxu0 0.0
    %1921 = vmatpush1.msra.mxu0 0.0
    %1922 = vmatprep.subr.mxu0 0.0
    %1923 = vmatpush1.msra.mxu0 0.0
    %1924 = vmatprep.subr.mxu0 0.0
    %1925 = vmatpush1.msra.mxu0 0.0
    %1926 = vmatprep.subr.mxu0 0.0
    %1927 = vmatpush1.msra.mxu0 0.0
    %1928 = vmatprep.subr.mxu0 0.0
    %1929 = vmatpush1.msra.mxu0 0.0
    %1930 = vmatprep.subr.mxu0 0.0
    %1931 = vmatpush1.msra.mxu0 0.0
    %1932 = vmatprep.subr.mxu0 0.0
    %1933 = vmatpush1.msra.mxu0 0.0
    %1934 = vmatprep.subr.mxu0 0.0
    %1935 = vmatpush1.msra.mxu0 0.0
    %1936 = vmatprep.subr.mxu0 0.0
    %1937 = vmatpush1.msra.mxu0 0.0
    %1938 = vmatprep.subr.mxu0 0.0
    %1939 = vmatpush1.msra.mxu0 0.0
    %1940 = vmatprep.subr.mxu0 0.0
    %1941 = vmatpush1.msra.mxu0 0.0
    %1942 = vmatprep.subr.mxu0 0.0
    %1943 = vmatpush1.msra.mxu0 0.0
    %1944 = vmatprep.subr.mxu0 0.0
    %1945 = vmatpush1.msra.mxu0 0.0
    %1946 = vmatprep.subr.mxu0 0.0
    %1947 = vmatpush1.msra.mxu0 0.0
    %1948 = vmatprep.subr.mxu0 0.0
    %1949 = vmatpush1.msra.mxu0 0.0
    %1950 = vmatprep.subr.mxu0 0.0
    %1951 = vmatpush1.msra.mxu0 0.0
    %1952 = vmatprep.subr.mxu0 0.0
    %1953 = vmatpush1.msra.mxu0 0.0
    %1954 = vmatprep.subr.mxu0 0.0
    %1955 = vmatpush1.msra.mxu0 0.0
    %1956 = vmatprep.subr.mxu0 0.0
    %1957 = vmatpush1.msra.mxu0 0.0
    %1958 = vmatprep.subr.mxu0 0.0
    %1959 = vmatpush1.msra.mxu0 0.0
    %1960 = vmatprep.subr.mxu0 0.0
    %1961 = vmatpush1.msra.mxu0 0.0
    %1962 = vmatprep.subr.mxu0 0.0
    %1963 = vmatpush1.msra.mxu0 0.0
    %1964 = vmatprep.subr.mxu0 0.0
    %1965 = vmatpush1.msra.mxu0 0.0
    %1966 = vmatprep.mubr.f32.mxu0 0.0
    %v1967 = vand.u32 %v1205, 4294901760
    %v1968 = vsub.f32 %v1205, %v1967
    %v1969 = vand.u32 %v1968, 4294901760
    %1970 = vmatmul.mubr.f32.gmra.mrb[0].mxu0 %v1969
    %v1971 = vpop.f32.mrb[0].mxu0
    %v1972 = vadd.f32 %v1897, %v1971
    %v1973 = vpop.f32.mrb[0].mxu0
    %1974 = vdwg.mxu0
    %1975 = vmatprep.subr.mxu0 0.0
    %v1976 = vand.u32 %v1192, 4294901760
    %v1977 = vsub.f32 %v1192, %v1976
    %v1978 = vand.u32 %v1977, 4294901760
    %1979 = vmatpush1.msra.mxu0 %v1978
    %1980 = vmatprep.subr.mxu0 0.0
    %v1981 = vand.u32 %v1198, 4294901760
    %v1982 = vsub.f32 %v1198, %v1981
    %v1983 = vand.u32 %v1982, 4294901760
    %1984 = vmatpush1.msra.mxu0 %v1983
    %1985 = vmatprep.subr.mxu0 0.0
    %1986 = vmatpush1.msra.mxu0 0.0
    %1987 = vmatprep.subr.mxu0 0.0
    %1988 = vmatpush1.msra.mxu0 0.0
    %1989 = vmatprep.subr.mxu0 0.0
    %1990 = vmatpush1.msra.mxu0 0.0
    %1991 = vmatprep.subr.mxu0 0.0
    %1992 = vmatpush1.msra.mxu0 0.0
    %1993 = vmatprep.subr.mxu0 0.0
    %1994 = vmatpush1.msra.mxu0 0.0
    %1995 = vmatprep.subr.mxu0 0.0
    %1996 = vmatpush1.msra.mxu0 0.0
    %1997 = vmatprep.subr.mxu0 0.0
    %1998 = vmatpush1.msra.mxu0 0.0
    %1999 = vmatprep.subr.mxu0 0.0
    %2000 = vmatpush1.msra.mxu0 0.0
    %2001 = vmatprep.subr.mxu0 0.0
    %2002 = vmatpush1.msra.mxu0 0.0
    %2003 = vmatprep.subr.mxu0 0.0
    %2004 = vmatpush1.msra.mxu0 0.0
    %2005 = vmatprep.subr.mxu0 0.0
    %2006 = vmatpush1.msra.mxu0 0.0
    %2007 = vmatprep.subr.mxu0 0.0
    %2008 = vmatpush1.msra.mxu0 0.0
    %2009 = vmatprep.subr.mxu0 0.0
    %2010 = vmatpush1.msra.mxu0 0.0
    %2011 = vmatprep.subr.mxu0 0.0
    %2012 = vmatpush1.msra.mxu0 0.0
    %2013 = vmatprep.subr.mxu0 0.0
    %2014 = vmatpush1.msra.mxu0 0.0
    %2015 = vmatprep.subr.mxu0 0.0
    %2016 = vmatpush1.msra.mxu0 0.0
    %2017 = vmatprep.subr.mxu0 0.0
    %2018 = vmatpush1.msra.mxu0 0.0
    %2019 = vmatprep.subr.mxu0 0.0
    %2020 = vmatpush1.msra.mxu0 0.0
    %2021 = vmatprep.subr.mxu0 0.0
    %2022 = vmatpush1.msra.mxu0 0.0
    %2023 = vmatprep.subr.mxu0 0.0
    %2024 = vmatpush1.msra.mxu0 0.0
    %2025 = vmatprep.subr.mxu0 0.0
    %2026 = vmatpush1.msra.mxu0 0.0
    %2027 = vmatprep.subr.mxu0 0.0
    %2028 = vmatpush1.msra.mxu0 0.0
    %2029 = vmatprep.subr.mxu0 0.0
    %2030 = vmatpush1.msra.mxu0 0.0
    %2031 = vmatprep.subr.mxu0 0.0
    %2032 = vmatpush1.msra.mxu0 0.0
    %2033 = vmatprep.subr.mxu0 0.0
    %2034 = vmatpush1.msra.mxu0 0.0
    %2035 = vmatprep.subr.mxu0 0.0
    %2036 = vmatpush1.msra.mxu0 0.0
    %2037 = vmatprep.subr.mxu0 0.0
    %2038 = vmatpush1.msra.mxu0 0.0
    %2039 = vmatprep.subr.mxu0 0.0
    %2040 = vmatpush1.msra.mxu0 0.0
    %2041 = vmatprep.subr.mxu0 0.0
    %2042 = vmatpush1.msra.mxu0 0.0
    %2043 = vmatprep.subr.mxu0 0.0
    %2044 = vmatpush1.msra.mxu0 0.0
    %2045 = vmatprep.mubr.f32.mxu0 0.0
    %v2046 = vand.u32 %v1205, 4294901760
    %2047 = vmatmul.mubr.f32.gmra.mrb[0].mxu0 %v2046
    %v2048 = vpop.f32.mrb[0].mxu0
    %v2049 = vadd.f32 %v1972, %v2048
    %v2050 = vpop.f32.mrb[0].mxu0
    %2051 = vdwg.mxu0
    %2052 = vmatprep.subr.mxu0 0.0
    %v2053 = vand.u32 %v1192, 4294901760
    %2054 = vmatpush1.msra.mxu0 %v2053
    %2055 = vmatprep.subr.mxu0 0.0
    %v2056 = vand.u32 %v1198, 4294901760
    %2057 = vmatpush1.msra.mxu0 %v2056
    %2058 = vmatprep.subr.mxu0 0.0
    %2059 = vmatpush1.msra.mxu0 0.0
    %2060 = vmatprep.subr.mxu0 0.0
    %2061 = vmatpush1.msra.mxu0 0.0
    %2062 = vmatprep.subr.mxu0 0.0
    %2063 = vmatpush1.msra.mxu0 0.0
    %2064 = vmatprep.subr.mxu0 0.0
    %2065 = vmatpush1.msra.mxu0 0.0
    %2066 = vmatprep.subr.mxu0 0.0
    %2067 = vmatpush1.msra.mxu0 0.0
    %2068 = vmatprep.subr.mxu0 0.0
    %2069 = vmatpush1.msra.mxu0 0.0
    %2070 = vmatprep.subr.mxu0 0.0
    %2071 = vmatpush1.msra.mxu0 0.0
    %2072 = vmatprep.subr.mxu0 0.0
    %2073 = vmatpush1.msra.mxu0 0.0
    %2074 = vmatprep.subr.mxu0 0.0
    %2075 = vmatpush1.msra.mxu0 0.0
    %2076 = vmatprep.subr.mxu0 0.0
    %2077 = vmatpush1.msra.mxu0 0.0
    %2078 = vmatprep.subr.mxu0 0.0
    %2079 = vmatpush1.msra.mxu0 0.0
    %2080 = vmatprep.subr.mxu0 0.0
    %2081 = vmatpush1.msra.mxu0 0.0
    %2082 = vmatprep.subr.mxu0 0.0
    %2083 = vmatpush1.msra.mxu0 0.0
    %2084 = vmatprep.subr.mxu0 0.0
    %2085 = vmatpush1.msra.mxu0 0.0
    %2086 = vmatprep.subr.mxu0 0.0
    %2087 = vmatpush1.msra.mxu0 0.0
    %2088 = vmatprep.subr.mxu0 0.0
    %2089 = vmatpush1.msra.mxu0 0.0
    %2090 = vmatprep.subr.mxu0 0.0
    %2091 = vmatpush1.msra.mxu0 0.0
    %2092 = vmatprep.subr.mxu0 0.0
    %2093 = vmatpush1.msra.mxu0 0.0
    %2094 = vmatprep.subr.mxu0 0.0
    %2095 = vmatpush1.msra.mxu0 0.0
    %2096 = vmatprep.subr.mxu0 0.0
    %2097 = vmatpush1.msra.mxu0 0.0
    %2098 = vmatprep.subr.mxu0 0.0
    %2099 = vmatpush1.msra.mxu0 0.0
    %2100 = vmatprep.subr.mxu0 0.0
    %2101 = vmatpush1.msra.mxu0 0.0
    %2102 = vmatprep.subr.mxu0 0.0
    %2103 = vmatpush1.msra.mxu0 0.0
    %2104 = vmatprep.subr.mxu0 0.0
    %2105 = vmatpush1.msra.mxu0 0.0
    %2106 = vmatprep.subr.mxu0 0.0
    %2107 = vmatpush1.msra.mxu0 0.0
    %2108 = vmatprep.subr.mxu0 0.0
    %2109 = vmatpush1.msra.mxu0 0.0
    %2110 = vmatprep.subr.mxu0 0.0
    %2111 = vmatpush1.msra.mxu0 0.0
    %2112 = vmatprep.subr.mxu0 0.0
    %2113 = vmatpush1.msra.mxu0 0.0
    %2114 = vmatprep.subr.mxu0 0.0
    %2115 = vmatpush1.msra.mxu0 0.0
    %2116 = vmatprep.subr.mxu0 0.0
    %2117 = vmatpush1.msra.mxu0 0.0
    %2118 = vmatprep.mubr.f32.mxu0 0.0
    %v2119 = vand.u32 %v1205, 4294901760
    %2120 = vmatmul.mubr.f32.gmra.mrb[0].mxu0 %v2119
    %v2121 = vpop.f32.mrb[0].mxu0
    %v2122 = vadd.f32 %v2049, %v2121
    %v2123 = vpop.f32.mrb[0].mxu0
    %2124 = vdwg.mxu0
    %v2125 = vrcp.pop %v2122
    %v2126 = vmul.f32 %v1663, %v2125
    %v2127 = vld [vmem:[#allocation5 + $0x10] sm:$0xff]
    %v2128 = vld [vmem:[#allocation5 + $0x30] sm:$0xff]
    %v2129 = vld [vmem:[#allocation5 + $0x50] sm:$0xff]
    %v2130 = vld [vmem:[#allocation5 + $0x70] sm:$0xff]
    %v2131 = vlaneseq
    %v2132 = vshrl.u32 %v2131, 7
    %v2133 = vsub.s32 0, %v2132
    %v2134 = vrot.slane %v60, %v2133
    %v2136 = vsel %vm75, %v2126, 0
    %2138 = vmatprep.subr.mxu0 0.0
    %v2139 = vand.u32 %v2127, 4294901760
    %2140 = vmatpush1.msra.mxu0 %v2139
    %2141 = vmatprep.subr.mxu0 0.0
    %v2142 = vand.u32 %v2128, 4294901760
    %2143 = vmatpush1.msra.mxu0 %v2142
    %2144 = vmatprep.subr.mxu0 0.0
    %v2145 = vand.u32 %v2129, 4294901760
    %2146 = vmatpush1.msra.mxu0 %v2145
    %2147 = vmatprep.subr.mxu0 0.0
    %v2148 = vand.u32 %v2130, 4294901760
    %2149 = vmatpush1.msra.mxu0 %v2148
    %2150 = vmatprep.subr.mxu0 0.0
    %2151 = vmatpush1.msra.mxu0 0.0
    %2152 = vmatprep.subr.mxu0 0.0
    %2153 = vmatpush1.msra.mxu0 0.0
    %2154 = vmatprep.subr.mxu0 0.0
    %2155 = vmatpush1.msra.mxu0 0.0
    %2156 = vmatprep.subr.mxu0 0.0
    %2157 = vmatpush1.msra.mxu0 0.0
    %2158 = vmatprep.subr.mxu0 0.0
    %2159 = vmatpush1.msra.mxu0 0.0
    %2160 = vmatprep.subr.mxu0 0.0
    %2161 = vmatpush1.msra.mxu0 0.0
    %2162 = vmatprep.subr.mxu0 0.0
    %2163 = vmatpush1.msra.mxu0 0.0
    %2164 = vmatprep.subr.mxu0 0.0
    %2165 = vmatpush1.msra.mxu0 0.0
    %2166 = vmatprep.subr.mxu0 0.0
    %2167 = vmatpush1.msra.mxu0 0.0
    %2168 = vmatprep.subr.mxu0 0.0
    %2169 = vmatpush1.msra.mxu0 0.0
    %2170 = vmatprep.subr.mxu0 0.0
    %2171 = vmatpush1.msra.mxu0 0.0
    %2172 = vmatprep.subr.mxu0 0.0
    %2173 = vmatpush1.msra.mxu0 0.0
    %2174 = vmatprep.subr.mxu0 0.0
    %2175 = vmatpush1.msra.mxu0 0.0
    %2176 = vmatprep.subr.mxu0 0.0
    %2177 = vmatpush1.msra.mxu0 0.0
    %2178 = vmatprep.subr.mxu0 0.0
    %2179 = vmatpush1.msra.mxu0 0.0
    %2180 = vmatprep.subr.mxu0 0.0
    %2181 = vmatpush1.msra.mxu0 0.0
    %2182 = vmatprep.subr.mxu0 0.0
    %2183 = vmatpush1.msra.mxu0 0.0
    %2184 = vmatprep.subr.mxu0 0.0
    %2185 = vmatpush1.msra.mxu0 0.0
    %2186 = vmatprep.subr.mxu0 0.0
    %2187 = vmatpush1.msra.mxu0 0.0
    %2188 = vmatprep.subr.mxu0 0.0
    %2189 = vmatpush1.msra.mxu0 0.0
    %2190 = vmatprep.subr.mxu0 0.0
    %2191 = vmatpush1.msra.mxu0 0.0
    %2192 = vmatprep.subr.mxu0 0.0
    %2193 = vmatpush1.msra.mxu0 0.0
    %2194 = vmatprep.subr.mxu0 0.0
    %2195 = vmatpush1.msra.mxu0 0.0
    %2196 = vmatprep.subr.mxu0 0.0
    %2197 = vmatpush1.msra.mxu0 0.0
    %2198 = vmatprep.subr.mxu0 0.0
    %2199 = vmatpush1.msra.mxu0 0.0
    %2200 = vmatprep.subr.mxu0 0.0
    %2201 = vmatpush1.msra.mxu0 0.0
    %2202 = vmatprep.subr.mxu0 0.0
    %2203 = vmatpush1.msra.mxu0 0.0
    %2204 = vmatprep.subr.mxu0 0.0
    %2205 = vmatpush1.msra.mxu0 0.0
    %2206 = vmatprep.mubr.f32.mxu0 0.0
    %v2207 = vand.u32 %v2136, 4294901760
    %v2208 = vsub.f32 %v2136, %v2207
    %v2209 = vand.u32 %v2208, 4294901760
    %v2210 = vsub.f32 %v2208, %v2209
    %v2211 = vand.u32 %v2210, 4294901760
    %2212 = vmatmul.mubr.f32.gmra.mrb[0].mxu0 %v2211
    %v2213 = vpop.f32.mrb[0].mxu0
    %v2214 = vadd.f32 %v2134, %v2213
    %v2215 = vpop.f32.mrb[0].mxu0
    %2216 = vdwg.mxu0
    %2217 = vmatprep.subr.mxu0 0.0
    %v2218 = vand.u32 %v2127, 4294901760
    %v2219 = vsub.f32 %v2127, %v2218
    %v2220 = vand.u32 %v2219, 4294901760
    %v2221 = vsub.f32 %v2219, %v2220
    %v2222 = vand.u32 %v2221, 4294901760
    %2223 = vmatpush1.msra.mxu0 %v2222
    %2224 = vmatprep.subr.mxu0 0.0
    %v2225 = vand.u32 %v2128, 4294901760
    %v2226 = vsub.f32 %v2128, %v2225
    %v2227 = vand.u32 %v2226, 4294901760
    %v2228 = vsub.f32 %v2226, %v2227
    %v2229 = vand.u32 %v2228, 4294901760
    %2230 = vmatpush1.msra.mxu0 %v2229
    %2231 = vmatprep.subr.mxu0 0.0
    %v2232 = vand.u32 %v2129, 4294901760
    %v2233 = vsub.f32 %v2129, %v2232
    %v2234 = vand.u32 %v2233, 4294901760
    %v2235 = vsub.f32 %v2233, %v2234
    %v2236 = vand.u32 %v2235, 4294901760
    %2237 = vmatpush1.msra.mxu0 %v2236
    %2238 = vmatprep.subr.mxu0 0.0
    %v2239 = vand.u32 %v2130, 4294901760
    %v2240 = vsub.f32 %v2130, %v2239
    %v2241 = vand.u32 %v2240, 4294901760
    %v2242 = vsub.f32 %v2240, %v2241
    %v2243 = vand.u32 %v2242, 4294901760
    %2244 = vmatpush1.msra.mxu0 %v2243
    %2245 = vmatprep.subr.mxu0 0.0
    %2246 = vmatpush1.msra.mxu0 0.0
    %2247 = vmatprep.subr.mxu0 0.0
    %2248 = vmatpush1.msra.mxu0 0.0
    %2249 = vmatprep.subr.mxu0 0.0
    %2250 = vmatpush1.msra.mxu0 0.0
    %2251 = vmatprep.subr.mxu0 0.0
    %2252 = vmatpush1.msra.mxu0 0.0
    %2253 = vmatprep.subr.mxu0 0.0
    %2254 = vmatpush1.msra.mxu0 0.0
    %2255 = vmatprep.subr.mxu0 0.0
    %2256 = vmatpush1.msra.mxu0 0.0
    %2257 = vmatprep.subr.mxu0 0.0
    %2258 = vmatpush1.msra.mxu0 0.0
    %2259 = vmatprep.subr.mxu0 0.0
    %2260 = vmatpush1.msra.mxu0 0.0
    %2261 = vmatprep.subr.mxu0 0.0
    %2262 = vmatpush1.msra.mxu0 0.0
    %2263 = vmatprep.subr.mxu0 0.0
    %2264 = vmatpush1.msra.mxu0 0.0
    %2265 = vmatprep.subr.mxu0 0.0
    %2266 = vmatpush1.msra.mxu0 0.0
    %2267 = vmatprep.subr.mxu0 0.0
    %2268 = vmatpush1.msra.mxu0 0.0
    %2269 = vmatprep.subr.mxu0 0.0
    %2270 = vmatpush1.msra.mxu0 0.0
    %2271 = vmatprep.subr.mxu0 0.0
    %2272 = vmatpush1.msra.mxu0 0.0
    %2273 = vmatprep.subr.mxu0 0.0
    %2274 = vmatpush1.msra.mxu0 0.0
    %2275 = vmatprep.subr.mxu0 0.0
    %2276 = vmatpush1.msra.mxu0 0.0
    %2277 = vmatprep.subr.mxu0 0.0
    %2278 = vmatpush1.msra.mxu0 0.0
    %2279 = vmatprep.subr.mxu0 0.0
    %2280 = vmatpush1.msra.mxu0 0.0
    %2281 = vmatprep.subr.mxu0 0.0
    %2282 = vmatpush1.msra.mxu0 0.0
    %2283 = vmatprep.subr.mxu0 0.0
    %2284 = vmatpush1.msra.mxu0 0.0
    %2285 = vmatprep.subr.mxu0 0.0
    %2286 = vmatpush1.msra.mxu0 0.0
    %2287 = vmatprep.subr.mxu0 0.0
    %2288 = vmatpush1.msra.mxu0 0.0
    %2289 = vmatprep.subr.mxu0 0.0
    %2290 = vmatpush1.msra.mxu0 0.0
    %2291 = vmatprep.subr.mxu0 0.0
    %2292 = vmatpush1.msra.mxu0 0.0
    %2293 = vmatprep.subr.mxu0 0.0
    %2294 = vmatpush1.msra.mxu0 0.0
    %2295 = vmatprep.subr.mxu0 0.0
    %2296 = vmatpush1.msra.mxu0 0.0
    %2297 = vmatprep.subr.mxu0 0.0
    %2298 = vmatpush1.msra.mxu0 0.0
    %2299 = vmatprep.subr.mxu0 0.0
    %2300 = vmatpush1.msra.mxu0 0.0
    %2301 = vmatprep.mubr.f32.mxu0 0.0
    %v2302 = vand.u32 %v2136, 4294901760
    %2303 = vmatmul.mubr.f32.gmra.mrb[0].mxu0 %v2302
    %v2304 = vpop.f32.mrb[0].mxu0
    %v2305 = vadd.f32 %v2214, %v2304
    %v2306 = vpop.f32.mrb[0].mxu0
    %2307 = vdwg.mxu0
    %2308 = vmatprep.subr.mxu0 0.0
    %v2309 = vand.u32 %v2127, 4294901760
    %v2310 = vsub.f32 %v2127, %v2309
    %2311 = vmatpush1.msra.mxu0 %v2310
    %2312 = vmatprep.subr.mxu0 0.0
    %v2313 = vand.u32 %v2128, 4294901760
    %v2314 = vsub.f32 %v2128, %v2313
    %2315 = vmatpush1.msra.mxu0 %v2314
    %2316 = vmatprep.subr.mxu0 0.0
    %v2317 = vand.u32 %v2129, 4294901760
    %v2318 = vsub.f32 %v2129, %v2317
    %2319 = vmatpush1.msra.mxu0 %v2318
    %2320 = vmatprep.subr.mxu0 0.0
    %v2321 = vand.u32 %v2130, 4294901760
    %v2322 = vsub.f32 %v2130, %v2321
    %2323 = vmatpush1.msra.mxu0 %v2322
    %2324 = vmatprep.subr.mxu0 0.0
    %2325 = vmatpush1.msra.mxu0 0.0
    %2326 = vmatprep.subr.mxu0 0.0
    %2327 = vmatpush1.msra.mxu0 0.0
    %2328 = vmatprep.subr.mxu0 0.0
    %2329 = vmatpush1.msra.mxu0 0.0
    %2330 = vmatprep.subr.mxu0 0.0
    %2331 = vmatpush1.msra.mxu0 0.0
    %2332 = vmatprep.subr.mxu0 0.0
    %2333 = vmatpush1.msra.mxu0 0.0
    %2334 = vmatprep.subr.mxu0 0.0
    %2335 = vmatpush1.msra.mxu0 0.0
    %2336 = vmatprep.subr.mxu0 0.0
    %2337 = vmatpush1.msra.mxu0 0.0
    %2338 = vmatprep.subr.mxu0 0.0
    %2339 = vmatpush1.msra.mxu0 0.0
    %2340 = vmatprep.subr.mxu0 0.0
    %2341 = vmatpush1.msra.mxu0 0.0
    %2342 = vmatprep.subr.mxu0 0.0
    %2343 = vmatpush1.msra.mxu0 0.0
    %2344 = vmatprep.subr.mxu0 0.0
    %2345 = vmatpush1.msra.mxu0 0.0
    %2346 = vmatprep.subr.mxu0 0.0
    %2347 = vmatpush1.msra.mxu0 0.0
    %2348 = vmatprep.subr.mxu0 0.0
    %2349 = vmatpush1.msra.mxu0 0.0
    %2350 = vmatprep.subr.mxu0 0.0
    %2351 = vmatpush1.msra.mxu0 0.0
    %2352 = vmatprep.subr.mxu0 0.0
    %2353 = vmatpush1.msra.mxu0 0.0
    %2354 = vmatprep.subr.mxu0 0.0
    %2355 = vmatpush1.msra.mxu0 0.0
    %2356 = vmatprep.subr.mxu0 0.0
    %2357 = vmatpush1.msra.mxu0 0.0
    %2358 = vmatprep.subr.mxu0 0.0
    %2359 = vmatpush1.msra.mxu0 0.0
    %2360 = vmatprep.subr.mxu0 0.0
    %2361 = vmatpush1.msra.mxu0 0.0
    %2362 = vmatprep.subr.mxu0 0.0
    %2363 = vmatpush1.msra.mxu0 0.0
    %2364 = vmatprep.subr.mxu0 0.0
    %2365 = vmatpush1.msra.mxu0 0.0
    %2366 = vmatprep.subr.mxu0 0.0
    %2367 = vmatpush1.msra.mxu0 0.0
    %2368 = vmatprep.subr.mxu0 0.0
    %2369 = vmatpush1.msra.mxu0 0.0
    %2370 = vmatprep.subr.mxu0 0.0
    %2371 = vmatpush1.msra.mxu0 0.0
    %2372 = vmatprep.subr.mxu0 0.0
    %2373 = vmatpush1.msra.mxu0 0.0
    %2374 = vmatprep.subr.mxu0 0.0
    %2375 = vmatpush1.msra.mxu0 0.0
    %2376 = vmatprep.subr.mxu0 0.0
    %2377 = vmatpush1.msra.mxu0 0.0
    %2378 = vmatprep.subr.mxu0 0.0
    %2379 = vmatpush1.msra.mxu0 0.0
    %2380 = vmatprep.mubr.f32.mxu0 0.0
    %v2381 = vand.u32 %v2136, 4294901760
    %v2382 = vsub.f32 %v2136, %v2381
    %2383 = vmatmul.mubr.f32.gmra.mrb[0].mxu0 %v2382
    %v2384 = vpop.f32.mrb[0].mxu0
    %v2385 = vadd.f32 %v2305, %v2384
    %v2386 = vpop.f32.mrb[0].mxu0
    %2387 = vdwg.mxu0
    %2388 = vmatprep.subr.mxu0 0.0
    %v2389 = vand.u32 %v2127, 4294901760
    %2390 = vmatpush1.msra.mxu0 %v2389
    %2391 = vmatprep.subr.mxu0 0.0
    %v2392 = vand.u32 %v2128, 4294901760
    %2393 = vmatpush1.msra.mxu0 %v2392
    %2394 = vmatprep.subr.mxu0 0.0
    %v2395 = vand.u32 %v2129, 4294901760
    %2396 = vmatpush1.msra.mxu0 %v2395
    %2397 = vmatprep.subr.mxu0 0.0
    %v2398 = vand.u32 %v2130, 4294901760
    %2399 = vmatpush1.msra.mxu0 %v2398
    %2400 = vmatprep.subr.mxu0 0.0
    %2401 = vmatpush1.msra.mxu0 0.0
    %2402 = vmatprep.subr.mxu0 0.0
    %2403 = vmatpush1.msra.mxu0 0.0
    %2404 = vmatprep.subr.mxu0 0.0
    %2405 = vmatpush1.msra.mxu0 0.0
    %2406 = vmatprep.subr.mxu0 0.0
    %2407 = vmatpush1.msra.mxu0 0.0
    %2408 = vmatprep.subr.mxu0 0.0
    %2409 = vmatpush1.msra.mxu0 0.0
    %2410 = vmatprep.subr.mxu0 0.0
    %2411 = vmatpush1.msra.mxu0 0.0
    %2412 = vmatprep.subr.mxu0 0.0
    %2413 = vmatpush1.msra.mxu0 0.0
    %2414 = vmatprep.subr.mxu0 0.0
    %2415 = vmatpush1.msra.mxu0 0.0
    %2416 = vmatprep.subr.mxu0 0.0
    %2417 = vmatpush1.msra.mxu0 0.0
    %2418 = vmatprep.subr.mxu0 0.0
    %2419 = vmatpush1.msra.mxu0 0.0
    %2420 = vmatprep.subr.mxu0 0.0
    %2421 = vmatpush1.msra.mxu0 0.0
    %2422 = vmatprep.subr.mxu0 0.0
    %2423 = vmatpush1.msra.mxu0 0.0
    %2424 = vmatprep.subr.mxu0 0.0
    %2425 = vmatpush1.msra.mxu0 0.0
    %2426 = vmatprep.subr.mxu0 0.0
    %2427 = vmatpush1.msra.mxu0 0.0
    %2428 = vmatprep.subr.mxu0 0.0
    %2429 = vmatpush1.msra.mxu0 0.0
    %2430 = vmatprep.subr.mxu0 0.0
    %2431 = vmatpush1.msra.mxu0 0.0
    %2432 = vmatprep.subr.mxu0 0.0
    %2433 = vmatpush1.msra.mxu0 0.0
    %2434 = vmatprep.subr.mxu0 0.0
    %2435 = vmatpush1.msra.mxu0 0.0
    %2436 = vmatprep.subr.mxu0 0.0
    %2437 = vmatpush1.msra.mxu0 0.0
    %2438 = vmatprep.subr.mxu0 0.0
    %2439 = vmatpush1.msra.mxu0 0.0
    %2440 = vmatprep.subr.mxu0 0.0
    %2441 = vmatpush1.msra.mxu0 0.0
    %2442 = vmatprep.subr.mxu0 0.0
    %2443 = vmatpush1.msra.mxu0 0.0
    %2444 = vmatprep.subr.mxu0 0.0
    %2445 = vmatpush1.msra.mxu0 0.0
    %2446 = vmatprep.subr.mxu0 0.0
    %2447 = vmatpush1.msra.mxu0 0.0
    %2448 = vmatprep.subr.mxu0 0.0
    %2449 = vmatpush1.msra.mxu0 0.0
    %2450 = vmatprep.subr.mxu0 0.0
    %2451 = vmatpush1.msra.mxu0 0.0
    %2452 = vmatprep.subr.mxu0 0.0
    %2453 = vmatpush1.msra.mxu0 0.0
    %2454 = vmatprep.subr.mxu0 0.0
    %2455 = vmatpush1.msra.mxu0 0.0
    %2456 = vmatprep.mubr.f32.mxu0 0.0
    %v2457 = vand.u32 %v2136, 4294901760
    %v2458 = vsub.f32 %v2136, %v2457
    %v2459 = vand.u32 %v2458, 4294901760
    %2460 = vmatmul.mubr.f32.gmra.mrb[0].mxu0 %v2459
    %v2461 = vpop.f32.mrb[0].mxu0
    %v2462 = vadd.f32 %v2385, %v2461
    %v2463 = vpop.f32.mrb[0].mxu0
    %2464 = vdwg.mxu0
    %2465 = vmatprep.subr.mxu0 0.0
    %v2466 = vand.u32 %v2127, 4294901760
    %v2467 = vsub.f32 %v2127, %v2466
    %v2468 = vand.u32 %v2467, 4294901760
    %2469 = vmatpush1.msra.mxu0 %v2468
    %2470 = vmatprep.subr.mxu0 0.0
    %v2471 = vand.u32 %v2128, 4294901760
    %v2472 = vsub.f32 %v2128, %v2471
    %v2473 = vand.u32 %v2472, 4294901760
    %2474 = vmatpush1.msra.mxu0 %v2473
    %2475 = vmatprep.subr.mxu0 0.0
    %v2476 = vand.u32 %v2129, 4294901760
    %v2477 = vsub.f32 %v2129, %v2476
    %v2478 = vand.u32 %v2477, 4294901760
    %2479 = vmatpush1.msra.mxu0 %v2478
    %2480 = vmatprep.subr.mxu0 0.0
    %v2481 = vand.u32 %v2130, 4294901760
    %v2482 = vsub.f32 %v2130, %v2481
    %v2483 = vand.u32 %v2482, 4294901760
    %2484 = vmatpush1.msra.mxu0 %v2483
    %2485 = vmatprep.subr.mxu0 0.0
    %2486 = vmatpush1.msra.mxu0 0.0
    %2487 = vmatprep.subr.mxu0 0.0
    %2488 = vmatpush1.msra.mxu0 0.0
    %2489 = vmatprep.subr.mxu0 0.0
    %2490 = vmatpush1.msra.mxu0 0.0
    %2491 = vmatprep.subr.mxu0 0.0
    %2492 = vmatpush1.msra.mxu0 0.0
    %2493 = vmatprep.subr.mxu0 0.0
    %2494 = vmatpush1.msra.mxu0 0.0
    %2495 = vmatprep.subr.mxu0 0.0
    %2496 = vmatpush1.msra.mxu0 0.0
    %2497 = vmatprep.subr.mxu0 0.0
    %2498 = vmatpush1.msra.mxu0 0.0
    %2499 = vmatprep.subr.mxu0 0.0
    %2500 = vmatpush1.msra.mxu0 0.0
    %2501 = vmatprep.subr.mxu0 0.0
    %2502 = vmatpush1.msra.mxu0 0.0
    %2503 = vmatprep.subr.mxu0 0.0
    %2504 = vmatpush1.msra.mxu0 0.0
    %2505 = vmatprep.subr.mxu0 0.0
    %2506 = vmatpush1.msra.mxu0 0.0
    %2507 = vmatprep.subr.mxu0 0.0
    %2508 = vmatpush1.msra.mxu0 0.0
    %2509 = vmatprep.subr.mxu0 0.0
    %2510 = vmatpush1.msra.mxu0 0.0
    %2511 = vmatprep.subr.mxu0 0.0
    %2512 = vmatpush1.msra.mxu0 0.0
    %2513 = vmatprep.subr.mxu0 0.0
    %2514 = vmatpush1.msra.mxu0 0.0
    %2515 = vmatprep.subr.mxu0 0.0
    %2516 = vmatpush1.msra.mxu0 0.0
    %2517 = vmatprep.subr.mxu0 0.0
    %2518 = vmatpush1.msra.mxu0 0.0
    %2519 = vmatprep.subr.mxu0 0.0
    %2520 = vmatpush1.msra.mxu0 0.0
    %2521 = vmatprep.subr.mxu0 0.0
    %2522 = vmatpush1.msra.mxu0 0.0
    %2523 = vmatprep.subr.mxu0 0.0
    %2524 = vmatpush1.msra.mxu0 0.0
    %2525 = vmatprep.subr.mxu0 0.0
    %2526 = vmatpush1.msra.mxu0 0.0
    %2527 = vmatprep.subr.mxu0 0.0
    %2528 = vmatpush1.msra.mxu0 0.0
    %2529 = vmatprep.subr.mxu0 0.0
    %2530 = vmatpush1.msra.mxu0 0.0
    %2531 = vmatprep.subr.mxu0 0.0
    %2532 = vmatpush1.msra.mxu0 0.0
    %2533 = vmatprep.subr.mxu0 0.0
    %2534 = vmatpush1.msra.mxu0 0.0
    %2535 = vmatprep.subr.mxu0 0.0
    %2536 = vmatpush1.msra.mxu0 0.0
    %2537 = vmatprep.subr.mxu0 0.0
    %2538 = vmatpush1.msra.mxu0 0.0
    %2539 = vmatprep.subr.mxu0 0.0
    %2540 = vmatpush1.msra.mxu0 0.0
    %2541 = vmatprep.mubr.f32.mxu0 0.0
    %v2542 = vand.u32 %v2136, 4294901760
    %2543 = vmatmul.mubr.f32.gmra.mrb[0].mxu0 %v2542
    %v2544 = vpop.f32.mrb[0].mxu0
    %v2545 = vadd.f32 %v2462, %v2544
    %v2546 = vpop.f32.mrb[0].mxu0
    %2547 = vdwg.mxu0
    %2548 = vmatprep.subr.mxu0 0.0
    %v2549 = vand.u32 %v2127, 4294901760
    %2550 = vmatpush1.msra.mxu0 %v2549
    %2551 = vmatprep.subr.mxu0 0.0
    %v2552 = vand.u32 %v2128, 4294901760
    %2553 = vmatpush1.msra.mxu0 %v2552
    %2554 = vmatprep.subr.mxu0 0.0
    %v2555 = vand.u32 %v2129, 4294901760
    %2556 = vmatpush1.msra.mxu0 %v2555
    %2557 = vmatprep.subr.mxu0 0.0
    %v2558 = vand.u32 %v2130, 4294901760
    %2559 = vmatpush1.msra.mxu0 %v2558
    %2560 = vmatprep.subr.mxu0 0.0
    %2561 = vmatpush1.msra.mxu0 0.0
    %2562 = vmatprep.subr.mxu0 0.0
    %2563 = vmatpush1.msra.mxu0 0.0
    %2564 = vmatprep.subr.mxu0 0.0
    %2565 = vmatpush1.msra.mxu0 0.0
    %2566 = vmatprep.subr.mxu0 0.0
    %2567 = vmatpush1.msra.mxu0 0.0
    %2568 = vmatprep.subr.mxu0 0.0
    %2569 = vmatpush1.msra.mxu0 0.0
    %2570 = vmatprep.subr.mxu0 0.0
    %2571 = vmatpush1.msra.mxu0 0.0
    %2572 = vmatprep.subr.mxu0 0.0
    %2573 = vmatpush1.msra.mxu0 0.0
    %2574 = vmatprep.subr.mxu0 0.0
    %2575 = vmatpush1.msra.mxu0 0.0
    %2576 = vmatprep.subr.mxu0 0.0
    %2577 = vmatpush1.msra.mxu0 0.0
    %2578 = vmatprep.subr.mxu0 0.0
    %2579 = vmatpush1.msra.mxu0 0.0
    %2580 = vmatprep.subr.mxu0 0.0
    %2581 = vmatpush1.msra.mxu0 0.0
    %2582 = vmatprep.subr.mxu0 0.0
    %2583 = vmatpush1.msra.mxu0 0.0
    %2584 = vmatprep.subr.mxu0 0.0
    %2585 = vmatpush1.msra.mxu0 0.0
    %2586 = vmatprep.subr.mxu0 0.0
    %2587 = vmatpush1.msra.mxu0 0.0
    %2588 = vmatprep.subr.mxu0 0.0
    %2589 = vmatpush1.msra.mxu0 0.0
    %2590 = vmatprep.subr.mxu0 0.0
    %2591 = vmatpush1.msra.mxu0 0.0
    %2592 = vmatprep.subr.mxu0 0.0
    %2593 = vmatpush1.msra.mxu0 0.0
    %2594 = vmatprep.subr.mxu0 0.0
    %2595 = vmatpush1.msra.mxu0 0.0
    %2596 = vmatprep.subr.mxu0 0.0
    %2597 = vmatpush1.msra.mxu0 0.0
    %2598 = vmatprep.subr.mxu0 0.0
    %2599 = vmatpush1.msra.mxu0 0.0
    %2600 = vmatprep.subr.mxu0 0.0
    %2601 = vmatpush1.msra.mxu0 0.0
    %2602 = vmatprep.subr.mxu0 0.0
    %2603 = vmatpush1.msra.mxu0 0.0
    %2604 = vmatprep.subr.mxu0 0.0
    %2605 = vmatpush1.msra.mxu0 0.0
    %2606 = vmatprep.subr.mxu0 0.0
    %2607 = vmatpush1.msra.mxu0 0.0
    %2608 = vmatprep.subr.mxu0 0.0
    %2609 = vmatpush1.msra.mxu0 0.0
    %2610 = vmatprep.subr.mxu0 0.0
    %2611 = vmatpush1.msra.mxu0 0.0
    %2612 = vmatprep.subr.mxu0 0.0
    %2613 = vmatpush1.msra.mxu0 0.0
    %2614 = vmatprep.subr.mxu0 0.0
    %2615 = vmatpush1.msra.mxu0 0.0
    %2616 = vmatprep.mubr.f32.mxu0 0.0
    %v2617 = vand.u32 %v2136, 4294901760
    %2618 = vmatmul.mubr.f32.gmra.mrb[0].mxu0 %v2617
    %v2619 = vpop.f32.mrb[0].mxu0
    %v2620 = vadd.f32 %v2545, %v2619
    %v2621 = vpop.f32.mrb[0].mxu0
    %2622 = vdwg.mxu0
    %vm2623 = vcmask 254976
    %v2624 = vsel %vm2623, %v2620, 0.0
    %2625 = vadd.xlane.f32.xlu0 %v2624
    %v2626 = vpop.xlane.xlu0 %2625
    %v2627 = vrcp.pop 32.0
    %v2628 = vmul.f32 %v2626, %v2627
    %v2629 = vsub.f32 %v2620, %v2628
    %v2630 = vmul.f32 %v2629, %v2629
    %v2631 = vsel %vm2623, %v2630, 0.0
    %2632 = vadd.xlane.f32.xlu0 %v2631
    %v2633 = vpop.xlane.xlu0 %2632
    %v2634 = vmul.f32 %v2633, %v2627
    %v2635 = vadd.f32 %v2634, 1e-06
    %v2636 = vrsqrt.pop %v2635
    %v2637 = vmul.f32 %v2629, %v2636
    %v2638 = vlaneseq
    %v2639 = vshrl.u32 %v2638, 7
    %v2640 = vsub.s32 0, %v2639
    %v2641 = vrot.slane %v63, %v2640
    %v2642 = vmul.f32 %v2637, %v2641
    %v2643 = vlaneseq
    %v2644 = vshrl.u32 %v2643, 7
    %v2645 = vsub.s32 0, %v2644
    %v2646 = vrot.slane %v64, %v2645
    %v2647 = vadd.f32 %v2642, %v2646
    %v2648 = vld [vmem:[#allocation5 + $0x18] sm:$0xff]
    %v2649 = vld [vmem:[#allocation5 + $0x38] sm:$0xff]
    %v2650 = vld [vmem:[#allocation5 + $0x58] sm:$0xff]
    %v2651 = vld [vmem:[#allocation5 + $0x78] sm:$0xff]
    %v2652 = vlaneseq
    %v2653 = vshrl.u32 %v2652, 7
    %v2654 = vsub.s32 0, %v2653
    %v2655 = vrot.slane %v61, %v2654
    %v2657 = vsel %vm75, %v2647, 0
    %2659 = vmatprep.subr.mxu0 0.0
    %v2660 = vand.u32 %v2648, 4294901760
    %2661 = vmatpush1.msra.mxu0 %v2660
    %2662 = vmatprep.subr.mxu0 0.0
    %v2663 = vand.u32 %v2649, 4294901760
    %2664 = vmatpush1.msra.mxu0 %v2663
    %2665 = vmatprep.subr.mxu0 0.0
    %v2666 = vand.u32 %v2650, 4294901760
    %2667 = vmatpush1.msra.mxu0 %v2666
    %2668 = vmatprep.subr.mxu0 0.0
    %v2669 = vand.u32 %v2651, 4294901760
    %2670 = vmatpush1.msra.mxu0 %v2669
    %2671 = vmatprep.subr.mxu0 0.0
    %2672 = vmatpush1.msra.mxu0 0.0
    %2673 = vmatprep.subr.mxu0 0.0
    %2674 = vmatpush1.msra.mxu0 0.0
    %2675 = vmatprep.subr.mxu0 0.0
    %2676 = vmatpush1.msra.mxu0 0.0
    %2677 = vmatprep.subr.mxu0 0.0
    %2678 = vmatpush1.msra.mxu0 0.0
    %2679 = vmatprep.subr.mxu0 0.0
    %2680 = vmatpush1.msra.mxu0 0.0
    %2681 = vmatprep.subr.mxu0 0.0
    %2682 = vmatpush1.msra.mxu0 0.0
    %2683 = vmatprep.subr.mxu0 0.0
    %2684 = vmatpush1.msra.mxu0 0.0
    %2685 = vmatprep.subr.mxu0 0.0
    %2686 = vmatpush1.msra.mxu0 0.0
    %2687 = vmatprep.subr.mxu0 0.0
    %2688 = vmatpush1.msra.mxu0 0.0
    %2689 = vmatprep.subr.mxu0 0.0
    %2690 = vmatpush1.msra.mxu0 0.0
    %2691 = vmatprep.subr.mxu0 0.0
    %2692 = vmatpush1.msra.mxu0 0.0
    %2693 = vmatprep.subr.mxu0 0.0
    %2694 = vmatpush1.msra.mxu0 0.0
    %2695 = vmatprep.subr.mxu0 0.0
    %2696 = vmatpush1.msra.mxu0 0.0
    %2697 = vmatprep.subr.mxu0 0.0
    %2698 = vmatpush1.msra.mxu0 0.0
    %2699 = vmatprep.subr.mxu0 0.0
    %2700 = vmatpush1.msra.mxu0 0.0
    %2701 = vmatprep.subr.mxu0 0.0
    %2702 = vmatpush1.msra.mxu0 0.0
    %2703 = vmatprep.subr.mxu0 0.0
    %2704 = vmatpush1.msra.mxu0 0.0
    %2705 = vmatprep.subr.mxu0 0.0
    %2706 = vmatpush1.msra.mxu0 0.0
    %2707 = vmatprep.subr.mxu0 0.0
    %2708 = vmatpush1.msra.mxu0 0.0
    %2709 = vmatprep.subr.mxu0 0.0
    %2710 = vmatpush1.msra.mxu0 0.0
    %2711 = vmatprep.subr.mxu0 0.0
    %2712 = vmatpush1.msra.mxu0 0.0
    %2713 = vmatprep.subr.mxu0 0.0
    %2714 = vmatpush1.msra.mxu0 0.0
    %2715 = vmatprep.subr.mxu0 0.0
    %2716 = vmatpush1.msra.mxu0 0.0
    %2717 = vmatprep.subr.mxu0 0.0
    %2718 = vmatpush1.msra.mxu0 0.0
    %2719 = vmatprep.subr.mxu0 0.0
    %2720 = vmatpush1.msra.mxu0 0.0
    %2721 = vmatprep.subr.mxu0 0.0
    %2722 = vmatpush1.msra.mxu0 0.0
    %2723 = vmatprep.subr.mxu0 0.0
    %2724 = vmatpush1.msra.mxu0 0.0
    %2725 = vmatprep.subr.mxu0 0.0
    %2726 = vmatpush1.msra.mxu0 0.0
    %2727 = vmatprep.mubr.f32.mxu0 0.0
    %v2728 = vand.u32 %v2657, 4294901760
    %v2729 = vsub.f32 %v2657, %v2728
    %v2730 = vand.u32 %v2729, 4294901760
    %v2731 = vsub.f32 %v2729, %v2730
    %v2732 = vand.u32 %v2731, 4294901760
    %2733 = vmatmul.mubr.f32.gmra.mrb[0].mxu0 %v2732
    %v2734 = vpop.f32.mrb[0].mxu0
    %v2735 = vadd.f32 %v2655, %v2734
    %v2736 = vpop.f32.mrb[0].mxu0
    %2737 = vdwg.mxu0
    %2738 = vmatprep.subr.mxu0 0.0
    %v2739 = vand.u32 %v2648, 4294901760
    %v2740 = vsub.f32 %v2648, %v2739
    %v2741 = vand.u32 %v2740, 4294901760
    %v2742 = vsub.f32 %v2740, %v2741
    %v2743 = vand.u32 %v2742, 4294901760
    %2744 = vmatpush1.msra.mxu0 %v2743
    %2745 = vmatprep.subr.mxu0 0.0
    %v2746 = vand.u32 %v2649, 4294901760
    %v2747 = vsub.f32 %v2649, %v2746
    %v2748 = vand.u32 %v2747, 4294901760
    %v2749 = vsub.f32 %v2747, %v2748
    %v2750 = vand.u32 %v2749, 4294901760
    %2751 = vmatpush1.msra.mxu0 %v2750
    %2752 = vmatprep.subr.mxu0 0.0
    %v2753 = vand.u32 %v2650, 4294901760
    %v2754 = vsub.f32 %v2650, %v2753
    %v2755 = vand.u32 %v2754, 4294901760
    %v2756 = vsub.f32 %v2754, %v2755
    %v2757 = vand.u32 %v2756, 4294901760
    %2758 = vmatpush1.msra.mxu0 %v2757
    %2759 = vmatprep.subr.mxu0 0.0
    %v2760 = vand.u32 %v2651, 4294901760
    %v2761 = vsub.f32 %v2651, %v2760
    %v2762 = vand.u32 %v2761, 4294901760
    %v2763 = vsub.f32 %v2761, %v2762
    %v2764 = vand.u32 %v2763, 4294901760
    %2765 = vmatpush1.msra.mxu0 %v2764
    %2766 = vmatprep.subr.mxu0 0.0
    %2767 = vmatpush1.msra.mxu0 0.0
    %2768 = vmatprep.subr.mxu0 0.0
    %2769 = vmatpush1.msra.mxu0 0.0
    %2770 = vmatprep.subr.mxu0 0.0
    %2771 = vmatpush1.msra.mxu0 0.0
    %2772 = vmatprep.subr.mxu0 0.0
    %2773 = vmatpush1.msra.mxu0 0.0
    %2774 = vmatprep.subr.mxu0 0.0
    %2775 = vmatpush1.msra.mxu0 0.0
    %2776 = vmatprep.subr.mxu0 0.0
    %2777 = vmatpush1.msra.mxu0 0.0
    %2778 = vmatprep.subr.mxu0 0.0
    %2779 = vmatpush1.msra.mxu0 0.0
    %2780 = vmatprep.subr.mxu0 0.0
    %2781 = vmatpush1.msra.mxu0 0.0
    %2782 = vmatprep.subr.mxu0 0.0
    %2783 = vmatpush1.msra.mxu0 0.0
    %2784 = vmatprep.subr.mxu0 0.0
    %2785 = vmatpush1.msra.mxu0 0.0
    %2786 = vmatprep.subr.mxu0 0.0
    %2787 = vmatpush1.msra.mxu0 0.0
    %2788 = vmatprep.subr.mxu0 0.0
    %2789 = vmatpush1.msra.mxu0 0.0
    %2790 = vmatprep.subr.mxu0 0.0
    %2791 = vmatpush1.msra.mxu0 0.0
    %2792 = vmatprep.subr.mxu0 0.0
    %2793 = vmatpush1.msra.mxu0 0.0
    %2794 = vmatprep.subr.mxu0 0.0
    %2795 = vmatpush1.msra.mxu0 0.0
    %2796 = vmatprep.subr.mxu0 0.0
    %2797 = vmatpush1.msra.mxu0 0.0
    %2798 = vmatprep.subr.mxu0 0.0
    %2799 = vmatpush1.msra.mxu0 0.0
    %2800 = vmatprep.subr.mxu0 0.0
    %2801 = vmatpush1.msra.mxu0 0.0
    %2802 = vmatprep.subr.mxu0 0.0
    %2803 = vmatpush1.msra.mxu0 0.0
    %2804 = vmatprep.subr.mxu0 0.0
    %2805 = vmatpush1.msra.mxu0 0.0
    %2806 = vmatprep.subr.mxu0 0.0
    %2807 = vmatpush1.msra.mxu0 0.0
    %2808 = vmatprep.subr.mxu0 0.0
    %2809 = vmatpush1.msra.mxu0 0.0
    %2810 = vmatprep.subr.mxu0 0.0
    %2811 = vmatpush1.msra.mxu0 0.0
    %2812 = vmatprep.subr.mxu0 0.0
    %2813 = vmatpush1.msra.mxu0 0.0
    %2814 = vmatprep.subr.mxu0 0.0
    %2815 = vmatpush1.msra.mxu0 0.0
    %2816 = vmatprep.subr.mxu0 0.0
    %2817 = vmatpush1.msra.mxu0 0.0
    %2818 = vmatprep.subr.mxu0 0.0
    %2819 = vmatpush1.msra.mxu0 0.0
    %2820 = vmatprep.subr.mxu0 0.0
    %2821 = vmatpush1.msra.mxu0 0.0
    %2822 = vmatprep.mubr.f32.mxu0 0.0
    %v2823 = vand.u32 %v2657, 4294901760
    %2824 = vmatmul.mubr.f32.gmra.mrb[0].mxu0 %v2823
    %v2825 = vpop.f32.mrb[0].mxu0
    %v2826 = vadd.f32 %v2735, %v2825
    %v2827 = vpop.f32.mrb[0].mxu0
    %2828 = vdwg.mxu0
    %2829 = vmatprep.subr.mxu0 0.0
    %v2830 = vand.u32 %v2648, 4294901760
    %v2831 = vsub.f32 %v2648, %v2830
    %2832 = vmatpush1.msra.mxu0 %v2831
    %2833 = vmatprep.subr.mxu0 0.0
    %v2834 = vand.u32 %v2649, 4294901760
    %v2835 = vsub.f32 %v2649, %v2834
    %2836 = vmatpush1.msra.mxu0 %v2835
    %2837 = vmatprep.subr.mxu0 0.0
    %v2838 = vand.u32 %v2650, 4294901760
    %v2839 = vsub.f32 %v2650, %v2838
    %2840 = vmatpush1.msra.mxu0 %v2839
    %2841 = vmatprep.subr.mxu0 0.0
    %v2842 = vand.u32 %v2651, 4294901760
    %v2843 = vsub.f32 %v2651, %v2842
    %2844 = vmatpush1.msra.mxu0 %v2843
    %2845 = vmatprep.subr.mxu0 0.0
    %2846 = vmatpush1.msra.mxu0 0.0
    %2847 = vmatprep.subr.mxu0 0.0
    %2848 = vmatpush1.msra.mxu0 0.0
    %2849 = vmatprep.subr.mxu0 0.0
    %2850 = vmatpush1.msra.mxu0 0.0
    %2851 = vmatprep.subr.mxu0 0.0
    %2852 = vmatpush1.msra.mxu0 0.0
    %2853 = vmatprep.subr.mxu0 0.0
    %2854 = vmatpush1.msra.mxu0 0.0
    %2855 = vmatprep.subr.mxu0 0.0
    %2856 = vmatpush1.msra.mxu0 0.0
    %2857 = vmatprep.subr.mxu0 0.0
    %2858 = vmatpush1.msra.mxu0 0.0
    %2859 = vmatprep.subr.mxu0 0.0
    %2860 = vmatpush1.msra.mxu0 0.0
    %2861 = vmatprep.subr.mxu0 0.0
    %2862 = vmatpush1.msra.mxu0 0.0
    %2863 = vmatprep.subr.mxu0 0.0
    %2864 = vmatpush1.msra.mxu0 0.0
    %2865 = vmatprep.subr.mxu0 0.0
    %2866 = vmatpush1.msra.mxu0 0.0
    %2867 = vmatprep.subr.mxu0 0.0
    %2868 = vmatpush1.msra.mxu0 0.0
    %2869 = vmatprep.subr.mxu0 0.0
    %2870 = vmatpush1.msra.mxu0 0.0
    %2871 = vmatprep.subr.mxu0 0.0
    %2872 = vmatpush1.msra.mxu0 0.0
    %2873 = vmatprep.subr.mxu0 0.0
    %2874 = vmatpush1.msra.mxu0 0.0
    %2875 = vmatprep.subr.mxu0 0.0
    %2876 = vmatpush1.msra.mxu0 0.0
    %2877 = vmatprep.subr.mxu0 0.0
    %2878 = vmatpush1.msra.mxu0 0.0
    %2879 = vmatprep.subr.mxu0 0.0
    %2880 = vmatpush1.msra.mxu0 0.0
    %2881 = vmatprep.subr.mxu0 0.0
    %2882 = vmatpush1.msra.mxu0 0.0
    %2883 = vmatprep.subr.mxu0 0.0
    %2884 = vmatpush1.msra.mxu0 0.0
    %2885 = vmatprep.subr.mxu0 0.0
    %2886 = vmatpush1.msra.mxu0 0.0
    %2887 = vmatprep.subr.mxu0 0.0
    %2888 = vmatpush1.msra.mxu0 0.0
    %2889 = vmatprep.subr.mxu0 0.0
    %2890 = vmatpush1.msra.mxu0 0.0
    %2891 = vmatprep.subr.mxu0 0.0
    %2892 = vmatpush1.msra.mxu0 0.0
    %2893 = vmatprep.subr.mxu0 0.0
    %2894 = vmatpush1.msra.mxu0 0.0
    %2895 = vmatprep.subr.mxu0 0.0
    %2896 = vmatpush1.msra.mxu0 0.0
    %2897 = vmatprep.subr.mxu0 0.0
    %2898 = vmatpush1.msra.mxu0 0.0
    %2899 = vmatprep.subr.mxu0 0.0
    %2900 = vmatpush1.msra.mxu0 0.0
    %2901 = vmatprep.mubr.f32.mxu0 0.0
    %v2902 = vand.u32 %v2657, 4294901760
    %v2903 = vsub.f32 %v2657, %v2902
    %2904 = vmatmul.mubr.f32.gmra.mrb[0].mxu0 %v2903
    %v2905 = vpop.f32.mrb[0].mxu0
    %v2906 = vadd.f32 %v2826, %v2905
    %v2907 = vpop.f32.mrb[0].mxu0
    %2908 = vdwg.mxu0
    %2909 = vmatprep.subr.mxu0 0.0
    %v2910 = vand.u32 %v2648, 4294901760
    %2911 = vmatpush1.msra.mxu0 %v2910
    %2912 = vmatprep.subr.mxu0 0.0
    %v2913 = vand.u32 %v2649, 4294901760
    %2914 = vmatpush1.msra.mxu0 %v2913
    %2915 = vmatprep.subr.mxu0 0.0
    %v2916 = vand.u32 %v2650, 4294901760
    %2917 = vmatpush1.msra.mxu0 %v2916
    %2918 = vmatprep.subr.mxu0 0.0
    %v2919 = vand.u32 %v2651, 4294901760
    %2920 = vmatpush1.msra.mxu0 %v2919
    %2921 = vmatprep.subr.mxu0 0.0
    %2922 = vmatpush1.msra.mxu0 0.0
    %2923 = vmatprep.subr.mxu0 0.0
    %2924 = vmatpush1.msra.mxu0 0.0
    %2925 = vmatprep.subr.mxu0 0.0
    %2926 = vmatpush1.msra.mxu0 0.0
    %2927 = vmatprep.subr.mxu0 0.0
    %2928 = vmatpush1.msra.mxu0 0.0
    %2929 = vmatprep.subr.mxu0 0.0
    %2930 = vmatpush1.msra.mxu0 0.0
    %2931 = vmatprep.subr.mxu0 0.0
    %2932 = vmatpush1.msra.mxu0 0.0
    %2933 = vmatprep.subr.mxu0 0.0
    %2934 = vmatpush1.msra.mxu0 0.0
    %2935 = vmatprep.subr.mxu0 0.0
    %2936 = vmatpush1.msra.mxu0 0.0
    %2937 = vmatprep.subr.mxu0 0.0
    %2938 = vmatpush1.msra.mxu0 0.0
    %2939 = vmatprep.subr.mxu0 0.0
    %2940 = vmatpush1.msra.mxu0 0.0
    %2941 = vmatprep.subr.mxu0 0.0
    %2942 = vmatpush1.msra.mxu0 0.0
    %2943 = vmatprep.subr.mxu0 0.0
    %2944 = vmatpush1.msra.mxu0 0.0
    %2945 = vmatprep.subr.mxu0 0.0
    %2946 = vmatpush1.msra.mxu0 0.0
    %2947 = vmatprep.subr.mxu0 0.0
    %2948 = vmatpush1.msra.mxu0 0.0
    %2949 = vmatprep.subr.mxu0 0.0
    %2950 = vmatpush1.msra.mxu0 0.0
    %2951 = vmatprep.subr.mxu0 0.0
    %2952 = vmatpush1.msra.mxu0 0.0
    %2953 = vmatprep.subr.mxu0 0.0
    %2954 = vmatpush1.msra.mxu0 0.0
    %2955 = vmatprep.subr.mxu0 0.0
    %2956 = vmatpush1.msra.mxu0 0.0
    %2957 = vmatprep.subr.mxu0 0.0
    %2958 = vmatpush1.msra.mxu0 0.0
    %2959 = vmatprep.subr.mxu0 0.0
    %2960 = vmatpush1.msra.mxu0 0.0
    %2961 = vmatprep.subr.mxu0 0.0
    %2962 = vmatpush1.msra.mxu0 0.0
    %2963 = vmatprep.subr.mxu0 0.0
    %2964 = vmatpush1.msra.mxu0 0.0
    %2965 = vmatprep.subr.mxu0 0.0
    %2966 = vmatpush1.msra.mxu0 0.0
    %2967 = vmatprep.subr.mxu0 0.0
    %2968 = vmatpush1.msra.mxu0 0.0
    %2969 = vmatprep.subr.mxu0 0.0
    %2970 = vmatpush1.msra.mxu0 0.0
    %2971 = vmatprep.subr.mxu0 0.0
    %2972 = vmatpush1.msra.mxu0 0.0
    %2973 = vmatprep.subr.mxu0 0.0
    %2974 = vmatpush1.msra.mxu0 0.0
    %2975 = vmatprep.subr.mxu0 0.0
    %2976 = vmatpush1.msra.mxu0 0.0
    %2977 = vmatprep.mubr.f32.mxu0 0.0
    %v2978 = vand.u32 %v2657, 4294901760
    %v2979 = vsub.f32 %v2657, %v2978
    %v2980 = vand.u32 %v2979, 4294901760
    %2981 = vmatmul.mubr.f32.gmra.mrb[0].mxu0 %v2980
    %v2982 = vpop.f32.mrb[0].mxu0
    %v2983 = vadd.f32 %v2906, %v2982
    %v2984 = vpop.f32.mrb[0].mxu0
    %2985 = vdwg.mxu0
    %2986 = vmatprep.subr.mxu0 0.0
    %v2987 = vand.u32 %v2648, 4294901760
    %v2988 = vsub.f32 %v2648, %v2987
    %v2989 = vand.u32 %v2988, 4294901760
    %2990 = vmatpush1.msra.mxu0 %v2989
    %2991 = vmatprep.subr.mxu0 0.0
    %v2992 = vand.u32 %v2649, 4294901760
    %v2993 = vsub.f32 %v2649, %v2992
    %v2994 = vand.u32 %v2993, 4294901760
    %2995 = vmatpush1.msra.mxu0 %v2994
    %2996 = vmatprep.subr.mxu0 0.0
    %v2997 = vand.u32 %v2650, 4294901760
    %v2998 = vsub.f32 %v2650, %v2997
    %v2999 = vand.u32 %v2998, 4294901760
    %3000 = vmatpush1.msra.mxu0 %v2999
    %3001 = vmatprep.subr.mxu0 0.0
    %v3002 = vand.u32 %v2651, 4294901760
    %v3003 = vsub.f32 %v2651, %v3002
    %v3004 = vand.u32 %v3003, 4294901760
    %3005 = vmatpush1.msra.mxu0 %v3004
    %3006 = vmatprep.subr.mxu0 0.0
    %3007 = vmatpush1.msra.mxu0 0.0
    %3008 = vmatprep.subr.mxu0 0.0
    %3009 = vmatpush1.msra.mxu0 0.0
    %3010 = vmatprep.subr.mxu0 0.0
    %3011 = vmatpush1.msra.mxu0 0.0
    %3012 = vmatprep.subr.mxu0 0.0
    %3013 = vmatpush1.msra.mxu0 0.0
    %3014 = vmatprep.subr.mxu0 0.0
    %3015 = vmatpush1.msra.mxu0 0.0
    %3016 = vmatprep.subr.mxu0 0.0
    %3017 = vmatpush1.msra.mxu0 0.0
    %3018 = vmatprep.subr.mxu0 0.0
    %3019 = vmatpush1.msra.mxu0 0.0
    %3020 = vmatprep.subr.mxu0 0.0
    %3021 = vmatpush1.msra.mxu0 0.0
    %3022 = vmatprep.subr.mxu0 0.0
    %3023 = vmatpush1.msra.mxu0 0.0
    %3024 = vmatprep.subr.mxu0 0.0
    %3025 = vmatpush1.msra.mxu0 0.0
    %3026 = vmatprep.subr.mxu0 0.0
    %3027 = vmatpush1.msra.mxu0 0.0
    %3028 = vmatprep.subr.mxu0 0.0
    %3029 = vmatpush1.msra.mxu0 0.0
    %3030 = vmatprep.subr.mxu0 0.0
    %3031 = vmatpush1.msra.mxu0 0.0
    %3032 = vmatprep.subr.mxu0 0.0
    %3033 = vmatpush1.msra.mxu0 0.0
    %3034 = vmatprep.subr.mxu0 0.0
    %3035 = vmatpush1.msra.mxu0 0.0
    %3036 = vmatprep.subr.mxu0 0.0
    %3037 = vmatpush1.msra.mxu0 0.0
    %3038 = vmatprep.subr.mxu0 0.0
    %3039 = vmatpush1.msra.mxu0 0.0
    %3040 = vmatprep.subr.mxu0 0.0
    %3041 = vmatpush1.msra.mxu0 0.0
    %3042 = vmatprep.subr.mxu0 0.0
    %3043 = vmatpush1.msra.mxu0 0.0
    %3044 = vmatprep.subr.mxu0 0.0
    %3045 = vmatpush1.msra.mxu0 0.0
    %3046 = vmatprep.subr.mxu0 0.0
    %3047 = vmatpush1.msra.mxu0 0.0
    %3048 = vmatprep.subr.mxu0 0.0
    %3049 = vmatpush1.msra.mxu0 0.0
    %3050 = vmatprep.subr.mxu0 0.0
    %3051 = vmatpush1.msra.mxu0 0.0
    %3052 = vmatprep.subr.mxu0 0.0
    %3053 = vmatpush1.msra.mxu0 0.0
    %3054 = vmatprep.subr.mxu0 0.0
    %3055 = vmatpush1.msra.mxu0 0.0
    %3056 = vmatprep.subr.mxu0 0.0
    %3057 = vmatpush1.msra.mxu0 0.0
    %3058 = vmatprep.subr.mxu0 0.0
    %3059 = vmatpush1.msra.mxu0 0.0
    %3060 = vmatprep.subr.mxu0 0.0
    %3061 = vmatpush1.msra.mxu0 0.0
    %3062 = vmatprep.mubr.f32.mxu0 0.0
    %v3063 = vand.u32 %v2657, 4294901760
    %3064 = vmatmul.mubr.f32.gmra.mrb[0].mxu0 %v3063
    %v3065 = vpop.f32.mrb[0].mxu0
    %v3066 = vadd.f32 %v2983, %v3065
    %v3067 = vpop.f32.mrb[0].mxu0
    %3068 = vdwg.mxu0
    %3069 = vmatprep.subr.mxu0 0.0
    %v3070 = vand.u32 %v2648, 4294901760
    %3071 = vmatpush1.msra.mxu0 %v3070
    %3072 = vmatprep.subr.mxu0 0.0
    %v3073 = vand.u32 %v2649, 4294901760
    %3074 = vmatpush1.msra.mxu0 %v3073
    %3075 = vmatprep.subr.mxu0 0.0
    %v3076 = vand.u32 %v2650, 4294901760
    %3077 = vmatpush1.msra.mxu0 %v3076
    %3078 = vmatprep.subr.mxu0 0.0
    %v3079 = vand.u32 %v2651, 4294901760
    %3080 = vmatpush1.msra.mxu0 %v3079
    %3081 = vmatprep.subr.mxu0 0.0
    %3082 = vmatpush1.msra.mxu0 0.0
    %3083 = vmatprep.subr.mxu0 0.0
    %3084 = vmatpush1.msra.mxu0 0.0
    %3085 = vmatprep.subr.mxu0 0.0
    %3086 = vmatpush1.msra.mxu0 0.0
    %3087 = vmatprep.subr.mxu0 0.0
    %3088 = vmatpush1.msra.mxu0 0.0
    %3089 = vmatprep.subr.mxu0 0.0
    %3090 = vmatpush1.msra.mxu0 0.0
    %3091 = vmatprep.subr.mxu0 0.0
    %3092 = vmatpush1.msra.mxu0 0.0
    %3093 = vmatprep.subr.mxu0 0.0
    %3094 = vmatpush1.msra.mxu0 0.0
    %3095 = vmatprep.subr.mxu0 0.0
    %3096 = vmatpush1.msra.mxu0 0.0
    %3097 = vmatprep.subr.mxu0 0.0
    %3098 = vmatpush1.msra.mxu0 0.0
    %3099 = vmatprep.subr.mxu0 0.0
    %3100 = vmatpush1.msra.mxu0 0.0
    %3101 = vmatprep.subr.mxu0 0.0
    %3102 = vmatpush1.msra.mxu0 0.0
    %3103 = vmatprep.subr.mxu0 0.0
    %3104 = vmatpush1.msra.mxu0 0.0
    %3105 = vmatprep.subr.mxu0 0.0
    %3106 = vmatpush1.msra.mxu0 0.0
    %3107 = vmatprep.subr.mxu0 0.0
    %3108 = vmatpush1.msra.mxu0 0.0
    %3109 = vmatprep.subr.mxu0 0.0
    %3110 = vmatpush1.msra.mxu0 0.0
    %3111 = vmatprep.subr.mxu0 0.0
    %3112 = vmatpush1.msra.mxu0 0.0
    %3113 = vmatprep.subr.mxu0 0.0
    %3114 = vmatpush1.msra.mxu0 0.0
    %3115 = vmatprep.subr.mxu0 0.0
    %3116 = vmatpush1.msra.mxu0 0.0
    %3117 = vmatprep.subr.mxu0 0.0
    %3118 = vmatpush1.msra.mxu0 0.0
    %3119 = vmatprep.subr.mxu0 0.0
    %3120 = vmatpush1.msra.mxu0 0.0
    %3121 = vmatprep.subr.mxu0 0.0
    %3122 = vmatpush1.msra.mxu0 0.0
    %3123 = vmatprep.subr.mxu0 0.0
    %3124 = vmatpush1.msra.mxu0 0.0
    %3125 = vmatprep.subr.mxu0 0.0
    %3126 = vmatpush1.msra.mxu0 0.0
    %3127 = vmatprep.subr.mxu0 0.0
    %3128 = vmatpush1.msra.mxu0 0.0
    %3129 = vmatprep.subr.mxu0 0.0
    %3130 = vmatpush1.msra.mxu0 0.0
    %3131 = vmatprep.subr.mxu0 0.0
    %3132 = vmatpush1.msra.mxu0 0.0
    %3133 = vmatprep.subr.mxu0 0.0
    %3134 = vmatpush1.msra.mxu0 0.0
    %3135 = vmatprep.subr.mxu0 0.0
    %3136 = vmatpush1.msra.mxu0 0.0
    %3137 = vmatprep.mubr.f32.mxu0 0.0
    %v3138 = vand.u32 %v2657, 4294901760
    %3139 = vmatmul.mubr.f32.gmra.mrb[0].mxu0 %v3138
    %v3140 = vpop.f32.mrb[0].mxu0
    %v3141 = vadd.f32 %v3066, %v3140
    %v3142 = vpop.f32.mrb[0].mxu0
    %3143 = vdwg.mxu0
    %v3144 = vmul.f32 %v3141, 0.5
    %v3145 = vmul.f32 %v3141, 0.044715
    %v3146 = vmul.f32 %v3145, %v3141
    %v3147 = vmul.f32 %v3146, %v3141
    %v3148 = vadd.f32 %v3141, %v3147
    %v3149 = vmul.f32 %v3148, 0.7978846
    %v3150 = vtanh.pop %v3149
    %v3151 = vadd.f32 %v3150, 1.0
    %v3152 = vmul.f32 %v3144, %v3151
    %v3153 = vld [vmem:[#allocation7] sm:$0xff]
    %v3154 = vld [vmem:[#allocation7 + $0x8] sm:$0xff]
    %v3155 = vld [vmem:[#allocation7 + $0x10] sm:$0xff]
    %v3156 = vld [vmem:[#allocation7 + $0x18] sm:$0xff]
    %v3157 = vld [vmem:[#allocation7 + $0x20] sm:$0xff]
    %v3158 = vld [vmem:[#allocation7 + $0x28] sm:$0xff]
    %v3159 = vld [vmem:[#allocation7 + $0x30] sm:$0xff]
    %v3160 = vld [vmem:[#allocation7 + $0x38] sm:$0xff]
    %v3161 = vld [vmem:[#allocation7 + $0x40] sm:$0xff]
    %v3162 = vld [vmem:[#allocation7 + $0x48] sm:$0xff]
    %v3163 = vld [vmem:[#allocation7 + $0x50] sm:$0xff]
    %v3164 = vld [vmem:[#allocation7 + $0x58] sm:$0xff]
    %v3165 = vld [vmem:[#allocation7 + $0x60] sm:$0xff]
    %v3166 = vld [vmem:[#allocation7 + $0x68] sm:$0xff]
    %v3167 = vld [vmem:[#allocation7 + $0x70] sm:$0xff]
    %v3168 = vld [vmem:[#allocation7 + $0x78] sm:$0xff]
    %v3169 = vlaneseq
    %v3170 = vshrl.u32 %v3169, 7
    %v3171 = vsub.s32 0, %v3170
    %v3172 = vrot.slane %v62, %v3171
    %3173 = vmatprep.subr.mxu0 0.0
    %v3174 = vand.u32 %v3153, 4294901760
    %3175 = vmatpush1.msra.mxu0 %v3174
    %3176 = vmatprep.subr.mxu0 0.0
    %v3177 = vand.u32 %v3154, 4294901760
    %3178 = vmatpush1.msra.mxu0 %v3177
    %3179 = vmatprep.subr.mxu0 0.0
    %v3180 = vand.u32 %v3155, 4294901760
    %3181 = vmatpush1.msra.mxu0 %v3180
    %3182 = vmatprep.subr.mxu0 0.0
    %v3183 = vand.u32 %v3156, 4294901760
    %3184 = vmatpush1.msra.mxu0 %v3183
    %3185 = vmatprep.subr.mxu0 0.0
    %v3186 = vand.u32 %v3157, 4294901760
    %3187 = vmatpush1.msra.mxu0 %v3186
    %3188 = vmatprep.subr.mxu0 0.0
    %v3189 = vand.u32 %v3158, 4294901760
    %3190 = vmatpush1.msra.mxu0 %v3189
    %3191 = vmatprep.subr.mxu0 0.0
    %v3192 = vand.u32 %v3159, 4294901760
    %3193 = vmatpush1.msra.mxu0 %v3192
    %3194 = vmatprep.subr.mxu0 0.0
    %v3195 = vand.u32 %v3160, 4294901760
    %3196 = vmatpush1.msra.mxu0 %v3195
    %3197 = vmatprep.subr.mxu0 0.0
    %v3198 = vand.u32 %v3161, 4294901760
    %3199 = vmatpush1.msra.mxu0 %v3198
    %3200 = vmatprep.subr.mxu0 0.0
    %v3201 = vand.u32 %v3162, 4294901760
    %3202 = vmatpush1.msra.mxu0 %v3201
    %3203 = vmatprep.subr.mxu0 0.0
    %v3204 = vand.u32 %v3163, 4294901760
    %3205 = vmatpush1.msra.mxu0 %v3204
    %3206 = vmatprep.subr.mxu0 0.0
    %v3207 = vand.u32 %v3164, 4294901760
    %3208 = vmatpush1.msra.mxu0 %v3207
    %3209 = vmatprep.subr.mxu0 0.0
    %v3210 = vand.u32 %v3165, 4294901760
    %3211 = vmatpush1.msra.mxu0 %v3210
    %3212 = vmatprep.subr.mxu0 0.0
    %v3213 = vand.u32 %v3166, 4294901760
    %3214 = vmatpush1.msra.mxu0 %v3213
    %3215 = vmatprep.subr.mxu0 0.0
    %v3216 = vand.u32 %v3167, 4294901760
    %3217 = vmatpush1.msra.mxu0 %v3216
    %3218 = vmatprep.subr.mxu0 0.0
    %v3219 = vand.u32 %v3168, 4294901760
    %3220 = vmatpush1.msra.mxu0 %v3219
    %3221 = vmatprep.subr.mxu0 0.0
    %3222 = vmatpush1.msra.mxu0 0.0
    %3223 = vmatprep.subr.mxu0 0.0
    %3224 = vmatpush1.msra.mxu0 0.0
    %3225 = vmatprep.subr.mxu0 0.0
    %3226 = vmatpush1.msra.mxu0 0.0
    %3227 = vmatprep.subr.mxu0 0.0
    %3228 = vmatpush1.msra.mxu0 0.0
    %3229 = vmatprep.subr.mxu0 0.0
    %3230 = vmatpush1.msra.mxu0 0.0
    %3231 = vmatprep.subr.mxu0 0.0
    %3232 = vmatpush1.msra.mxu0 0.0
    %3233 = vmatprep.subr.mxu0 0.0
    %3234 = vmatpush1.msra.mxu0 0.0
    %3235 = vmatprep.subr.mxu0 0.0
    %3236 = vmatpush1.msra.mxu0 0.0
    %3237 = vmatprep.subr.mxu0 0.0
    %3238 = vmatpush1.msra.mxu0 0.0
    %3239 = vmatprep.subr.mxu0 0.0
    %3240 = vmatpush1.msra.mxu0 0.0
    %3241 = vmatprep.subr.mxu0 0.0
    %3242 = vmatpush1.msra.mxu0 0.0
    %3243 = vmatprep.subr.mxu0 0.0
    %3244 = vmatpush1.msra.mxu0 0.0
    %3245 = vmatprep.subr.mxu0 0.0
    %3246 = vmatpush1.msra.mxu0 0.0
    %3247 = vmatprep.subr.mxu0 0.0
    %3248 = vmatpush1.msra.mxu0 0.0
    %3249 = vmatprep.subr.mxu0 0.0
    %3250 = vmatpush1.msra.mxu0 0.0
    %3251 = vmatprep.subr.mxu0 0.0
    %3252 = vmatpush1.msra.mxu0 0.0
    %3253 = vmatprep.mubr.f32.mxu0 0.0
    %v3254 = vand.u32 %v3152, 4294901760
    %v3255 = vsub.f32 %v3152, %v3254
    %v3256 = vand.u32 %v3255, 4294901760
    %v3257 = vsub.f32 %v3255, %v3256
    %v3258 = vand.u32 %v3257, 4294901760
    %3259 = vmatmul.mubr.f32.gmra.mrb[0].mxu0 %v3258
    %v3260 = vpop.f32.mrb[0].mxu0
    %v3261 = vadd.f32 %v3172, %v3260
    %v3262 = vpop.f32.mrb[0].mxu0
    %3263 = vdwg.mxu0
    %3264 = vmatprep.subr.mxu0 0.0
    %v3265 = vand.u32 %v3153, 4294901760
    %v3266 = vsub.f32 %v3153, %v3265
    %v3267 = vand.u32 %v3266, 4294901760
    %v3268 = vsub.f32 %v3266, %v3267
    %v3269 = vand.u32 %v3268, 4294901760
    %3270 = vmatpush1.msra.mxu0 %v3269
    %3271 = vmatprep.subr.mxu0 0.0
    %v3272 = vand.u32 %v3154, 4294901760
    %v3273 = vsub.f32 %v3154, %v3272
    %v3274 = vand.u32 %v3273, 4294901760
    %v3275 = vsub.f32 %v3273, %v3274
    %v3276 = vand.u32 %v3275, 4294901760
    %3277 = vmatpush1.msra.mxu0 %v3276
    %3278 = vmatprep.subr.mxu0 0.0
    %v3279 = vand.u32 %v3155, 4294901760
    %v3280 = vsub.f32 %v3155, %v3279
    %v3281 = vand.u32 %v3280, 4294901760
    %v3282 = vsub.f32 %v3280, %v3281
    %v3283 = vand.u32 %v3282, 4294901760
    %3284 = vmatpush1.msra.mxu0 %v3283
    %3285 = vmatprep.subr.mxu0 0.0
    %v3286 = vand.u32 %v3156, 4294901760
    %v3287 = vsub.f32 %v3156, %v3286
    %v3288 = vand.u32 %v3287, 4294901760
    %v3289 = vsub.f32 %v3287, %v3288
    %v3290 = vand.u32 %v3289, 4294901760
    %3291 = vmatpush1.msra.mxu0 %v3290
    %3292 = vmatprep.subr.mxu0 0.0
    %v3293 = vand.u32 %v3157, 4294901760
    %v3294 = vsub.f32 %v3157, %v3293
    %v3295 = vand.u32 %v3294, 4294901760
    %v3296 = vsub.f32 %v3294, %v3295
    %v3297 = vand.u32 %v3296, 4294901760
    %3298 = vmatpush1.msra.mxu0 %v3297
    %3299 = vmatprep.subr.mxu0 0.0
    %v3300 = vand.u32 %v3158, 4294901760
    %v3301 = vsub.f32 %v3158, %v3300
    %v3302 = vand.u32 %v3301, 4294901760
    %v3303 = vsub.f32 %v3301, %v3302
    %v3304 = vand.u32 %v3303, 4294901760
    %3305 = vmatpush1.msra.mxu0 %v3304
    %3306 = vmatprep.subr.mxu0 0.0
    %v3307 = vand.u32 %v3159, 4294901760
    %v3308 = vsub.f32 %v3159, %v3307
    %v3309 = vand.u32 %v3308, 4294901760
    %v3310 = vsub.f32 %v3308, %v3309
    %v3311 = vand.u32 %v3310, 4294901760
    %3312 = vmatpush1.msra.mxu0 %v3311
    %3313 = vmatprep.subr.mxu0 0.0
    %v3314 = vand.u32 %v3160, 4294901760
    %v3315 = vsub.f32 %v3160, %v3314
    %v3316 = vand.u32 %v3315, 4294901760
    %v3317 = vsub.f32 %v3315, %v3316
    %v3318 = vand.u32 %v3317, 4294901760
    %3319 = vmatpush1.msra.mxu0 %v3318
    %3320 = vmatprep.subr.mxu0 0.0
    %v3321 = vand.u32 %v3161, 4294901760
    %v3322 = vsub.f32 %v3161, %v3321
    %v3323 = vand.u32 %v3322, 4294901760
    %v3324 = vsub.f32 %v3322, %v3323
    %v3325 = vand.u32 %v3324, 4294901760
    %3326 = vmatpush1.msra.mxu0 %v3325
    %3327 = vmatprep.subr.mxu0 0.0
    %v3328 = vand.u32 %v3162, 4294901760
    %v3329 = vsub.f32 %v3162, %v3328
    %v3330 = vand.u32 %v3329, 4294901760
    %v3331 = vsub.f32 %v3329, %v3330
    %v3332 = vand.u32 %v3331, 4294901760
    %3333 = vmatpush1.msra.mxu0 %v3332
    %3334 = vmatprep.subr.mxu0 0.0
    %v3335 = vand.u32 %v3163, 4294901760
    %v3336 = vsub.f32 %v3163, %v3335
    %v3337 = vand.u32 %v3336, 4294901760
    %v3338 = vsub.f32 %v3336, %v3337
    %v3339 = vand.u32 %v3338, 4294901760
    %3340 = vmatpush1.msra.mxu0 %v3339
    %3341 = vmatprep.subr.mxu0 0.0
    %v3342 = vand.u32 %v3164, 4294901760
    %v3343 = vsub.f32 %v3164, %v3342
    %v3344 = vand.u32 %v3343, 4294901760
    %v3345 = vsub.f32 %v3343, %v3344
    %v3346 = vand.u32 %v3345, 4294901760
    %3347 = vmatpush1.msra.mxu0 %v3346
    %3348 = vmatprep.subr.mxu0 0.0
    %v3349 = vand.u32 %v3165, 4294901760
    %v3350 = vsub.f32 %v3165, %v3349
    %v3351 = vand.u32 %v3350, 4294901760
    %v3352 = vsub.f32 %v3350, %v3351
    %v3353 = vand.u32 %v3352, 4294901760
    %3354 = vmatpush1.msra.mxu0 %v3353
    %3355 = vmatprep.subr.mxu0 0.0
    %v3356 = vand.u32 %v3166, 4294901760
    %v3357 = vsub.f32 %v3166, %v3356
    %v3358 = vand.u32 %v3357, 4294901760
    %v3359 = vsub.f32 %v3357, %v3358
    %v3360 = vand.u32 %v3359, 4294901760
    %3361 = vmatpush1.msra.mxu0 %v3360
    %3362 = vmatprep.subr.mxu0 0.0
    %v3363 = vand.u32 %v3167, 4294901760
    %v3364 = vsub.f32 %v3167, %v3363
    %v3365 = vand.u32 %v3364, 4294901760
    %v3366 = vsub.f32 %v3364, %v3365
    %v3367 = vand.u32 %v3366, 4294901760
    %3368 = vmatpush1.msra.mxu0 %v3367
    %3369 = vmatprep.subr.mxu0 0.0
    %v3370 = vand.u32 %v3168, 4294901760
    %v3371 = vsub.f32 %v3168, %v3370
    %v3372 = vand.u32 %v3371, 4294901760
    %v3373 = vsub.f32 %v3371, %v3372
    %v3374 = vand.u32 %v3373, 4294901760
    %3375 = vmatpush1.msra.mxu0 %v3374
    %3376 = vmatprep.subr.mxu0 0.0
    %3377 = vmatpush1.msra.mxu0 0.0
    %3378 = vmatprep.subr.mxu0 0.0
    %3379 = vmatpush1.msra.mxu0 0.0
    %3380 = vmatprep.subr.mxu0 0.0
    %3381 = vmatpush1.msra.mxu0 0.0
    %3382 = vmatprep.subr.mxu0 0.0
    %3383 = vmatpush1.msra.mxu0 0.0
    %3384 = vmatprep.subr.mxu0 0.0
    %3385 = vmatpush1.msra.mxu0 0.0
    %3386 = vmatprep.subr.mxu0 0.0
    %3387 = vmatpush1.msra.mxu0 0.0
    %3388 = vmatprep.subr.mxu0 0.0
    %3389 = vmatpush1.msra.mxu0 0.0
    %3390 = vmatprep.subr.mxu0 0.0
    %3391 = vmatpush1.msra.mxu0 0.0
    %3392 = vmatprep.subr.mxu0 0.0
    %3393 = vmatpush1.msra.mxu0 0.0
    %3394 = vmatprep.subr.mxu0 0.0
    %3395 = vmatpush1.msra.mxu0 0.0
    %3396 = vmatprep.subr.mxu0 0.0
    %3397 = vmatpush1.msra.mxu0 0.0
    %3398 = vmatprep.subr.mxu0 0.0
    %3399 = vmatpush1.msra.mxu0 0.0
    %3400 = vmatprep.subr.mxu0 0.0
    %3401 = vmatpush1.msra.mxu0 0.0
    %3402 = vmatprep.subr.mxu0 0.0
    %3403 = vmatpush1.msra.mxu0 0.0
    %3404 = vmatprep.subr.mxu0 0.0
    %3405 = vmatpush1.msra.mxu0 0.0
    %3406 = vmatprep.subr.mxu0 0.0
    %3407 = vmatpush1.msra.mxu0 0.0
    %3408 = vmatprep.mubr.f32.mxu0 0.0
    %v3409 = vand.u32 %v3152, 4294901760
    %3410 = vmatmul.mubr.f32.gmra.mrb[0].mxu0 %v3409
    %v3411 = vpop.f32.mrb[0].mxu0
    %v3412 = vadd.f32 %v3261, %v3411
    %v3413 = vpop.f32.mrb[0].mxu0
    %3414 = vdwg.mxu0
    %3415 = vmatprep.subr.mxu0 0.0
    %v3416 = vand.u32 %v3153, 4294901760
    %v3417 = vsub.f32 %v3153, %v3416
    %3418 = vmatpush1.msra.mxu0 %v3417
    %3419 = vmatprep.subr.mxu0 0.0
    %v3420 = vand.u32 %v3154, 4294901760
    %v3421 = vsub.f32 %v3154, %v3420
    %3422 = vmatpush1.msra.mxu0 %v3421
    %3423 = vmatprep.subr.mxu0 0.0
    %v3424 = vand.u32 %v3155, 4294901760
    %v3425 = vsub.f32 %v3155, %v3424
    %3426 = vmatpush1.msra.mxu0 %v3425
    %3427 = vmatprep.subr.mxu0 0.0
    %v3428 = vand.u32 %v3156, 4294901760
    %v3429 = vsub.f32 %v3156, %v3428
    %3430 = vmatpush1.msra.mxu0 %v3429
    %3431 = vmatprep.subr.mxu0 0.0
    %v3432 = vand.u32 %v3157, 4294901760
    %v3433 = vsub.f32 %v3157, %v3432
    %3434 = vmatpush1.msra.mxu0 %v3433
    %3435 = vmatprep.subr.mxu0 0.0
    %v3436 = vand.u32 %v3158, 4294901760
    %v3437 = vsub.f32 %v3158, %v3436
    %3438 = vmatpush1.msra.mxu0 %v3437
    %3439 = vmatprep.subr.mxu0 0.0
    %v3440 = vand.u32 %v3159, 4294901760
    %v3441 = vsub.f32 %v3159, %v3440
    %3442 = vmatpush1.msra.mxu0 %v3441
    %3443 = vmatprep.subr.mxu0 0.0
    %v3444 = vand.u32 %v3160, 4294901760
    %v3445 = vsub.f32 %v3160, %v3444
    %3446 = vmatpush1.msra.mxu0 %v3445
    %3447 = vmatprep.subr.mxu0 0.0
    %v3448 = vand.u32 %v3161, 4294901760
    %v3449 = vsub.f32 %v3161, %v3448
    %3450 = vmatpush1.msra.mxu0 %v3449
    %3451 = vmatprep.subr.mxu0 0.0
    %v3452 = vand.u32 %v3162, 4294901760
    %v3453 = vsub.f32 %v3162, %v3452
    %3454 = vmatpush1.msra.mxu0 %v3453
    %3455 = vmatprep.subr.mxu0 0.0
    %v3456 = vand.u32 %v3163, 4294901760
    %v3457 = vsub.f32 %v3163, %v3456
    %3458 = vmatpush1.msra.mxu0 %v3457
    %3459 = vmatprep.subr.mxu0 0.0
    %v3460 = vand.u32 %v3164, 4294901760
    %v3461 = vsub.f32 %v3164, %v3460
    %3462 = vmatpush1.msra.mxu0 %v3461
    %3463 = vmatprep.subr.mxu0 0.0
    %v3464 = vand.u32 %v3165, 4294901760
    %v3465 = vsub.f32 %v3165, %v3464
    %3466 = vmatpush1.msra.mxu0 %v3465
    %3467 = vmatprep.subr.mxu0 0.0
    %v3468 = vand.u32 %v3166, 4294901760
    %v3469 = vsub.f32 %v3166, %v3468
    %3470 = vmatpush1.msra.mxu0 %v3469
    %3471 = vmatprep.subr.mxu0 0.0
    %v3472 = vand.u32 %v3167, 4294901760
    %v3473 = vsub.f32 %v3167, %v3472
    %3474 = vmatpush1.msra.mxu0 %v3473
    %3475 = vmatprep.subr.mxu0 0.0
    %v3476 = vand.u32 %v3168, 4294901760
    %v3477 = vsub.f32 %v3168, %v3476
    %3478 = vmatpush1.msra.mxu0 %v3477
    %3479 = vmatprep.subr.mxu0 0.0
    %3480 = vmatpush1.msra.mxu0 0.0
    %3481 = vmatprep.subr.mxu0 0.0
    %3482 = vmatpush1.msra.mxu0 0.0
    %3483 = vmatprep.subr.mxu0 0.0
    %3484 = vmatpush1.msra.mxu0 0.0
    %3485 = vmatprep.subr.mxu0 0.0
    %3486 = vmatpush1.msra.mxu0 0.0
    %3487 = vmatprep.subr.mxu0 0.0
    %3488 = vmatpush1.msra.mxu0 0.0
    %3489 = vmatprep.subr.mxu0 0.0
    %3490 = vmatpush1.msra.mxu0 0.0
    %3491 = vmatprep.subr.mxu0 0.0
    %3492 = vmatpush1.msra.mxu0 0.0
    %3493 = vmatprep.subr.mxu0 0.0
    %3494 = vmatpush1.msra.mxu0 0.0
    %3495 = vmatprep.subr.mxu0 0.0
    %3496 = vmatpush1.msra.mxu0 0.0
    %3497 = vmatprep.subr.mxu0 0.0
    %3498 = vmatpush1.msra.mxu0 0.0
    %3499 = vmatprep.subr.mxu0 0.0
    %3500 = vmatpush1.msra.mxu0 0.0
    %3501 = vmatprep.subr.mxu0 0.0
    %3502 = vmatpush1.msra.mxu0 0.0
    %3503 = vmatprep.subr.mxu0 0.0
    %3504 = vmatpush1.msra.mxu0 0.0
    %3505 = vmatprep.subr.mxu0 0.0
    %3506 = vmatpush1.msra.mxu0 0.0
    %3507 = vmatprep.subr.mxu0 0.0
    %3508 = vmatpush1.msra.mxu0 0.0
    %3509 = vmatprep.subr.mxu0 0.0
    %3510 = vmatpush1.msra.mxu0 0.0
    %3511 = vmatprep.mubr.f32.mxu0 0.0
    %v3512 = vand.u32 %v3152, 4294901760
    %v3513 = vsub.f32 %v3152, %v3512
    %3514 = vmatmul.mubr.f32.gmra.mrb[0].mxu0 %v3513
    %v3515 = vpop.f32.mrb[0].mxu0
    %v3516 = vadd.f32 %v3412, %v3515
    %v3517 = vpop.f32.mrb[0].mxu0
    %3518 = vdwg.mxu0
    %3519 = vmatprep.subr.mxu0 0.0
    %v3520 = vand.u32 %v3153, 4294901760
    %3521 = vmatpush1.msra.mxu0 %v3520
    %3522 = vmatprep.subr.mxu0 0.0
    %v3523 = vand.u32 %v3154, 4294901760
    %3524 = vmatpush1.msra.mxu0 %v3523
    %3525 = vmatprep.subr.mxu0 0.0
    %v3526 = vand.u32 %v3155, 4294901760
    %3527 = vmatpush1.msra.mxu0 %v3526
    %3528 = vmatprep.subr.mxu0 0.0
    %v3529 = vand.u32 %v3156, 4294901760
    %3530 = vmatpush1.msra.mxu0 %v3529
    %3531 = vmatprep.subr.mxu0 0.0
    %v3532 = vand.u32 %v3157, 4294901760
    %3533 = vmatpush1.msra.mxu0 %v3532
    %3534 = vmatprep.subr.mxu0 0.0
    %v3535 = vand.u32 %v3158, 4294901760
    %3536 = vmatpush1.msra.mxu0 %v3535
    %3537 = vmatprep.subr.mxu0 0.0
    %v3538 = vand.u32 %v3159, 4294901760
    %3539 = vmatpush1.msra.mxu0 %v3538
    %3540 = vmatprep.subr.mxu0 0.0
    %v3541 = vand.u32 %v3160, 4294901760
    %3542 = vmatpush1.msra.mxu0 %v3541
    %3543 = vmatprep.subr.mxu0 0.0
    %v3544 = vand.u32 %v3161, 4294901760
    %3545 = vmatpush1.msra.mxu0 %v3544
    %3546 = vmatprep.subr.mxu0 0.0
    %v3547 = vand.u32 %v3162, 4294901760
    %3548 = vmatpush1.msra.mxu0 %v3547
    %3549 = vmatprep.subr.mxu0 0.0
    %v3550 = vand.u32 %v3163, 4294901760
    %3551 = vmatpush1.msra.mxu0 %v3550
    %3552 = vmatprep.subr.mxu0 0.0
    %v3553 = vand.u32 %v3164, 4294901760
    %3554 = vmatpush1.msra.mxu0 %v3553
    %3555 = vmatprep.subr.mxu0 0.0
    %v3556 = vand.u32 %v3165, 4294901760
    %3557 = vmatpush1.msra.mxu0 %v3556
    %3558 = vmatprep.subr.mxu0 0.0
    %v3559 = vand.u32 %v3166, 4294901760
    %3560 = vmatpush1.msra.mxu0 %v3559
    %3561 = vmatprep.subr.mxu0 0.0
    %v3562 = vand.u32 %v3167, 4294901760
    %3563 = vmatpush1.msra.mxu0 %v3562
    %3564 = vmatprep.subr.mxu0 0.0
    %v3565 = vand.u32 %v3168, 4294901760
    %3566 = vmatpush1.msra.mxu0 %v3565
    %3567 = vmatprep.subr.mxu0 0.0
    %3568 = vmatpush1.msra.mxu0 0.0
    %3569 = vmatprep.subr.mxu0 0.0
    %3570 = vmatpush1.msra.mxu0 0.0
    %3571 = vmatprep.subr.mxu0 0.0
    %3572 = vmatpush1.msra.mxu0 0.0
    %3573 = vmatprep.subr.mxu0 0.0
    %3574 = vmatpush1.msra.mxu0 0.0
    %3575 = vmatprep.subr.mxu0 0.0
    %3576 = vmatpush1.msra.mxu0 0.0
    %3577 = vmatprep.subr.mxu0 0.0
    %3578 = vmatpush1.msra.mxu0 0.0
    %3579 = vmatprep.subr.mxu0 0.0
    %3580 = vmatpush1.msra.mxu0 0.0
    %3581 = vmatprep.subr.mxu0 0.0
    %3582 = vmatpush1.msra.mxu0 0.0
    %3583 = vmatprep.subr.mxu0 0.0
    %3584 = vmatpush1.msra.mxu0 0.0
    %3585 = vmatprep.subr.mxu0 0.0
    %3586 = vmatpush1.msra.mxu0 0.0
    %3587 = vmatprep.subr.mxu0 0.0
    %3588 = vmatpush1.msra.mxu0 0.0
    %3589 = vmatprep.subr.mxu0 0.0
    %3590 = vmatpush1.msra.mxu0 0.0
    %3591 = vmatprep.subr.mxu0 0.0
    %3592 = vmatpush1.msra.mxu0 0.0
    %3593 = vmatprep.subr.mxu0 0.0
    %3594 = vmatpush1.msra.mxu0 0.0
    %3595 = vmatprep.subr.mxu0 0.0
    %3596 = vmatpush1.msra.mxu0 0.0
    %3597 = vmatprep.subr.mxu0 0.0
    %3598 = vmatpush1.msra.mxu0 0.0
    %3599 = vmatprep.mubr.f32.mxu0 0.0
    %v3600 = vand.u32 %v3152, 4294901760
    %v3601 = vsub.f32 %v3152, %v3600
    %v3602 = vand.u32 %v3601, 4294901760
    %3603 = vmatmul.mubr.f32.gmra.mrb[0].mxu0 %v3602
    %v3604 = vpop.f32.mrb[0].mxu0
    %v3605 = vadd.f32 %v3516, %v3604
    %v3606 = vpop.f32.mrb[0].mxu0
    %3607 = vdwg.mxu0
    %3608 = vmatprep.subr.mxu0 0.0
    %v3609 = vand.u32 %v3153, 4294901760
    %v3610 = vsub.f32 %v3153, %v3609
    %v3611 = vand.u32 %v3610, 4294901760
    %3612 = vmatpush1.msra.mxu0 %v3611
    %3613 = vmatprep.subr.mxu0 0.0
    %v3614 = vand.u32 %v3154, 4294901760
    %v3615 = vsub.f32 %v3154, %v3614
    %v3616 = vand.u32 %v3615, 4294901760
    %3617 = vmatpush1.msra.mxu0 %v3616
    %3618 = vmatprep.subr.mxu0 0.0
    %v3619 = vand.u32 %v3155, 4294901760
    %v3620 = vsub.f32 %v3155, %v3619
    %v3621 = vand.u32 %v3620, 4294901760
    %3622 = vmatpush1.msra.mxu0 %v3621
    %3623 = vmatprep.subr.mxu0 0.0
    %v3624 = vand.u32 %v3156, 4294901760
    %v3625 = vsub.f32 %v3156, %v3624
    %v3626 = vand.u32 %v3625, 4294901760
    %3627 = vmatpush1.msra.mxu0 %v3626
    %3628 = vmatprep.subr.mxu0 0.0
    %v3629 = vand.u32 %v3157, 4294901760
    %v3630 = vsub.f32 %v3157, %v3629
    %v3631 = vand.u32 %v3630, 4294901760
    %3632 = vmatpush1.msra.mxu0 %v3631
    %3633 = vmatprep.subr.mxu0 0.0
    %v3634 = vand.u32 %v3158, 4294901760
    %v3635 = vsub.f32 %v3158, %v3634
    %v3636 = vand.u32 %v3635, 4294901760
    %3637 = vmatpush1.msra.mxu0 %v3636
    %3638 = vmatprep.subr.mxu0 0.0
    %v3639 = vand.u32 %v3159, 4294901760
    %v3640 = vsub.f32 %v3159, %v3639
    %v3641 = vand.u32 %v3640, 4294901760
    %3642 = vmatpush1.msra.mxu0 %v3641
    %3643 = vmatprep.subr.mxu0 0.0
    %v3644 = vand.u32 %v3160, 4294901760
    %v3645 = vsub.f32 %v3160, %v3644
    %v3646 = vand.u32 %v3645, 4294901760
    %3647 = vmatpush1.msra.mxu0 %v3646
    %3648 = vmatprep.subr.mxu0 0.0
    %v3649 = vand.u32 %v3161, 4294901760
    %v3650 = vsub.f32 %v3161, %v3649
    %v3651 = vand.u32 %v3650, 4294901760
    %3652 = vmatpush1.msra.mxu0 %v3651
    %3653 = vmatprep.subr.mxu0 0.0
    %v3654 = vand.u32 %v3162, 4294901760
    %v3655 = vsub.f32 %v3162, %v3654
    %v3656 = vand.u32 %v3655, 4294901760
    %3657 = vmatpush1.msra.mxu0 %v3656
    %3658 = vmatprep.subr.mxu0 0.0
    %v3659 = vand.u32 %v3163, 4294901760
    %v3660 = vsub.f32 %v3163, %v3659
    %v3661 = vand.u32 %v3660, 4294901760
    %3662 = vmatpush1.msra.mxu0 %v3661
    %3663 = vmatprep.subr.mxu0 0.0
    %v3664 = vand.u32 %v3164, 4294901760
    %v3665 = vsub.f32 %v3164, %v3664
    %v3666 = vand.u32 %v3665, 4294901760
    %3667 = vmatpush1.msra.mxu0 %v3666
    %3668 = vmatprep.subr.mxu0 0.0
    %v3669 = vand.u32 %v3165, 4294901760
    %v3670 = vsub.f32 %v3165, %v3669
    %v3671 = vand.u32 %v3670, 4294901760
    %3672 = vmatpush1.msra.mxu0 %v3671
    %3673 = vmatprep.subr.mxu0 0.0
    %v3674 = vand.u32 %v3166, 4294901760
    %v3675 = vsub.f32 %v3166, %v3674
    %v3676 = vand.u32 %v3675, 4294901760
    %3677 = vmatpush1.msra.mxu0 %v3676
    %3678 = vmatprep.subr.mxu0 0.0
    %v3679 = vand.u32 %v3167, 4294901760
    %v3680 = vsub.f32 %v3167, %v3679
    %v3681 = vand.u32 %v3680, 4294901760
    %3682 = vmatpush1.msra.mxu0 %v3681
    %3683 = vmatprep.subr.mxu0 0.0
    %v3684 = vand.u32 %v3168, 4294901760
    %v3685 = vsub.f32 %v3168, %v3684
    %v3686 = vand.u32 %v3685, 4294901760
    %3687 = vmatpush1.msra.mxu0 %v3686
    %3688 = vmatprep.subr.mxu0 0.0
    %3689 = vmatpush1.msra.mxu0 0.0
    %3690 = vmatprep.subr.mxu0 0.0
    %3691 = vmatpush1.msra.mxu0 0.0
    %3692 = vmatprep.subr.mxu0 0.0
    %3693 = vmatpush1.msra.mxu0 0.0
    %3694 = vmatprep.subr.mxu0 0.0
    %3695 = vmatpush1.msra.mxu0 0.0
    %3696 = vmatprep.subr.mxu0 0.0
    %3697 = vmatpush1.msra.mxu0 0.0
    %3698 = vmatprep.subr.mxu0 0.0
    %3699 = vmatpush1.msra.mxu0 0.0
    %3700 = vmatprep.subr.mxu0 0.0
    %3701 = vmatpush1.msra.mxu0 0.0
    %3702 = vmatprep.subr.mxu0 0.0
    %3703 = vmatpush1.msra.mxu0 0.0
    %3704 = vmatprep.subr.mxu0 0.0
    %3705 = vmatpush1.msra.mxu0 0.0
    %3706 = vmatprep.subr.mxu0 0.0
    %3707 = vmatpush1.msra.mxu0 0.0
    %3708 = vmatprep.subr.mxu0 0.0
    %3709 = vmatpush1.msra.mxu0 0.0
    %3710 = vmatprep.subr.mxu0 0.0
    %3711 = vmatpush1.msra.mxu0 0.0
    %3712 = vmatprep.subr.mxu0 0.0
    %3713 = vmatpush1.msra.mxu0 0.0
    %3714 = vmatprep.subr.mxu0 0.0
    %3715 = vmatpush1.msra.mxu0 0.0
    %3716 = vmatprep.subr.mxu0 0.0
    %3717 = vmatpush1.msra.mxu0 0.0
    %3718 = vmatprep.subr.mxu0 0.0
    %3719 = vmatpush1.msra.mxu0 0.0
    %3720 = vmatprep.mubr.f32.mxu0 0.0
    %v3721 = vand.u32 %v3152, 4294901760
    %3722 = vmatmul.mubr.f32.gmra.mrb[0].mxu0 %v3721
    %v3723 = vpop.f32.mrb[0].mxu0
    %v3724 = vadd.f32 %v3605, %v3723
    %v3725 = vpop.f32.mrb[0].mxu0
    %3726 = vdwg.mxu0
    %3727 = vmatprep.subr.mxu0 0.0
    %v3728 = vand.u32 %v3153, 4294901760
    %3729 = vmatpush1.msra.mxu0 %v3728
    %3730 = vmatprep.subr.mxu0 0.0
    %v3731 = vand.u32 %v3154, 4294901760
    %3732 = vmatpush1.msra.mxu0 %v3731
    %3733 = vmatprep.subr.mxu0 0.0
    %v3734 = vand.u32 %v3155, 4294901760
    %3735 = vmatpush1.msra.mxu0 %v3734
    %3736 = vmatprep.subr.mxu0 0.0
    %v3737 = vand.u32 %v3156, 4294901760
    %3738 = vmatpush1.msra.mxu0 %v3737
    %3739 = vmatprep.subr.mxu0 0.0
    %v3740 = vand.u32 %v3157, 4294901760
    %3741 = vmatpush1.msra.mxu0 %v3740
    %3742 = vmatprep.subr.mxu0 0.0
    %v3743 = vand.u32 %v3158, 4294901760
    %3744 = vmatpush1.msra.mxu0 %v3743
    %3745 = vmatprep.subr.mxu0 0.0
    %v3746 = vand.u32 %v3159, 4294901760
    %3747 = vmatpush1.msra.mxu0 %v3746
    %3748 = vmatprep.subr.mxu0 0.0
    %v3749 = vand.u32 %v3160, 4294901760
    %3750 = vmatpush1.msra.mxu0 %v3749
    %3751 = vmatprep.subr.mxu0 0.0
    %v3752 = vand.u32 %v3161, 4294901760
    %3753 = vmatpush1.msra.mxu0 %v3752
    %3754 = vmatprep.subr.mxu0 0.0
    %v3755 = vand.u32 %v3162, 4294901760
    %3756 = vmatpush1.msra.mxu0 %v3755
    %3757 = vmatprep.subr.mxu0 0.0
    %v3758 = vand.u32 %v3163, 4294901760
    %3759 = vmatpush1.msra.mxu0 %v3758
    %3760 = vmatprep.subr.mxu0 0.0
    %v3761 = vand.u32 %v3164, 4294901760
    %3762 = vmatpush1.msra.mxu0 %v3761
    %3763 = vmatprep.subr.mxu0 0.0
    %v3764 = vand.u32 %v3165, 4294901760
    %3765 = vmatpush1.msra.mxu0 %v3764
    %3766 = vmatprep.subr.mxu0 0.0
    %v3767 = vand.u32 %v3166, 4294901760
    %3768 = vmatpush1.msra.mxu0 %v3767
    %3769 = vmatprep.subr.mxu0 0.0
    %v3770 = vand.u32 %v3167, 4294901760
    %3771 = vmatpush1.msra.mxu0 %v3770
    %3772 = vmatprep.subr.mxu0 0.0
    %v3773 = vand.u32 %v3168, 4294901760
    %3774 = vmatpush1.msra.mxu0 %v3773
    %3775 = vmatprep.subr.mxu0 0.0
    %3776 = vmatpush1.msra.mxu0 0.0
    %3777 = vmatprep.subr.mxu0 0.0
    %3778 = vmatpush1.msra.mxu0 0.0
    %3779 = vmatprep.subr.mxu0 0.0
    %3780 = vmatpush1.msra.mxu0 0.0
    %3781 = vmatprep.subr.mxu0 0.0
    %3782 = vmatpush1.msra.mxu0 0.0
    %3783 = vmatprep.subr.mxu0 0.0
    %3784 = vmatpush1.msra.mxu0 0.0
    %3785 = vmatprep.subr.mxu0 0.0
    %3786 = vmatpush1.msra.mxu0 0.0
    %3787 = vmatprep.subr.mxu0 0.0
    %3788 = vmatpush1.msra.mxu0 0.0
    %3789 = vmatprep.subr.mxu0 0.0
    %3790 = vmatpush1.msra.mxu0 0.0
    %3791 = vmatprep.subr.mxu0 0.0
    %3792 = vmatpush1.msra.mxu0 0.0
    %3793 = vmatprep.subr.mxu0 0.0
    %3794 = vmatpush1.msra.mxu0 0.0
    %3795 = vmatprep.subr.mxu0 0.0
    %3796 = vmatpush1.msra.mxu0 0.0
    %3797 = vmatprep.subr.mxu0 0.0
    %3798 = vmatpush1.msra.mxu0 0.0
    %3799 = vmatprep.subr.mxu0 0.0
    %3800 = vmatpush1.msra.mxu0 0.0
    %3801 = vmatprep.subr.mxu0 0.0
    %3802 = vmatpush1.msra.mxu0 0.0
    %3803 = vmatprep.subr.mxu0 0.0
    %3804 = vmatpush1.msra.mxu0 0.0
    %3805 = vmatprep.subr.mxu0 0.0
    %3806 = vmatpush1.msra.mxu0 0.0
    %3807 = vmatprep.mubr.f32.mxu0 0.0
    %v3808 = vand.u32 %v3152, 4294901760
    %3809 = vmatmul.mubr.f32.gmra.mrb[0].mxu0 %v3808
    %v3810 = vpop.f32.mrb[0].mxu0
    %v3811 = vadd.f32 %v3724, %v3810
    %v3812 = vpop.f32.mrb[0].mxu0
    %3813 = vdwg.mxu0
    %v3814 = vadd.f32 %v2620, %v3811
    %3815 = vst.msk [vmem:[#allocation8] sm:$0x3] %vm2623, %v3814
    // Predicated region
    $region26: #{tpu_custom_call.1} parent=1 // pred_check
      _
    $region27: #{tpu_custom_call.1} parent=1 // pred_check_branch
      %3817 = sbr.rel (0) target = $region29
    $region28: #{tpu_custom_call.1} parent=1 // pred_region
      %s3819 = ssub.s32 32, 32
      %3820 = vsyncadd [#allocation4], %s3819
      %s3822 = sshll.u32 [#allocation8], 4
      %s3823 = int_to_ptr.vmem [resolvable:$true] %s3822
      %3825 = dma.vmem_to_hbm [thread:$0]  %s3823, 32, %s3, [#allocation4]
    $region29: #{tpu_custom_call.1} parent=1 // pred_fallthru
      _
    // Predicated region
    $region30: #{tpu_custom_call.1} parent=1 // pred_check
      _
    $region31: #{tpu_custom_call.1} parent=1 // pred_check_branch
      %3827 = sbr.rel (0) target = $region33
    $region32: #{tpu_custom_call.1} parent=1 // pred_region
      %3828 = dma.done [#allocation4], 32
    $region33: #{tpu_custom_call.1} parent=1 // pred_fallthru
      _
    %3829 = vsyncpa [#allocation3], 1
    %3830 = vsyncpa [#allocation6], 1
    %3831 = vsyncpa [#allocation4], 1

</llo_original>
